<compile_context>
chip_gen: v7x
topology: tpu7x:2x2x1
jax: 0.10.0
libtpu: 0.0.40
codegen_flags: <defaults>
</compile_context>

<pallas_src>
import functools

import jax
import jax.numpy as jnp
from jax import lax
from jax.experimental import pallas as pl
from jax.experimental.pallas import tpu as pltpu


# ----------------------------------------------------------------------------
# In-kernel helpers
# ----------------------------------------------------------------------------
def _pad_hw(a, p, value):
    """Spatially pad a (H, W, C) VMEM array by p on each side with `value`."""
    if p == 0:
        return a
    h, w, c = a.shape
    dt = a.dtype
    col = jnp.full((h, p, c), value, dt)
    a = jnp.concatenate([col, a, col], axis=1)
    row = jnp.full((p, w + 2 * p, c), value, dt)
    return jnp.concatenate([row, a, row], axis=0)


# ----------------------------------------------------------------------------
# Fused Inception kernel: one grid step == one batch image.
# ----------------------------------------------------------------------------
def _inception_kernel(x_ref, w1_ref, sb1_ref, w3_ref, sb3_ref,
                      w5_ref, sb5_ref, wp_ref, sbp_ref, o_ref,
                      *, n1, n3r, n5r):
    _, h, w, c = x_ref.shape
    x = x_ref[0]                                        # (h, w, c) bf16

    # ---- fused 1x1 stage: [b1 | r3 | r5] = relu(bn(x @ W_cat)) --------------
    sb1 = sb1_ref[...]                                  # (2, n1+n3r+n5r) f32
    y = jnp.dot(x.reshape(h * w, c), w1_ref[...],
                preferred_element_type=jnp.float32)     # (h*w, n1+n3r+n5r)
    y = jnp.maximum(y * sb1[0:1, :] + sb1[1:2, :], 0.0)
    b1 = y[:, :n1]                                      # branch-1 output (f32)
    y16 = y.astype(jnp.bfloat16)                        # bf16 intermediates
    r3 = y16[:, n1:n1 + n3r].reshape(h, w, n3r)
    r5 = y16[:, n1 + n3r:n1 + n3r + n5r].reshape(h, w, n5r)

    def spatial_conv(r, wt_ref, sb_ref):
        # kxk conv as k matmuls with K = k*cin: dx taps are concatenated along
        # the channel axis once; dy taps become contiguous row slices.
        k, kcin, cout = wt_ref.shape
        p = (k - 1) // 2
        rp = _pad_hw(r, p, 0.0)                         # (h+2p, w+2p, cin) bf16
        rcat = jnp.concatenate(
            [rp[:, dx:dx + w, :] for dx in range(k)], axis=-1)  # (h+2p, w, k*cin)
        rcat = rcat.reshape((h + 2 * p) * w, kcin)
        acc = jnp.zeros((h * w, cout), jnp.float32)
        for dy in range(k):                             # static unroll
            acc = acc + jnp.dot(rcat[dy * w:(dy + h) * w, :], wt_ref[dy],
                                preferred_element_type=jnp.float32)
        sb = sb_ref[...]
        return jnp.maximum(acc * sb[0:1, :] + sb[1:2, :], 0.0)

    b3 = spatial_conv(r3, w3_ref, sb3_ref)              # (h*w, n3) f32
    b5 = spatial_conv(r5, w5_ref, sb5_ref)              # (h*w, n5) f32

    # ---- pool branch: 3x3/s1 max pool (-inf pad) + 1x1 proj + BN + ReLU -----
    xp = _pad_hw(x, 1, -jnp.inf)                        # (h+2, w+2, c) bf16
    cmax = jnp.maximum(jnp.maximum(xp[:, 0:w, :], xp[:, 1:w + 1, :]),
                       xp[:, 2:w + 2, :])               # (h+2, w, c)
    m = jnp.maximum(jnp.maximum(cmax[0:h], cmax[1:h + 1]), cmax[2:h + 2])
    sbp = sbp_ref[...]
    bp = jnp.dot(m.reshape(h * w, c), wp_ref[...],
                 preferred_element_type=jnp.float32)
    bp = jnp.maximum(bp * sbp[0:1, :] + sbp[1:2, :], 0.0)

    # ---- single pre-concatenated output slab: [b1 | b3 | b5 | bp] -----------
    out = jnp.concatenate([b1, b3, b5, bp], axis=-1)    # (h*w, ctot) f32
    o_ref[...] = out.reshape(1, h, w, out.shape[-1]).astype(o_ref.dtype)


# ----------------------------------------------------------------------------
# Glue: BN folding, weight packing, pallas_call wrapper
# ----------------------------------------------------------------------------
def _bn_fold(conv_b, gamma, beta, mean, var, eps=1e-5):
    scale = gamma / jnp.sqrt(var + eps)
    bias = beta + (conv_b - mean) * scale
    return jnp.stack([scale, bias]).astype(jnp.float32)      # (2, cout)


def inception_forward(x_nchw, params, *, out_dtype=jnp.float32):
    x = jnp.transpose(x_nchw, (0, 2, 3, 1)).astype(jnp.bfloat16)   # NHWC bf16
    n, h, w, c = x.shape

    w1, b1, g1, be1, mu1, v1 = params["b1"]
    w3r, b3r, g3r, be3r, mu3r, v3r = params["b3_reduce"]
    w3, b3, g3, be3, mu3, v3 = params["b3"]
    w5r, b5r, g5r, be5r, mu5r, v5r = params["b5_reduce"]
    w5, b5, g5, be5, mu5, v5 = params["b5"]
    wp, bp, gp, bep, mup, vp = params["pool_proj"]

    c1, c3r, c3 = w1.shape[0], w3r.shape[0], w3.shape[0]
    c5r, c5, cpp = w5r.shape[0], w5.shape[0], wp.shape[0]
    s1 = c1 + c3r + c5r
    ctot = c1 + c3 + c5 + cpp

    # fused [1x1 | 3x3-reduce | 5x5-reduce] weights + folded BN
    w_cat = jnp.concatenate(
        [w1.reshape(c1, c), w3r.reshape(c3r, c), w5r.reshape(c5r, c)],
        axis=0).T.astype(jnp.bfloat16)                               # (c, s1)
    sb1 = jnp.concatenate(
        [_bn_fold(b1, g1, be1, mu1, v1),
         _bn_fold(b3r, g3r, be3r, mu3r, v3r),
         _bn_fold(b5r, g5r, be5r, mu5r, v5r)], axis=1)               # (2, s1)

    # per-dy packed spatial conv weights: (k, k*cin, cout), dx-major rows
    w3p = jnp.transpose(w3, (2, 3, 1, 0)).reshape(3, 3 * c3r, c3)
    w3p = w3p.astype(jnp.bfloat16)
    sb3 = _bn_fold(b3, g3, be3, mu3, v3)
    w5p = jnp.transpose(w5, (2, 3, 1, 0)).reshape(5, 5 * c5r, c5)
    w5p = w5p.astype(jnp.bfloat16)
    sb5 = _bn_fold(b5, g5, be5, mu5, v5)

    wpp = wp.reshape(cpp, c).T.astype(jnp.bfloat16)                  # (c, cpp)
    sbp = _bn_fold(bp, gp, bep, mup, vp)

    kern = functools.partial(_inception_kernel, n1=c1, n3r=c3r, n5r=c5r)
    out_nhwc = pl.pallas_call(
        kern,
        out_shape=jax.ShapeDtypeStruct((n, h, w, ctot), out_dtype),
        grid_spec=pltpu.PrefetchScalarGridSpec(
            num_scalar_prefetch=0,
            grid=(n,),
            in_specs=[
                pl.BlockSpec((1, h, w, c), lambda i: (i, 0, 0, 0)),
                pl.BlockSpec((c, s1), lambda i: (0, 0)),
                pl.BlockSpec((2, s1), lambda i: (0, 0)),
                pl.BlockSpec((3, 3 * c3r, c3), lambda i: (0, 0, 0)),
                pl.BlockSpec((2, c3), lambda i: (0, 0)),
                pl.BlockSpec((5, 5 * c5r, c5), lambda i: (0, 0, 0)),
                pl.BlockSpec((2, c5), lambda i: (0, 0)),
                pl.BlockSpec((c, cpp), lambda i: (0, 0)),
                pl.BlockSpec((2, cpp), lambda i: (0, 0)),
            ],
            out_specs=pl.BlockSpec((1, h, w, ctot), lambda i: (i, 0, 0, 0)),
        ),
        compiler_params=pltpu.CompilerParams(
            dimension_semantics=("parallel",)),
    )(x, w_cat, sb1, w3p, sb3, w5p, sb5, wpp, sbp)

    return jnp.transpose(out_nhwc, (0, 3, 1, 2))                     # NCHW


# ----------------------------------------------------------------------------
# Deterministic parameter init (shapes follow the PyTorch module __init__)
# ----------------------------------------------------------------------------
def init_conv_bn(key, cin, cout, k):
    kw, kb, kg, kbe, km, kv = jax.random.split(key, 6)
    fan_in = cin * k * k
    w = jax.random.normal(kw, (cout, cin, k, k), jnp.float32) / jnp.sqrt(fan_in)
    b = 0.1 * jax.random.normal(kb, (cout,), jnp.float32)
    gamma = 1.0 + 0.1 * jax.random.normal(kg, (cout,), jnp.float32)
    beta = 0.1 * jax.random.normal(kbe, (cout,), jnp.float32)
    mean = 0.1 * jax.random.normal(km, (cout,), jnp.float32)
    var = 0.9 + 0.1 * jnp.abs(jax.random.normal(kv, (cout,), jnp.float32))
    return (w, b, gamma, beta, mean, var)


def init_inception(key, cin, n1x1, n3r, n3, n5r, n5, pool_proj):
    keys = jax.random.split(key, 6)
    return {
        "b1":        init_conv_bn(keys[0], cin, n1x1, 1),
        "b3_reduce": init_conv_bn(keys[1], cin, n3r, 1),
        "b3":        init_conv_bn(keys[2], n3r, n3, 3),
        "b5_reduce": init_conv_bn(keys[3], cin, n5r, 1),
        "b5":        init_conv_bn(keys[4], n5r, n5, 5),
        "pool_proj": init_conv_bn(keys[5], cin, pool_proj, 1),
    }


# ----------------------------------------------------------------------------
# Pure-JAX reference (lax.conv / reduce_window) for correctness checking
# ----------------------------------------------------------------------------
def _ref_conv_bn_relu(x_nchw, w, b, gamma, beta, mean, var, pad, eps=1e-5):
    y = lax.conv_general_dilated(
        x_nchw, w, window_strides=(1, 1), padding=[(pad, pad), (pad, pad)],
        dimension_numbers=("NCHW", "OIHW", "NCHW"))
    y = y + b[None, :, None, None]
    scale = gamma / jnp.sqrt(var + eps)
    y = (y - mean[None, :, None, None]) * scale[None, :, None, None] \
        + beta[None, :, None, None]
    return jnp.maximum(y, 0.0)


def _ref_forward(x_nchw, p):
    b1 = _ref_conv_bn_relu(x_nchw, *p["b1"], pad=0)
    r3 = _ref_conv_bn_relu(x_nchw, *p["b3_reduce"], pad=0)
    b3 = _ref_conv_bn_relu(r3, *p["b3"], pad=1)
    r5 = _ref_conv_bn_relu(x_nchw, *p["b5_reduce"], pad=0)
    b5 = _ref_conv_bn_relu(r5, *p["b5"], pad=2)
    pooled = lax.reduce_window(
        x_nchw, -jnp.inf, lax.max, (1, 1, 3, 3), (1, 1, 1, 1),
        [(0, 0), (0, 0), (1, 1), (1, 1)])
    bp = _ref_conv_bn_relu(pooled, *p["pool_proj"], pad=0)
    return jnp.concatenate([b1, b3, b5, bp], axis=1)


# ----------------------------------------------------------------------------
if __name__ == "__main__":
    key = jax.random.PRNGKey(0)
    kx, kp = jax.random.split(key)

    # Inception(in_channels=4, n1x1=8, n3x3_reduced=4, n3x3=8,
    #           n5x5_reduced=4, n5x5=8, pool_proj=8)
    N, C, H, W = 2, 4, 16, 16
    x = jax.random.normal(kx, (N, C, H, W), jnp.float32)
    params = init_inception(kp, C, 8, 4, 8, 4, 8, 8)

    fwd = jax.jit(inception_forward)
    out = jax.block_until_ready(fwd(x, params))
    assert out.shape == (N, 8 + 8 + 8 + 8, H, W), out.shape

    ref = jax.block_until_ready(_ref_forward(x, params))
    assert jnp.all(jnp.isfinite(out))
    # bf16 MXU inputs -> slightly looser tolerance than pure-f32.
    assert jnp.allclose(out, ref, rtol=3e-2, atol=3e-2), \
        float(jnp.max(jnp.abs(out - ref)))

    print("KERNEL_OK")
</pallas_src>

<mosaic_0001>
module attributes {stable_mosaic.version = 11 : i64} {
  func.func @_inception_kernel(%arg0: i32, %arg1: memref<1x16x16x4xbf16, #tpu.memory_space<vmem>>, %arg2: memref<4x16xbf16, #tpu.memory_space<vmem>>, %arg3: memref<2x16xf32, #tpu.memory_space<vmem>>, %arg4: memref<3x12x8xbf16, #tpu.memory_space<vmem>>, %arg5: memref<2x8xf32, #tpu.memory_space<vmem>>, %arg6: memref<5x20x8xbf16, #tpu.memory_space<vmem>>, %arg7: memref<2x8xf32, #tpu.memory_space<vmem>>, %arg8: memref<4x8xbf16, #tpu.memory_space<vmem>>, %arg9: memref<2x8xf32, #tpu.memory_space<vmem>>, %arg10: memref<1x16x16x32xf32, #tpu.memory_space<vmem>>) attributes {dimension_semantics = [#tpu.dimension_semantics<parallel>], iteration_bounds = array<i64: 2>, scalar_prefetch = 0 : i64, scratch_operands = 0 : i64, tpu.core_type = #tpu.core_type<tc>, window_params = [{transform_indices = @transform_0, window_bounds = array<i64: 1, 16, 16, 4>}, {pipeline_mode = #tpu.pipeline_mode<synchronous>, transform_indices = @transform_1, window_bounds = array<i64: 4, 16>}, {pipeline_mode = #tpu.pipeline_mode<synchronous>, transform_indices = @transform_2, window_bounds = array<i64: 2, 16>}, {pipeline_mode = #tpu.pipeline_mode<synchronous>, transform_indices = @transform_3, window_bounds = array<i64: 3, 12, 8>}, {pipeline_mode = #tpu.pipeline_mode<synchronous>, transform_indices = @transform_4, window_bounds = array<i64: 2, 8>}, {pipeline_mode = #tpu.pipeline_mode<synchronous>, transform_indices = @transform_5, window_bounds = array<i64: 5, 20, 8>}, {pipeline_mode = #tpu.pipeline_mode<synchronous>, transform_indices = @transform_6, window_bounds = array<i64: 2, 8>}, {pipeline_mode = #tpu.pipeline_mode<synchronous>, transform_indices = @transform_7, window_bounds = array<i64: 4, 8>}, {pipeline_mode = #tpu.pipeline_mode<synchronous>, transform_indices = @transform_8, window_bounds = array<i64: 2, 8>}, {transform_indices = @transform_9, window_bounds = array<i64: 1, 16, 16, 32>}]} {
    %c0 = arith.constant 0 : index
    %c0_0 = arith.constant 0 : index
    %c0_1 = arith.constant 0 : index
    %c0_2 = arith.constant 0 : index
    %0 = vector.load %arg1[%c0, %c0_0, %c0_1, %c0_2] : memref<1x16x16x4xbf16, #tpu.memory_space<vmem>>, vector<1x16x16x4xbf16>
    %1 = vector.shape_cast %0 : vector<1x16x16x4xbf16> to vector<16x16x4xbf16>
    %c0_3 = arith.constant 0 : index
    %c0_4 = arith.constant 0 : index
    %2 = vector.load %arg3[%c0_3, %c0_4] : memref<2x16xf32, #tpu.memory_space<vmem>>, vector<2x16xf32>
    %3 = vector.shape_cast %1 : vector<16x16x4xbf16> to vector<256x4xbf16>
    %c0_5 = arith.constant 0 : index
    %c0_6 = arith.constant 0 : index
    %4 = vector.load %arg2[%c0_5, %c0_6] : memref<4x16xbf16, #tpu.memory_space<vmem>>, vector<4x16xbf16>
    %cst = arith.constant dense<0.000000e+00> : vector<256x16xf32>
    %5 = tpu.matmul %3, %4, %cst {dimension_numbers = #tpu.dot_dimension_numbers<[1], [0], [0], [1], [0, 0, 1, 1], [], []>} : vector<256x4xbf16>, vector<4x16xbf16>, vector<256x16xf32> -> vector<256x16xf32>
    %6 = vector.extract_strided_slice %2 {offsets = [0, 0], sizes = [1, 16], strides = [1, 1]} : vector<2x16xf32> to vector<1x16xf32>
    %7 = vector.broadcast %6 : vector<1x16xf32> to vector<256x16xf32>
    %8 = arith.mulf %5, %7 : vector<256x16xf32>
    %9 = vector.extract_strided_slice %2 {offsets = [1, 0], sizes = [1, 16], strides = [1, 1]} : vector<2x16xf32> to vector<1x16xf32>
    %10 = vector.broadcast %9 : vector<1x16xf32> to vector<256x16xf32>
    %11 = arith.addf %8, %10 : vector<256x16xf32>
    %cst_7 = arith.constant 0.000000e+00 : f32
    %12 = vector.broadcast %cst_7 : f32 to vector<256x16xf32>
    %13 = arith.maximumf %11, %12 : vector<256x16xf32>
    %14 = vector.extract_strided_slice %13 {offsets = [0, 0], sizes = [256, 8], strides = [1, 1]} : vector<256x16xf32> to vector<256x8xf32>
    %15 = arith.truncf %13 : vector<256x16xf32> to vector<256x16xbf16>
    %16 = vector.extract_strided_slice %15 {offsets = [0, 8], sizes = [256, 4], strides = [1, 1]} : vector<256x16xbf16> to vector<256x4xbf16>
    %17 = vector.shape_cast %16 : vector<256x4xbf16> to vector<16x16x4xbf16>
    %18 = vector.extract_strided_slice %15 {offsets = [0, 12], sizes = [256, 4], strides = [1, 1]} : vector<256x16xbf16> to vector<256x4xbf16>
    %19 = vector.shape_cast %18 : vector<256x4xbf16> to vector<16x16x4xbf16>
    %cst_8 = arith.constant 0.000000e+00 : bf16
    %20 = vector.broadcast %cst_8 : bf16 to vector<16x1x4xbf16>
    %21 = tpu.concatenate %20, %17, %20 in 1 : vector<16x1x4xbf16>, vector<16x16x4xbf16>, vector<16x1x4xbf16> -> vector<16x18x4xbf16>
    %cst_9 = arith.constant 0.000000e+00 : bf16
    %22 = vector.broadcast %cst_9 : bf16 to vector<1x18x4xbf16>
    %23 = tpu.concatenate %22, %21, %22 in 0 : vector<1x18x4xbf16>, vector<16x18x4xbf16>, vector<1x18x4xbf16> -> vector<18x18x4xbf16>
    %24 = vector.extract_strided_slice %23 {offsets = [0, 0, 0], sizes = [18, 16, 4], strides = [1, 1, 1]} : vector<18x18x4xbf16> to vector<18x16x4xbf16>
    %25 = vector.extract_strided_slice %23 {offsets = [0, 1, 0], sizes = [18, 16, 4], strides = [1, 1, 1]} : vector<18x18x4xbf16> to vector<18x16x4xbf16>
    %26 = vector.extract_strided_slice %23 {offsets = [0, 2, 0], sizes = [18, 16, 4], strides = [1, 1, 1]} : vector<18x18x4xbf16> to vector<18x16x4xbf16>
    %27 = tpu.concatenate %24, %25, %26 in 2 : vector<18x16x4xbf16>, vector<18x16x4xbf16>, vector<18x16x4xbf16> -> vector<18x16x12xbf16>
    %28 = vector.shape_cast %27 : vector<18x16x12xbf16> to vector<288x12xbf16>
    %cst_10 = arith.constant 0.000000e+00 : f32
    %29 = vector.broadcast %cst_10 : f32 to vector<256x8xf32>
    %30 = vector.extract_strided_slice %28 {offsets = [0, 0], sizes = [256, 12], strides = [1, 1]} : vector<288x12xbf16> to vector<256x12xbf16>
    %c0_11 = arith.constant 0 : index
    %c0_12 = arith.constant 0 : index
    %c0_13 = arith.constant 0 : index
    %31 = vector.load %arg4[%c0_11, %c0_12, %c0_13] : memref<3x12x8xbf16, #tpu.memory_space<vmem>>, vector<1x12x8xbf16>
    %32 = vector.shape_cast %31 : vector<1x12x8xbf16> to vector<12x8xbf16>
    %cst_14 = arith.constant dense<0.000000e+00> : vector<256x8xf32>
    %33 = tpu.matmul %30, %32, %cst_14 {dimension_numbers = #tpu.dot_dimension_numbers<[1], [0], [0], [1], [0, 0, 1, 1], [], []>} : vector<256x12xbf16>, vector<12x8xbf16>, vector<256x8xf32> -> vector<256x8xf32>
    %34 = arith.addf %29, %33 : vector<256x8xf32>
    %35 = vector.extract_strided_slice %28 {offsets = [16, 0], sizes = [256, 12], strides = [1, 1]} : vector<288x12xbf16> to vector<256x12xbf16>
    %c1 = arith.constant 1 : index
    %c0_15 = arith.constant 0 : index
    %c0_16 = arith.constant 0 : index
    %36 = vector.load %arg4[%c1, %c0_15, %c0_16] : memref<3x12x8xbf16, #tpu.memory_space<vmem>>, vector<1x12x8xbf16>
    %37 = vector.shape_cast %36 : vector<1x12x8xbf16> to vector<12x8xbf16>
    %cst_17 = arith.constant dense<0.000000e+00> : vector<256x8xf32>
    %38 = tpu.matmul %35, %37, %cst_17 {dimension_numbers = #tpu.dot_dimension_numbers<[1], [0], [0], [1], [0, 0, 1, 1], [], []>} : vector<256x12xbf16>, vector<12x8xbf16>, vector<256x8xf32> -> vector<256x8xf32>
    %39 = arith.addf %34, %38 : vector<256x8xf32>
    %40 = vector.extract_strided_slice %28 {offsets = [32, 0], sizes = [256, 12], strides = [1, 1]} : vector<288x12xbf16> to vector<256x12xbf16>
    %c2 = arith.constant 2 : index
    %c0_18 = arith.constant 0 : index
    %c0_19 = arith.constant 0 : index
    %41 = vector.load %arg4[%c2, %c0_18, %c0_19] : memref<3x12x8xbf16, #tpu.memory_space<vmem>>, vector<1x12x8xbf16>
    %42 = vector.shape_cast %41 : vector<1x12x8xbf16> to vector<12x8xbf16>
    %cst_20 = arith.constant dense<0.000000e+00> : vector<256x8xf32>
    %43 = tpu.matmul %40, %42, %cst_20 {dimension_numbers = #tpu.dot_dimension_numbers<[1], [0], [0], [1], [0, 0, 1, 1], [], []>} : vector<256x12xbf16>, vector<12x8xbf16>, vector<256x8xf32> -> vector<256x8xf32>
    %44 = arith.addf %39, %43 : vector<256x8xf32>
    %c0_21 = arith.constant 0 : index
    %c0_22 = arith.constant 0 : index
    %45 = vector.load %arg5[%c0_21, %c0_22] : memref<2x8xf32, #tpu.memory_space<vmem>>, vector<2x8xf32>
    %46 = vector.extract_strided_slice %45 {offsets = [0, 0], sizes = [1, 8], strides = [1, 1]} : vector<2x8xf32> to vector<1x8xf32>
    %47 = vector.broadcast %46 : vector<1x8xf32> to vector<256x8xf32>
    %48 = arith.mulf %44, %47 : vector<256x8xf32>
    %49 = vector.extract_strided_slice %45 {offsets = [1, 0], sizes = [1, 8], strides = [1, 1]} : vector<2x8xf32> to vector<1x8xf32>
    %50 = vector.broadcast %49 : vector<1x8xf32> to vector<256x8xf32>
    %51 = arith.addf %48, %50 : vector<256x8xf32>
    %cst_23 = arith.constant 0.000000e+00 : f32
    %52 = vector.broadcast %cst_23 : f32 to vector<256x8xf32>
    %53 = arith.maximumf %51, %52 : vector<256x8xf32>
    %cst_24 = arith.constant 0.000000e+00 : bf16
    %54 = vector.broadcast %cst_24 : bf16 to vector<16x2x4xbf16>
    %55 = tpu.concatenate %54, %19, %54 in 1 : vector<16x2x4xbf16>, vector<16x16x4xbf16>, vector<16x2x4xbf16> -> vector<16x20x4xbf16>
    %cst_25 = arith.constant 0.000000e+00 : bf16
    %56 = vector.broadcast %cst_25 : bf16 to vector<2x20x4xbf16>
    %57 = tpu.concatenate %56, %55, %56 in 0 : vector<2x20x4xbf16>, vector<16x20x4xbf16>, vector<2x20x4xbf16> -> vector<20x20x4xbf16>
    %58 = vector.extract_strided_slice %57 {offsets = [0, 0, 0], sizes = [20, 16, 4], strides = [1, 1, 1]} : vector<20x20x4xbf16> to vector<20x16x4xbf16>
    %59 = vector.extract_strided_slice %57 {offsets = [0, 1, 0], sizes = [20, 16, 4], strides = [1, 1, 1]} : vector<20x20x4xbf16> to vector<20x16x4xbf16>
    %60 = vector.extract_strided_slice %57 {offsets = [0, 2, 0], sizes = [20, 16, 4], strides = [1, 1, 1]} : vector<20x20x4xbf16> to vector<20x16x4xbf16>
    %61 = vector.extract_strided_slice %57 {offsets = [0, 3, 0], sizes = [20, 16, 4], strides = [1, 1, 1]} : vector<20x20x4xbf16> to vector<20x16x4xbf16>
    %62 = vector.extract_strided_slice %57 {offsets = [0, 4, 0], sizes = [20, 16, 4], strides = [1, 1, 1]} : vector<20x20x4xbf16> to vector<20x16x4xbf16>
    %63 = tpu.concatenate %58, %59, %60, %61, %62 in 2 : vector<20x16x4xbf16>, vector<20x16x4xbf16>, vector<20x16x4xbf16>, vector<20x16x4xbf16>, vector<20x16x4xbf16> -> vector<20x16x20xbf16>
    %64 = vector.shape_cast %63 : vector<20x16x20xbf16> to vector<320x20xbf16>
    %cst_26 = arith.constant 0.000000e+00 : f32
    %65 = vector.broadcast %cst_26 : f32 to vector<256x8xf32>
    %66 = vector.extract_strided_slice %64 {offsets = [0, 0], sizes = [256, 20], strides = [1, 1]} : vector<320x20xbf16> to vector<256x20xbf16>
    %c0_27 = arith.constant 0 : index
    %c0_28 = arith.constant 0 : index
    %c0_29 = arith.constant 0 : index
    %67 = vector.load %arg6[%c0_27, %c0_28, %c0_29] : memref<5x20x8xbf16, #tpu.memory_space<vmem>>, vector<1x20x8xbf16>
    %68 = vector.shape_cast %67 : vector<1x20x8xbf16> to vector<20x8xbf16>
    %cst_30 = arith.constant dense<0.000000e+00> : vector<256x8xf32>
    %69 = tpu.matmul %66, %68, %cst_30 {dimension_numbers = #tpu.dot_dimension_numbers<[1], [0], [0], [1], [0, 0, 1, 1], [], []>} : vector<256x20xbf16>, vector<20x8xbf16>, vector<256x8xf32> -> vector<256x8xf32>
    %70 = arith.addf %65, %69 : vector<256x8xf32>
    %71 = vector.extract_strided_slice %64 {offsets = [16, 0], sizes = [256, 20], strides = [1, 1]} : vector<320x20xbf16> to vector<256x20xbf16>
    %c1_31 = arith.constant 1 : index
    %c0_32 = arith.constant 0 : index
    %c0_33 = arith.constant 0 : index
    %72 = vector.load %arg6[%c1_31, %c0_32, %c0_33] : memref<5x20x8xbf16, #tpu.memory_space<vmem>>, vector<1x20x8xbf16>
    %73 = vector.shape_cast %72 : vector<1x20x8xbf16> to vector<20x8xbf16>
    %cst_34 = arith.constant dense<0.000000e+00> : vector<256x8xf32>
    %74 = tpu.matmul %71, %73, %cst_34 {dimension_numbers = #tpu.dot_dimension_numbers<[1], [0], [0], [1], [0, 0, 1, 1], [], []>} : vector<256x20xbf16>, vector<20x8xbf16>, vector<256x8xf32> -> vector<256x8xf32>
    %75 = arith.addf %70, %74 : vector<256x8xf32>
    %76 = vector.extract_strided_slice %64 {offsets = [32, 0], sizes = [256, 20], strides = [1, 1]} : vector<320x20xbf16> to vector<256x20xbf16>
    %c2_35 = arith.constant 2 : index
    %c0_36 = arith.constant 0 : index
    %c0_37 = arith.constant 0 : index
    %77 = vector.load %arg6[%c2_35, %c0_36, %c0_37] : memref<5x20x8xbf16, #tpu.memory_space<vmem>>, vector<1x20x8xbf16>
    %78 = vector.shape_cast %77 : vector<1x20x8xbf16> to vector<20x8xbf16>
    %cst_38 = arith.constant dense<0.000000e+00> : vector<256x8xf32>
    %79 = tpu.matmul %76, %78, %cst_38 {dimension_numbers = #tpu.dot_dimension_numbers<[1], [0], [0], [1], [0, 0, 1, 1], [], []>} : vector<256x20xbf16>, vector<20x8xbf16>, vector<256x8xf32> -> vector<256x8xf32>
    %80 = arith.addf %75, %79 : vector<256x8xf32>
    %81 = vector.extract_strided_slice %64 {offsets = [48, 0], sizes = [256, 20], strides = [1, 1]} : vector<320x20xbf16> to vector<256x20xbf16>
    %c3 = arith.constant 3 : index
    %c0_39 = arith.constant 0 : index
    %c0_40 = arith.constant 0 : index
    %82 = vector.load %arg6[%c3, %c0_39, %c0_40] : memref<5x20x8xbf16, #tpu.memory_space<vmem>>, vector<1x20x8xbf16>
    %83 = vector.shape_cast %82 : vector<1x20x8xbf16> to vector<20x8xbf16>
    %cst_41 = arith.constant dense<0.000000e+00> : vector<256x8xf32>
    %84 = tpu.matmul %81, %83, %cst_41 {dimension_numbers = #tpu.dot_dimension_numbers<[1], [0], [0], [1], [0, 0, 1, 1], [], []>} : vector<256x20xbf16>, vector<20x8xbf16>, vector<256x8xf32> -> vector<256x8xf32>
    %85 = arith.addf %80, %84 : vector<256x8xf32>
    %86 = vector.extract_strided_slice %64 {offsets = [64, 0], sizes = [256, 20], strides = [1, 1]} : vector<320x20xbf16> to vector<256x20xbf16>
    %c4 = arith.constant 4 : index
    %c0_42 = arith.constant 0 : index
    %c0_43 = arith.constant 0 : index
    %87 = vector.load %arg6[%c4, %c0_42, %c0_43] : memref<5x20x8xbf16, #tpu.memory_space<vmem>>, vector<1x20x8xbf16>
    %88 = vector.shape_cast %87 : vector<1x20x8xbf16> to vector<20x8xbf16>
    %cst_44 = arith.constant dense<0.000000e+00> : vector<256x8xf32>
    %89 = tpu.matmul %86, %88, %cst_44 {dimension_numbers = #tpu.dot_dimension_numbers<[1], [0], [0], [1], [0, 0, 1, 1], [], []>} : vector<256x20xbf16>, vector<20x8xbf16>, vector<256x8xf32> -> vector<256x8xf32>
    %90 = arith.addf %85, %89 : vector<256x8xf32>
    %c0_45 = arith.constant 0 : index
    %c0_46 = arith.constant 0 : index
    %91 = vector.load %arg7[%c0_45, %c0_46] : memref<2x8xf32, #tpu.memory_space<vmem>>, vector<2x8xf32>
    %92 = vector.extract_strided_slice %91 {offsets = [0, 0], sizes = [1, 8], strides = [1, 1]} : vector<2x8xf32> to vector<1x8xf32>
    %93 = vector.broadcast %92 : vector<1x8xf32> to vector<256x8xf32>
    %94 = arith.mulf %90, %93 : vector<256x8xf32>
    %95 = vector.extract_strided_slice %91 {offsets = [1, 0], sizes = [1, 8], strides = [1, 1]} : vector<2x8xf32> to vector<1x8xf32>
    %96 = vector.broadcast %95 : vector<1x8xf32> to vector<256x8xf32>
    %97 = arith.addf %94, %96 : vector<256x8xf32>
    %cst_47 = arith.constant 0.000000e+00 : f32
    %98 = vector.broadcast %cst_47 : f32 to vector<256x8xf32>
    %99 = arith.maximumf %97, %98 : vector<256x8xf32>
    %cst_48 = arith.constant 0xFF80 : bf16
    %100 = vector.broadcast %cst_48 : bf16 to vector<16x1x4xbf16>
    %101 = tpu.concatenate %100, %1, %100 in 1 : vector<16x1x4xbf16>, vector<16x16x4xbf16>, vector<16x1x4xbf16> -> vector<16x18x4xbf16>
    %cst_49 = arith.constant 0xFF80 : bf16
    %102 = vector.broadcast %cst_49 : bf16 to vector<1x18x4xbf16>
    %103 = tpu.concatenate %102, %101, %102 in 0 : vector<1x18x4xbf16>, vector<16x18x4xbf16>, vector<1x18x4xbf16> -> vector<18x18x4xbf16>
    %104 = vector.extract_strided_slice %103 {offsets = [0, 0, 0], sizes = [18, 16, 4], strides = [1, 1, 1]} : vector<18x18x4xbf16> to vector<18x16x4xbf16>
    %105 = vector.extract_strided_slice %103 {offsets = [0, 1, 0], sizes = [18, 16, 4], strides = [1, 1, 1]} : vector<18x18x4xbf16> to vector<18x16x4xbf16>
    %106 = arith.maximumf %104, %105 : vector<18x16x4xbf16>
    %107 = vector.extract_strided_slice %103 {offsets = [0, 2, 0], sizes = [18, 16, 4], strides = [1, 1, 1]} : vector<18x18x4xbf16> to vector<18x16x4xbf16>
    %108 = arith.maximumf %106, %107 : vector<18x16x4xbf16>
    %109 = vector.extract_strided_slice %108 {offsets = [0, 0, 0], sizes = [16, 16, 4], strides = [1, 1, 1]} : vector<18x16x4xbf16> to vector<16x16x4xbf16>
    %110 = vector.extract_strided_slice %108 {offsets = [1, 0, 0], sizes = [16, 16, 4], strides = [1, 1, 1]} : vector<18x16x4xbf16> to vector<16x16x4xbf16>
    %111 = arith.maximumf %109, %110 : vector<16x16x4xbf16>
    %112 = vector.extract_strided_slice %108 {offsets = [2, 0, 0], sizes = [16, 16, 4], strides = [1, 1, 1]} : vector<18x16x4xbf16> to vector<16x16x4xbf16>
    %113 = arith.maximumf %111, %112 : vector<16x16x4xbf16>
    %c0_50 = arith.constant 0 : index
    %c0_51 = arith.constant 0 : index
    %114 = vector.load %arg9[%c0_50, %c0_51] : memref<2x8xf32, #tpu.memory_space<vmem>>, vector<2x8xf32>
    %115 = vector.shape_cast %113 : vector<16x16x4xbf16> to vector<256x4xbf16>
    %c0_52 = arith.constant 0 : index
    %c0_53 = arith.constant 0 : index
    %116 = vector.load %arg8[%c0_52, %c0_53] : memref<4x8xbf16, #tpu.memory_space<vmem>>, vector<4x8xbf16>
    %cst_54 = arith.constant dense<0.000000e+00> : vector<256x8xf32>
    %117 = tpu.matmul %115, %116, %cst_54 {dimension_numbers = #tpu.dot_dimension_numbers<[1], [0], [0], [1], [0, 0, 1, 1], [], []>} : vector<256x4xbf16>, vector<4x8xbf16>, vector<256x8xf32> -> vector<256x8xf32>
    %118 = vector.extract_strided_slice %114 {offsets = [0, 0], sizes = [1, 8], strides = [1, 1]} : vector<2x8xf32> to vector<1x8xf32>
    %119 = vector.broadcast %118 : vector<1x8xf32> to vector<256x8xf32>
    %120 = arith.mulf %117, %119 : vector<256x8xf32>
    %121 = vector.extract_strided_slice %114 {offsets = [1, 0], sizes = [1, 8], strides = [1, 1]} : vector<2x8xf32> to vector<1x8xf32>
    %122 = vector.broadcast %121 : vector<1x8xf32> to vector<256x8xf32>
    %123 = arith.addf %120, %122 : vector<256x8xf32>
    %cst_55 = arith.constant 0.000000e+00 : f32
    %124 = vector.broadcast %cst_55 : f32 to vector<256x8xf32>
    %125 = arith.maximumf %123, %124 : vector<256x8xf32>
    %126 = tpu.concatenate %14, %53, %99, %125 in 1 : vector<256x8xf32>, vector<256x8xf32>, vector<256x8xf32>, vector<256x8xf32> -> vector<256x32xf32>
    %127 = vector.shape_cast %126 : vector<256x32xf32> to vector<1x16x16x32xf32>
    %c0_56 = arith.constant 0 : index
    %c0_57 = arith.constant 0 : index
    %c0_58 = arith.constant 0 : index
    %c0_59 = arith.constant 0 : index
    %128 = vector.load %arg10[%c0_56, %c0_57, %c0_58, %c0_59] : memref<1x16x16x32xf32, #tpu.memory_space<vmem>>, vector<1x16x16x32xf32>
    tpu.vector_store %arg10[%c0_56, %c0_57, %c0_58, %c0_59], %127 {strides = array<i32>} : memref<1x16x16x32xf32, #tpu.memory_space<vmem>>, vector<1x16x16x32xf32>,
    return
  }
  func.func @transform_0(%arg0: i32) -> (i32, i32, i32, i32) {
    %c0_i32 = arith.constant 0 : i32
    %c0_i32_0 = arith.constant 0 : i32
    %c0_i32_1 = arith.constant 0 : i32
    %c0_i32_2 = arith.constant 0 : i32
    return %arg0, %c0_i32, %c0_i32_0, %c0_i32_1 : i32, i32, i32, i32
  }
  func.func @transform_1(%arg0: i32) -> (i32, i32) {
    %c0_i32 = arith.constant 0 : i32
    %c0_i32_0 = arith.constant 0 : i32
    %c0_i32_1 = arith.constant 0 : i32
    return %c0_i32, %c0_i32_0 : i32, i32
  }
  func.func @transform_2(%arg0: i32) -> (i32, i32) {
    %c0_i32 = arith.constant 0 : i32
    %c0_i32_0 = arith.constant 0 : i32
    %c0_i32_1 = arith.constant 0 : i32
    return %c0_i32, %c0_i32_0 : i32, i32
  }
  func.func @transform_3(%arg0: i32) -> (i32, i32, i32) {
    %c0_i32 = arith.constant 0 : i32
    %c0_i32_0 = arith.constant 0 : i32
    %c0_i32_1 = arith.constant 0 : i32
    %c0_i32_2 = arith.constant 0 : i32
    return %c0_i32, %c0_i32_0, %c0_i32_1 : i32, i32, i32
  }
  func.func @transform_4(%arg0: i32) -> (i32, i32) {
    %c0_i32 = arith.constant 0 : i32
    %c0_i32_0 = arith.constant 0 : i32
    %c0_i32_1 = arith.constant 0 : i32
    return %c0_i32, %c0_i32_0 : i32, i32
  }
  func.func @transform_5(%arg0: i32) -> (i32, i32, i32) {
    %c0_i32 = arith.constant 0 : i32
    %c0_i32_0 = arith.constant 0 : i32
    %c0_i32_1 = arith.constant 0 : i32
    %c0_i32_2 = arith.constant 0 : i32
    return %c0_i32, %c0_i32_0, %c0_i32_1 : i32, i32, i32
  }
  func.func @transform_6(%arg0: i32) -> (i32, i32) {
    %c0_i32 = arith.constant 0 : i32
    %c0_i32_0 = arith.constant 0 : i32
    %c0_i32_1 = arith.constant 0 : i32
    return %c0_i32, %c0_i32_0 : i32, i32
  }
  func.func @transform_7(%arg0: i32) -> (i32, i32) {
    %c0_i32 = arith.constant 0 : i32
    %c0_i32_0 = arith.constant 0 : i32
    %c0_i32_1 = arith.constant 0 : i32
    return %c0_i32, %c0_i32_0 : i32, i32
  }
  func.func @transform_8(%arg0: i32) -> (i32, i32) {
    %c0_i32 = arith.constant 0 : i32
    %c0_i32_0 = arith.constant 0 : i32
    %c0_i32_1 = arith.constant 0 : i32
    return %c0_i32, %c0_i32_0 : i32, i32
  }
  func.func @transform_9(%arg0: i32) -> (i32, i32, i32, i32) {
    %c0_i32 = arith.constant 0 : i32
    %c0_i32_0 = arith.constant 0 : i32
    %c0_i32_1 = arith.constant 0 : i32
    %c0_i32_2 = arith.constant 0 : i32
    return %arg0, %c0_i32, %c0_i32_0, %c0_i32_1 : i32, i32, i32, i32
  }
}

</mosaic_0001>

<llo_original>
// kernel: inception_forward.1
$region0: #{inception_forward.1}
  #allocation0 [shape = 'u32[]', space=smem, size = 0x4, offset = 0x4, fixed_abs, tag = 'smem constant byte address 0x4 - core index']
  #allocation1 [shape = 'u32[144,128]{1,0:T(1,128)}', space=vmem, size = 0x12000, scoped, tag = 'internal scratch']
  %s0 = inlined_call_operand.vmem [shape: bf16[2,16,16,4], index: 0, kind: input, shape index: {}]
  %s1 = inlined_call_operand.vmem [shape: bf16[4,16], index: 1, kind: input, shape index: {}]
  %s2 = inlined_call_operand.vmem [shape: f32[2,16], index: 2, kind: input, shape index: {}]
  %s3 = inlined_call_operand.vmem [shape: bf16[3,12,8], index: 3, kind: input, shape index: {}]
  %s4 = inlined_call_operand.vmem [shape: f32[2,8], index: 4, kind: input, shape index: {}]
  %s5 = inlined_call_operand.vmem [shape: bf16[5,20,8], index: 5, kind: input, shape index: {}]
  %s6 = inlined_call_operand.vmem [shape: f32[2,8], index: 6, kind: input, shape index: {}]
  %s7 = inlined_call_operand.vmem [shape: bf16[4,8], index: 7, kind: input, shape index: {}]
  %s8 = inlined_call_operand.vmem [shape: f32[2,8], index: 8, kind: input, shape index: {}]
  %s9 = inlined_call_operand.hbm [shape: f32[2,16,16,32], index: 9, kind: output, shape index: {}]
  %s10 = sld [smem:[#allocation0]]
  $region69: #{inception_forward.1} parent=0
    _
  %s12 = ssub.s32 1, %s10
  %s13 = scalar_select 0, %s12, %s10
  $region1: #{inception_forward.1} parent=0
    #allocation2 [shape = 'u8[262144]{0}', space=vmem, size = 0x40000, scoped, tag = 'output window, operand 0']
    #allocation3 [shape = 's32[2]{0}', space=sflag, size = 0x8, scoped, tag = 'scoped memory for inception_forward.1']
    %14 = vsyncpa [#allocation3], 0
    %s15 = scalar_lea.sflag [#allocation3], 1
    %16 = vsyncpa %s15, 0
    loop: start=0, step=1, limit=4
    $region2: #{inception_forward.1} parent=1 // loop_pre_header
      _
    $region3: #{inception_forward.1} parent=1 // loop_header
      %s18 = sphi 0, %s22
      %p19 = scmp.ge.s32.totalorder %s18, 4
      %s28 = sphi 0, %s30
      %s31 = sphi 0, %s28
      %s32 = sphi 0, %s31
      %s48 = sphi 0, %s32
      %s52 = sphi 0, %s52
      %s54 = sphi 0, %s52
      %s55 = sphi 0, %s54
      %s69 = sphi 0, %s55
      %s73 = sphi 0, %s73
      %s75 = sphi 0, %s73
      %s76 = sphi 0, %s75
      %s90 = sphi 0, %s76
      %s94 = sphi 0, %s94
      %s96 = sphi 0, %s94
      %s97 = sphi 0, %s96
      %s111 = sphi 0, %s97
      %s115 = sphi 0, %s115
      %s117 = sphi 0, %s115
      %s118 = sphi 0, %s117
      %s132 = sphi 0, %s118
      %s136 = sphi 0, %s136
      %s138 = sphi 0, %s136
      %s139 = sphi 0, %s138
      %s153 = sphi 0, %s139
      %s157 = sphi 0, %s157
      %s159 = sphi 0, %s157
      %s160 = sphi 0, %s159
      %s174 = sphi 0, %s160
      %s178 = sphi 0, %s178
      %s180 = sphi 0, %s178
      %s181 = sphi 0, %s180
      %s195 = sphi 0, %s181
      %s199 = sphi 0, %s199
      %s201 = sphi 0, %s199
      %s202 = sphi 0, %s201
      %s216 = sphi 0, %s202
      %s222 = sphi 0, %s224
      %s225 = sphi 0, %s222
      %s226 = sphi 0, %s225
      %s242 = sphi 0, %s226
    $region4: #{inception_forward.1} parent=1 // loop_header_branch
      %21 = sbr.rel (%p19) target = $region8
    $region5: #{inception_forward.1} parent=1 // loop_body
      %s23 = ssub.s32 %s18, 1
      %s24 = ssub.s32 %s18, 2
      %s25 = sadd.s32 %s18, 1
      %s26 = ssub.s32 %s18, %s25
      %p27 = scmp.eq.s32.totalorder %s26, 0
      %s29 = sadd.s32 %s28, 1
      %s30 = scalar_select %p27, %s28, %s29
      %p33 = pneg %p27
      %p34 = scmp.eq.s32.totalorder %s18, 1
      %p35 = por %p33, %p34
      %p36 = scmp.ne.s32.totalorder %s28, %s31
      %p37 = scmp.eq.s32.totalorder %s18, 0
      %p38 = por %p36, %p37
      %p39 = scmp.ne.s32.totalorder %s28, %s31
      %p40 = scmp.eq.s32.totalorder %s23, 1
      %p41 = por %p39, %p40
      %p42 = scmp.ne.s32.totalorder %s31, %s32
      %p43 = scmp.eq.s32.totalorder %s23, 0
      %p44 = por %p42, %p43
      %p45 = scmp.ne.s32.totalorder %s31, %s32
      %p46 = scmp.eq.s32.totalorder %s24, 1
      %p47 = por %p45, %p46
      %p49 = scmp.ne.s32.totalorder %s32, %s48
      %p50 = scmp.eq.s32.totalorder %s24, 0
      %p51 = por %p49, %p50
      %s53 = sadd.s32 %s52, 1
      %p56 = scmp.eq.s32.totalorder %s18, 1
      %p57 = scmp.ne.s32.totalorder %s52, %s54
      %p58 = scmp.eq.s32.totalorder %s18, 0
      %p59 = por %p57, %p58
      %p60 = scmp.ne.s32.totalorder %s52, %s54
      %p61 = scmp.eq.s32.totalorder %s23, 1
      %p62 = por %p60, %p61
      %p63 = scmp.ne.s32.totalorder %s54, %s55
      %p64 = scmp.eq.s32.totalorder %s23, 0
      %p65 = por %p63, %p64
      %p66 = scmp.ne.s32.totalorder %s54, %s55
      %p67 = scmp.eq.s32.totalorder %s24, 1
      %p68 = por %p66, %p67
      %p70 = scmp.ne.s32.totalorder %s55, %s69
      %p71 = scmp.eq.s32.totalorder %s24, 0
      %p72 = por %p70, %p71
      %s74 = sadd.s32 %s73, 1
      %p77 = scmp.eq.s32.totalorder %s18, 1
      %p78 = scmp.ne.s32.totalorder %s73, %s75
      %p79 = scmp.eq.s32.totalorder %s18, 0
      %p80 = por %p78, %p79
      %p81 = scmp.ne.s32.totalorder %s73, %s75
      %p82 = scmp.eq.s32.totalorder %s23, 1
      %p83 = por %p81, %p82
      %p84 = scmp.ne.s32.totalorder %s75, %s76
      %p85 = scmp.eq.s32.totalorder %s23, 0
      %p86 = por %p84, %p85
      %p87 = scmp.ne.s32.totalorder %s75, %s76
      %p88 = scmp.eq.s32.totalorder %s24, 1
      %p89 = por %p87, %p88
      %p91 = scmp.ne.s32.totalorder %s76, %s90
      %p92 = scmp.eq.s32.totalorder %s24, 0
      %p93 = por %p91, %p92
      %s95 = sadd.s32 %s94, 1
      %p98 = scmp.eq.s32.totalorder %s18, 1
      %p99 = scmp.ne.s32.totalorder %s94, %s96
      %p100 = scmp.eq.s32.totalorder %s18, 0
      %p101 = por %p99, %p100
      %p102 = scmp.ne.s32.totalorder %s94, %s96
      %p103 = scmp.eq.s32.totalorder %s23, 1
      %p104 = por %p102, %p103
      %p105 = scmp.ne.s32.totalorder %s96, %s97
      %p106 = scmp.eq.s32.totalorder %s23, 0
      %p107 = por %p105, %p106
      %p108 = scmp.ne.s32.totalorder %s96, %s97
      %p109 = scmp.eq.s32.totalorder %s24, 1
      %p110 = por %p108, %p109
      %p112 = scmp.ne.s32.totalorder %s97, %s111
      %p113 = scmp.eq.s32.totalorder %s24, 0
      %p114 = por %p112, %p113
      %s116 = sadd.s32 %s115, 1
      %p119 = scmp.eq.s32.totalorder %s18, 1
      %p120 = scmp.ne.s32.totalorder %s115, %s117
      %p121 = scmp.eq.s32.totalorder %s18, 0
      %p122 = por %p120, %p121
      %p123 = scmp.ne.s32.totalorder %s115, %s117
      %p124 = scmp.eq.s32.totalorder %s23, 1
      %p125 = por %p123, %p124
      %p126 = scmp.ne.s32.totalorder %s117, %s118
      %p127 = scmp.eq.s32.totalorder %s23, 0
      %p128 = por %p126, %p127
      %p129 = scmp.ne.s32.totalorder %s117, %s118
      %p130 = scmp.eq.s32.totalorder %s24, 1
      %p131 = por %p129, %p130
      %p133 = scmp.ne.s32.totalorder %s118, %s132
      %p134 = scmp.eq.s32.totalorder %s24, 0
      %p135 = por %p133, %p134
      %s137 = sadd.s32 %s136, 1
      %p140 = scmp.eq.s32.totalorder %s18, 1
      %p141 = scmp.ne.s32.totalorder %s136, %s138
      %p142 = scmp.eq.s32.totalorder %s18, 0
      %p143 = por %p141, %p142
      %p144 = scmp.ne.s32.totalorder %s136, %s138
      %p145 = scmp.eq.s32.totalorder %s23, 1
      %p146 = por %p144, %p145
      %p147 = scmp.ne.s32.totalorder %s138, %s139
      %p148 = scmp.eq.s32.totalorder %s23, 0
      %p149 = por %p147, %p148
      %p150 = scmp.ne.s32.totalorder %s138, %s139
      %p151 = scmp.eq.s32.totalorder %s24, 1
      %p152 = por %p150, %p151
      %p154 = scmp.ne.s32.totalorder %s139, %s153
      %p155 = scmp.eq.s32.totalorder %s24, 0
      %p156 = por %p154, %p155
      %s158 = sadd.s32 %s157, 1
      %p161 = scmp.eq.s32.totalorder %s18, 1
      %p162 = scmp.ne.s32.totalorder %s157, %s159
      %p163 = scmp.eq.s32.totalorder %s18, 0
      %p164 = por %p162, %p163
      %p165 = scmp.ne.s32.totalorder %s157, %s159
      %p166 = scmp.eq.s32.totalorder %s23, 1
      %p167 = por %p165, %p166
      %p168 = scmp.ne.s32.totalorder %s159, %s160
      %p169 = scmp.eq.s32.totalorder %s23, 0
      %p170 = por %p168, %p169
      %p171 = scmp.ne.s32.totalorder %s159, %s160
      %p172 = scmp.eq.s32.totalorder %s24, 1
      %p173 = por %p171, %p172
      %p175 = scmp.ne.s32.totalorder %s160, %s174
      %p176 = scmp.eq.s32.totalorder %s24, 0
      %p177 = por %p175, %p176
      %s179 = sadd.s32 %s178, 1
      %p182 = scmp.eq.s32.totalorder %s18, 1
      %p183 = scmp.ne.s32.totalorder %s178, %s180
      %p184 = scmp.eq.s32.totalorder %s18, 0
      %p185 = por %p183, %p184
      %p186 = scmp.ne.s32.totalorder %s178, %s180
      %p187 = scmp.eq.s32.totalorder %s23, 1
      %p188 = por %p186, %p187
      %p189 = scmp.ne.s32.totalorder %s180, %s181
      %p190 = scmp.eq.s32.totalorder %s23, 0
      %p191 = por %p189, %p190
      %p192 = scmp.ne.s32.totalorder %s180, %s181
      %p193 = scmp.eq.s32.totalorder %s24, 1
      %p194 = por %p192, %p193
      %p196 = scmp.ne.s32.totalorder %s181, %s195
      %p197 = scmp.eq.s32.totalorder %s24, 0
      %p198 = por %p196, %p197
      %s200 = sadd.s32 %s199, 1
      %p203 = scmp.eq.s32.totalorder %s18, 1
      %p204 = scmp.ne.s32.totalorder %s199, %s201
      %p205 = scmp.eq.s32.totalorder %s18, 0
      %p206 = por %p204, %p205
      %p207 = scmp.ne.s32.totalorder %s199, %s201
      %p208 = scmp.eq.s32.totalorder %s23, 1
      %p209 = por %p207, %p208
      %p210 = scmp.ne.s32.totalorder %s201, %s202
      %p211 = scmp.eq.s32.totalorder %s23, 0
      %p212 = por %p210, %p211
      %p213 = scmp.ne.s32.totalorder %s201, %s202
      %p214 = scmp.eq.s32.totalorder %s24, 1
      %p215 = por %p213, %p214
      %p217 = scmp.ne.s32.totalorder %s202, %s216
      %p218 = scmp.eq.s32.totalorder %s24, 0
      %p219 = por %p217, %p218
      %s220 = ssub.s32 %s18, %s25
      %p221 = scmp.eq.s32.totalorder %s220, 0
      %s223 = sadd.s32 %s222, 1
      %s224 = scalar_select %p221, %s222, %s223
      %p227 = pneg %p221
      %p228 = scmp.eq.s32.totalorder %s18, 1
      %p229 = por %p227, %p228
      %p230 = scmp.ne.s32.totalorder %s222, %s225
      %p231 = scmp.eq.s32.totalorder %s18, 0
      %p232 = por %p230, %p231
      %p233 = scmp.ne.s32.totalorder %s222, %s225
      %p234 = scmp.eq.s32.totalorder %s23, 1
      %p235 = por %p233, %p234
      %p236 = scmp.ne.s32.totalorder %s225, %s226
      %p237 = scmp.eq.s32.totalorder %s23, 0
      %p238 = por %p236, %p237
      %p239 = scmp.ne.s32.totalorder %s225, %s226
      %p240 = scmp.eq.s32.totalorder %s24, 1
      %p241 = por %p239, %p240
      %p243 = scmp.ne.s32.totalorder %s226, %s242
      %p244 = scmp.eq.s32.totalorder %s24, 0
      %p245 = por %p243, %p244
      %p246 = scmp.le.s32.totalorder 1, %s18
      %p247 = scmp.lt.s32.totalorder %s18, 3
      %p248 = pnand %p246, %p247
      %p249 = pneg %p248
      // Predicated region
      $region9: #{inception_forward.1} parent=5 // pred_check
        _
      $region10: #{inception_forward.1} parent=5 // pred_check_branch
        %251 = sbr.rel (%p248) target = $region12
      $region11: #{inception_forward.1} parent=5 // pred_region
        %s252 = ssub.s32 %s18, 1
        // Predicated region
        $region13: #{inception_forward.1} parent=11 // pred_check
          %p253 = pneg %p65
        $region14: #{inception_forward.1} parent=11 // pred_check_branch
          %255 = sbr.rel (%p253) target = $region16
        $region15: #{inception_forward.1} parent=11 // pred_region
          _
        $region16: #{inception_forward.1} parent=11 // pred_fallthru
          _
        // Predicated region
        $region17: #{inception_forward.1} parent=11 // pred_check
          %p256 = pneg %p86
        $region18: #{inception_forward.1} parent=11 // pred_check_branch
          %258 = sbr.rel (%p256) target = $region20
        $region19: #{inception_forward.1} parent=11 // pred_region
          _
        $region20: #{inception_forward.1} parent=11 // pred_fallthru
          _
        // Predicated region
        $region21: #{inception_forward.1} parent=11 // pred_check
          %p259 = pneg %p107
        $region22: #{inception_forward.1} parent=11 // pred_check_branch
          %261 = sbr.rel (%p259) target = $region24
        $region23: #{inception_forward.1} parent=11 // pred_region
          _
        $region24: #{inception_forward.1} parent=11 // pred_fallthru
          _
        // Predicated region
        $region25: #{inception_forward.1} parent=11 // pred_check
          %p262 = pneg %p128
        $region26: #{inception_forward.1} parent=11 // pred_check_branch
          %264 = sbr.rel (%p262) target = $region28
        $region27: #{inception_forward.1} parent=11 // pred_region
          _
        $region28: #{inception_forward.1} parent=11 // pred_fallthru
          _
        // Predicated region
        $region29: #{inception_forward.1} parent=11 // pred_check
          %p265 = pneg %p149
        $region30: #{inception_forward.1} parent=11 // pred_check_branch
          %267 = sbr.rel (%p265) target = $region32
        $region31: #{inception_forward.1} parent=11 // pred_region
          _
        $region32: #{inception_forward.1} parent=11 // pred_fallthru
          _
        // Predicated region
        $region33: #{inception_forward.1} parent=11 // pred_check
          %p268 = pneg %p170
        $region34: #{inception_forward.1} parent=11 // pred_check_branch
          %270 = sbr.rel (%p268) target = $region36
        $region35: #{inception_forward.1} parent=11 // pred_region
          _
        $region36: #{inception_forward.1} parent=11 // pred_fallthru
          _
        // Predicated region
        $region37: #{inception_forward.1} parent=11 // pred_check
          %p271 = pneg %p191
        $region38: #{inception_forward.1} parent=11 // pred_check_branch
          %273 = sbr.rel (%p271) target = $region40
        $region39: #{inception_forward.1} parent=11 // pred_region
          _
        $region40: #{inception_forward.1} parent=11 // pred_fallthru
          _
        // Predicated region
        $region41: #{inception_forward.1} parent=11 // pred_check
          %p274 = pneg %p212
        $region42: #{inception_forward.1} parent=11 // pred_check_branch
          %276 = sbr.rel (%p274) target = $region44
        $region43: #{inception_forward.1} parent=11 // pred_region
          _
        $region44: #{inception_forward.1} parent=11 // pred_fallthru
          _
      $region12: #{inception_forward.1} parent=5 // pred_fallthru
        _
      %p277 = scmp.lt.s32.totalorder %s18, 2
      // Predicated region
      $region45: #{inception_forward.1} parent=5 // pred_check
        %p278 = pneg %p277
      $region46: #{inception_forward.1} parent=5 // pred_check_branch
        %280 = sbr.rel (%p278) target = $region48
      $region47: #{inception_forward.1} parent=5 // pred_region
        // Predicated region
        $region49: #{inception_forward.1} parent=47 // pred_check
          %p281 = pneg %p38
        $region50: #{inception_forward.1} parent=47 // pred_check_branch
          %283 = sbr.rel (%p281) target = $region52
        $region51: #{inception_forward.1} parent=47 // pred_region
          %p284 = scmp.lt.s32.totalorder %s18, 1
          %s285 = scalar_select %p284, %s18, 1
          %s286 = smul.addr %s285, 32
          %s287 = smul.addr %s286, 4
          %s288 = scalar_lea.vmem %s0, %s287
        $region52: #{inception_forward.1} parent=47 // pred_fallthru
          _
      $region48: #{inception_forward.1} parent=5 // pred_fallthru
        _
      %p289 = scmp.le.s32.totalorder 1, %s18
      %p290 = scmp.lt.s32.totalorder %s18, 3
      %p291 = pnand %p289, %p290
      %p292 = pneg %p291
      // Predicated region
      $region53: #{inception_forward.1} parent=5 // pred_check
        _
      $region54: #{inception_forward.1} parent=5 // pred_check_branch
        %294 = sbr.rel (%p291) target = $region56
      $region55: #{inception_forward.1} parent=5 // pred_region
        %s295 = ssub.s32 %s18, 1
        %p296 = scmp.lt.s32.totalorder %s23, 1
        %s297 = scalar_select %p296, %s23, 1
        %s298 = smul.addr %s297, 32
        %s299 = smul.addr %s298, 4
        %s300 = scalar_lea.vmem %s0, %s299
        %p301 = pneg %p44
        %p302 = pneg %p41
        %p303 = pneg %p65
        %p304 = pneg %p62
        %p305 = pneg %p86
        %p306 = pneg %p83
        %p307 = pneg %p107
        %p308 = pneg %p104
        %p309 = pneg %p128
        %p310 = pneg %p125
        %p311 = pneg %p149
        %p312 = pneg %p146
        %p313 = pneg %p170
        %p314 = pneg %p167
        %p315 = pneg %p191
        %p316 = pneg %p188
        %p317 = pneg %p212
        %p318 = pneg %p209
        %p319 = pneg %p238
        %p320 = pneg %p235
        %s321 = sand.u32 %s225, 1
        %s322 = scalar_lea.sflag [#allocation3], %s321
        %s323 = sand.u32 %s225, 1
        %s324 = smul.addr %s323, 256
        %s325 = scalar_lea.vmem [#allocation2], %s324
        %p326 = scmp.lt.s32.totalorder %s23, 1
        %s327 = scalar_select %p326, %s23, 1
        %s328 = smul.addr %s327, 32
        %s329 = smul.addr %s328, 4
        %s330 = scalar_lea.vmem %s0, %s329
        %v333 = vld [vmem:[%s330] sm:$0xf]
        %v334 = vld [vmem:[%s330 + $0x4] sm:$0xf]
        %v335 = vld [vmem:[%s330 + $0x8] sm:$0xf]
        %v336 = vld [vmem:[%s330 + $0xc] sm:$0xf]
        %v337 = vld [vmem:[%s330 + $0x10] sm:$0xf]
        %v338 = vld [vmem:[%s330 + $0x14] sm:$0xf]
        %v339 = vld [vmem:[%s330 + $0x18] sm:$0xf]
        %v340 = vld [vmem:[%s330 + $0x1c] sm:$0xf]
        %v341 = vld [vmem:[%s330 + $0x20] sm:$0xf]
        %v342 = vld [vmem:[%s330 + $0x24] sm:$0xf]
        %v343 = vld [vmem:[%s330 + $0x28] sm:$0xf]
        %v344 = vld [vmem:[%s330 + $0x2c] sm:$0xf]
        %v345 = vld [vmem:[%s330 + $0x30] sm:$0xf]
        %v346 = vld [vmem:[%s330 + $0x34] sm:$0xf]
        %v347 = vld [vmem:[%s330 + $0x38] sm:$0xf]
        %v348 = vld [vmem:[%s330 + $0x3c] sm:$0xf]
        %v349 = vld [vmem:[%s330 + $0x40] sm:$0xf]
        %v350 = vld [vmem:[%s330 + $0x44] sm:$0xf]
        %v351 = vld [vmem:[%s330 + $0x48] sm:$0xf]
        %v352 = vld [vmem:[%s330 + $0x4c] sm:$0xf]
        %v353 = vld [vmem:[%s330 + $0x50] sm:$0xf]
        %v354 = vld [vmem:[%s330 + $0x54] sm:$0xf]
        %v355 = vld [vmem:[%s330 + $0x58] sm:$0xf]
        %v356 = vld [vmem:[%s330 + $0x5c] sm:$0xf]
        %v357 = vld [vmem:[%s330 + $0x60] sm:$0xf]
        %v358 = vld [vmem:[%s330 + $0x64] sm:$0xf]
        %v359 = vld [vmem:[%s330 + $0x68] sm:$0xf]
        %v360 = vld [vmem:[%s330 + $0x6c] sm:$0xf]
        %v361 = vld [vmem:[%s330 + $0x70] sm:$0xf]
        %v362 = vld [vmem:[%s330 + $0x74] sm:$0xf]
        %v363 = vld [vmem:[%s330 + $0x78] sm:$0xf]
        %v364 = vld [vmem:[%s330 + $0x7c] sm:$0xf]
        %v365 = vld [vmem:[%s2] sm:$0x3]
        %v366 = vld [vmem:[%s1] sm:$0x3]
        %v399 = vunpack.c.l.b16 %v333
        %v400 = vunpack.c.l.b16 %v334
        %v401 = vunpack.c.l.b16 %v335
        %v402 = vunpack.c.l.b16 %v336
        %v403 = vunpack.c.l.b16 %v337
        %v404 = vunpack.c.l.b16 %v338
        %v405 = vunpack.c.l.b16 %v339
        %v406 = vunpack.c.l.b16 %v340
        %v407 = vunpack.c.l.b16 %v341
        %v408 = vunpack.c.l.b16 %v342
        %v409 = vunpack.c.l.b16 %v343
        %v410 = vunpack.c.l.b16 %v344
        %v411 = vunpack.c.l.b16 %v345
        %v412 = vunpack.c.l.b16 %v346
        %v413 = vunpack.c.l.b16 %v347
        %v414 = vunpack.c.l.b16 %v348
        %v415 = vunpack.c.l.b16 %v349
        %v416 = vunpack.c.l.b16 %v350
        %v417 = vunpack.c.l.b16 %v351
        %v418 = vunpack.c.l.b16 %v352
        %v419 = vunpack.c.l.b16 %v353
        %v420 = vunpack.c.l.b16 %v354
        %v421 = vunpack.c.l.b16 %v355
        %v422 = vunpack.c.l.b16 %v356
        %v423 = vunpack.c.l.b16 %v357
        %v424 = vunpack.c.l.b16 %v358
        %v425 = vunpack.c.l.b16 %v359
        %v426 = vunpack.c.l.b16 %v360
        %v427 = vunpack.c.l.b16 %v361
        %v428 = vunpack.c.l.b16 %v362
        %v429 = vunpack.c.l.b16 %v363
        %v430 = vunpack.c.l.b16 %v364
        %v431 = vpack.c.b16 %v400, %v399
        %v432 = vpack.c.b16 %v402, %v401
        %v433 = vpack.c.b16 %v404, %v403
        %v434 = vpack.c.b16 %v406, %v405
        %v435 = vpack.c.b16 %v408, %v407
        %v436 = vpack.c.b16 %v410, %v409
        %v437 = vpack.c.b16 %v412, %v411
        %v438 = vpack.c.b16 %v414, %v413
        %v439 = vpack.c.b16 %v416, %v415
        %v440 = vpack.c.b16 %v418, %v417
        %v441 = vpack.c.b16 %v420, %v419
        %v442 = vpack.c.b16 %v422, %v421
        %v443 = vpack.c.b16 %v424, %v423
        %v444 = vpack.c.b16 %v426, %v425
        %v445 = vpack.c.b16 %v428, %v427
        %v446 = vpack.c.b16 %v430, %v429
        %vm447 = vcmask 31744
        %v449 = vsel %vm447, %v431, 0
        %v452 = vsel %vm447, %v432, 0
        %v455 = vsel %vm447, %v433, 0
        %v458 = vsel %vm447, %v434, 0
        %v461 = vsel %vm447, %v435, 0
        %v464 = vsel %vm447, %v436, 0
        %v467 = vsel %vm447, %v437, 0
        %v470 = vsel %vm447, %v438, 0
        %v473 = vsel %vm447, %v439, 0
        %v476 = vsel %vm447, %v440, 0
        %v479 = vsel %vm447, %v441, 0
        %v482 = vsel %vm447, %v442, 0
        %v485 = vsel %vm447, %v443, 0
        %v488 = vsel %vm447, %v444, 0
        %v491 = vsel %vm447, %v445, 0
        %v494 = vsel %vm447, %v446, 0
        %vm496 = vcmask 1041408
        %v498 = vsel %vm496, %v366, 0
        %500 = vmatprep.subr.bf16.mxu0 0
        %501 = vmatpush1.bf16.msra.mxu0 %v498
        %502 = vmatprep.subr.bf16.mxu0 0
        %503 = vmatpush1.bf16.msra.mxu0 0
        %504 = vmatprep.subr.bf16.mxu0 0
        %505 = vmatpush1.bf16.msra.mxu0 0
        %506 = vmatprep.subr.bf16.mxu0 0
        %507 = vmatpush1.bf16.msra.mxu0 0
        %508 = vmatprep.subr.bf16.mxu0 0
        %509 = vmatpush1.bf16.msra.mxu0 0
        %510 = vmatprep.subr.bf16.mxu0 0
        %511 = vmatpush1.bf16.msra.mxu0 0
        %512 = vmatprep.subr.bf16.mxu0 0
        %513 = vmatpush1.bf16.msra.mxu0 0
        %514 = vmatprep.subr.bf16.mxu0 0
        %515 = vmatpush1.bf16.msra.mxu0 0
        %516 = vmatprep.subr.bf16.mxu0 0
        %517 = vmatpush1.bf16.msra.mxu0 0
        %518 = vmatprep.subr.bf16.mxu0 0
        %519 = vmatpush1.bf16.msra.mxu0 0
        %520 = vmatprep.subr.bf16.mxu0 0
        %521 = vmatpush1.bf16.msra.mxu0 0
        %522 = vmatprep.subr.bf16.mxu0 0
        %523 = vmatpush1.bf16.msra.mxu0 0
        %524 = vmatprep.subr.bf16.mxu0 0
        %525 = vmatpush1.bf16.msra.mxu0 0
        %526 = vmatprep.subr.bf16.mxu0 0
        %527 = vmatpush1.bf16.msra.mxu0 0
        %528 = vmatprep.subr.bf16.mxu0 0
        %529 = vmatpush1.bf16.msra.mxu0 0
        %530 = vmatprep.subr.bf16.mxu0 0
        %531 = vmatpush1.bf16.msra.mxu0 0
        %532 = vmatprep.mubr.bf16.mxu0 0
        %533 = vmatmul.mubr.bf16.gmra.mrb[0].mxu0 %v449
        %v534 = vpop.f32.mrb[0].mxu0
        %v535 = vadd.f32 0.0, %v534
        %v536 = vpop.f32.mrb[0].mxu0
        %v537 = vpop.f32.mrb[0].mxu0
        %v538 = vadd.f32 0.0, %v537
        %v539 = vpop.f32.mrb[0].mxu0
        %540 = vmatprep.mubr.bf16.mxu0 0
        %541 = vmatmul.mubr.bf16.gmra.mrb[0].mxu0 %v452
        %v542 = vpop.f32.mrb[0].mxu0
        %v543 = vadd.f32 0.0, %v542
        %v544 = vpop.f32.mrb[0].mxu0
        %v545 = vpop.f32.mrb[0].mxu0
        %v546 = vadd.f32 0.0, %v545
        %v547 = vpop.f32.mrb[0].mxu0
        %548 = vmatprep.mubr.bf16.mxu0 0
        %549 = vmatmul.mubr.bf16.gmra.mrb[0].mxu0 %v455
        %v550 = vpop.f32.mrb[0].mxu0
        %v551 = vadd.f32 0.0, %v550
        %v552 = vpop.f32.mrb[0].mxu0
        %v553 = vpop.f32.mrb[0].mxu0
        %v554 = vadd.f32 0.0, %v553
        %v555 = vpop.f32.mrb[0].mxu0
        %556 = vmatprep.mubr.bf16.mxu0 0
        %557 = vmatmul.mubr.bf16.gmra.mrb[0].mxu0 %v458
        %v558 = vpop.f32.mrb[0].mxu0
        %v559 = vadd.f32 0.0, %v558
        %v560 = vpop.f32.mrb[0].mxu0
        %v561 = vpop.f32.mrb[0].mxu0
        %v562 = vadd.f32 0.0, %v561
        %v563 = vpop.f32.mrb[0].mxu0
        %564 = vmatprep.mubr.bf16.mxu0 0
        %565 = vmatmul.mubr.bf16.gmra.mrb[0].mxu0 %v461
        %v566 = vpop.f32.mrb[0].mxu0
        %v567 = vadd.f32 0.0, %v566
        %v568 = vpop.f32.mrb[0].mxu0
        %v569 = vpop.f32.mrb[0].mxu0
        %v570 = vadd.f32 0.0, %v569
        %v571 = vpop.f32.mrb[0].mxu0
        %572 = vmatprep.mubr.bf16.mxu0 0
        %573 = vmatmul.mubr.bf16.gmra.mrb[0].mxu0 %v464
        %v574 = vpop.f32.mrb[0].mxu0
        %v575 = vadd.f32 0.0, %v574
        %v576 = vpop.f32.mrb[0].mxu0
        %v577 = vpop.f32.mrb[0].mxu0
        %v578 = vadd.f32 0.0, %v577
        %v579 = vpop.f32.mrb[0].mxu0
        %580 = vmatprep.mubr.bf16.mxu0 0
        %581 = vmatmul.mubr.bf16.gmra.mrb[0].mxu0 %v467
        %v582 = vpop.f32.mrb[0].mxu0
        %v583 = vadd.f32 0.0, %v582
        %v584 = vpop.f32.mrb[0].mxu0
        %v585 = vpop.f32.mrb[0].mxu0
        %v586 = vadd.f32 0.0, %v585
        %v587 = vpop.f32.mrb[0].mxu0
        %588 = vmatprep.mubr.bf16.mxu0 0
        %589 = vmatmul.mubr.bf16.gmra.mrb[0].mxu0 %v470
        %v590 = vpop.f32.mrb[0].mxu0
        %v591 = vadd.f32 0.0, %v590
        %v592 = vpop.f32.mrb[0].mxu0
        %v593 = vpop.f32.mrb[0].mxu0
        %v594 = vadd.f32 0.0, %v593
        %v595 = vpop.f32.mrb[0].mxu0
        %596 = vmatprep.mubr.bf16.mxu0 0
        %597 = vmatmul.mubr.bf16.gmra.mrb[0].mxu0 %v473
        %v598 = vpop.f32.mrb[0].mxu0
        %v599 = vadd.f32 0.0, %v598
        %v600 = vpop.f32.mrb[0].mxu0
        %v601 = vpop.f32.mrb[0].mxu0
        %v602 = vadd.f32 0.0, %v601
        %v603 = vpop.f32.mrb[0].mxu0
        %604 = vmatprep.mubr.bf16.mxu0 0
        %605 = vmatmul.mubr.bf16.gmra.mrb[0].mxu0 %v476
        %v606 = vpop.f32.mrb[0].mxu0
        %v607 = vadd.f32 0.0, %v606
        %v608 = vpop.f32.mrb[0].mxu0
        %v609 = vpop.f32.mrb[0].mxu0
        %v610 = vadd.f32 0.0, %v609
        %v611 = vpop.f32.mrb[0].mxu0
        %612 = vmatprep.mubr.bf16.mxu0 0
        %613 = vmatmul.mubr.bf16.gmra.mrb[0].mxu0 %v479
        %v614 = vpop.f32.mrb[0].mxu0
        %v615 = vadd.f32 0.0, %v614
        %v616 = vpop.f32.mrb[0].mxu0
        %v617 = vpop.f32.mrb[0].mxu0
        %v618 = vadd.f32 0.0, %v617
        %v619 = vpop.f32.mrb[0].mxu0
        %620 = vmatprep.mubr.bf16.mxu0 0
        %621 = vmatmul.mubr.bf16.gmra.mrb[0].mxu0 %v482
        %v622 = vpop.f32.mrb[0].mxu0
        %v623 = vadd.f32 0.0, %v622
        %v624 = vpop.f32.mrb[0].mxu0
        %v625 = vpop.f32.mrb[0].mxu0
        %v626 = vadd.f32 0.0, %v625
        %v627 = vpop.f32.mrb[0].mxu0
        %628 = vmatprep.mubr.bf16.mxu0 0
        %629 = vmatmul.mubr.bf16.gmra.mrb[0].mxu0 %v485
        %v630 = vpop.f32.mrb[0].mxu0
        %v631 = vadd.f32 0.0, %v630
        %v632 = vpop.f32.mrb[0].mxu0
        %v633 = vpop.f32.mrb[0].mxu0
        %v634 = vadd.f32 0.0, %v633
        %v635 = vpop.f32.mrb[0].mxu0
        %636 = vmatprep.mubr.bf16.mxu0 0
        %637 = vmatmul.mubr.bf16.gmra.mrb[0].mxu0 %v488
        %v638 = vpop.f32.mrb[0].mxu0
        %v639 = vadd.f32 0.0, %v638
        %v640 = vpop.f32.mrb[0].mxu0
        %v641 = vpop.f32.mrb[0].mxu0
        %v642 = vadd.f32 0.0, %v641
        %v643 = vpop.f32.mrb[0].mxu0
        %644 = vmatprep.mubr.bf16.mxu0 0
        %645 = vmatmul.mubr.bf16.gmra.mrb[0].mxu0 %v491
        %v646 = vpop.f32.mrb[0].mxu0
        %v647 = vadd.f32 0.0, %v646
        %v648 = vpop.f32.mrb[0].mxu0
        %v649 = vpop.f32.mrb[0].mxu0
        %v650 = vadd.f32 0.0, %v649
        %v651 = vpop.f32.mrb[0].mxu0
        %652 = vmatprep.mubr.bf16.mxu0 0
        %653 = vmatmul.mubr.bf16.gmra.mrb[0].mxu0 %v494
        %v654 = vpop.f32.mrb[0].mxu0
        %v655 = vadd.f32 0.0, %v654
        %v656 = vpop.f32.mrb[0].mxu0
        %v657 = vpop.f32.mrb[0].mxu0
        %v658 = vadd.f32 0.0, %v657
        %v659 = vpop.f32.mrb[0].mxu0
        %660 = vdwg.mxu0
        %v661 = vlaneseq
        %v662 = vshrl.u32 %v661, 7
        %v663 = vsub.s32 0, %v662
        %v664 = vrot.slane %v365, %v663
        %v665 = vmul.f32 %v535, %v664
        %v666 = vmul.f32 %v538, %v664
        %v667 = vmul.f32 %v543, %v664
        %v668 = vmul.f32 %v546, %v664
        %v669 = vmul.f32 %v551, %v664
        %v670 = vmul.f32 %v554, %v664
        %v671 = vmul.f32 %v559, %v664
        %v672 = vmul.f32 %v562, %v664
        %v673 = vmul.f32 %v567, %v664
        %v674 = vmul.f32 %v570, %v664
        %v675 = vmul.f32 %v575, %v664
        %v676 = vmul.f32 %v578, %v664
        %v677 = vmul.f32 %v583, %v664
        %v678 = vmul.f32 %v586, %v664
        %v679 = vmul.f32 %v591, %v664
        %v680 = vmul.f32 %v594, %v664
        %v681 = vmul.f32 %v599, %v664
        %v682 = vmul.f32 %v602, %v664
        %v683 = vmul.f32 %v607, %v664
        %v684 = vmul.f32 %v610, %v664
        %v685 = vmul.f32 %v615, %v664
        %v686 = vmul.f32 %v618, %v664
        %v687 = vmul.f32 %v623, %v664
        %v688 = vmul.f32 %v626, %v664
        %v689 = vmul.f32 %v631, %v664
        %v690 = vmul.f32 %v634, %v664
        %v691 = vmul.f32 %v639, %v664
        %v692 = vmul.f32 %v642, %v664
        %v693 = vmul.f32 %v647, %v664
        %v694 = vmul.f32 %v650, %v664
        %v695 = vmul.f32 %v655, %v664
        %v696 = vmul.f32 %v658, %v664
        %v697 = vlaneseq
        %v698 = vshrl.u32 %v697, 7
        %v699 = vsub.s32 1, %v698
        %v700 = vrot.slane %v365, %v699
        %v701 = vadd.f32 %v665, %v700
        %v702 = vadd.f32 %v666, %v700
        %v703 = vadd.f32 %v667, %v700
        %v704 = vadd.f32 %v668, %v700
        %v705 = vadd.f32 %v669, %v700
        %v706 = vadd.f32 %v670, %v700
        %v707 = vadd.f32 %v671, %v700
        %v708 = vadd.f32 %v672, %v700
        %v709 = vadd.f32 %v673, %v700
        %v710 = vadd.f32 %v674, %v700
        %v711 = vadd.f32 %v675, %v700
        %v712 = vadd.f32 %v676, %v700
        %v713 = vadd.f32 %v677, %v700
        %v714 = vadd.f32 %v678, %v700
        %v715 = vadd.f32 %v679, %v700
        %v716 = vadd.f32 %v680, %v700
        %v717 = vadd.f32 %v681, %v700
        %v718 = vadd.f32 %v682, %v700
        %v719 = vadd.f32 %v683, %v700
        %v720 = vadd.f32 %v684, %v700
        %v721 = vadd.f32 %v685, %v700
        %v722 = vadd.f32 %v686, %v700
        %v723 = vadd.f32 %v687, %v700
        %v724 = vadd.f32 %v688, %v700
        %v725 = vadd.f32 %v689, %v700
        %v726 = vadd.f32 %v690, %v700
        %v727 = vadd.f32 %v691, %v700
        %v728 = vadd.f32 %v692, %v700
        %v729 = vadd.f32 %v693, %v700
        %v730 = vadd.f32 %v694, %v700
        %v731 = vadd.f32 %v695, %v700
        %v732 = vadd.f32 %v696, %v700
        %v733 = vmax.f32 %v701, 0.0
        %v734 = vmax.f32 %v702, 0.0
        %v735 = vmax.f32 %v703, 0.0
        %v736 = vmax.f32 %v704, 0.0
        %v737 = vmax.f32 %v705, 0.0
        %v738 = vmax.f32 %v706, 0.0
        %v739 = vmax.f32 %v707, 0.0
        %v740 = vmax.f32 %v708, 0.0
        %v741 = vmax.f32 %v709, 0.0
        %v742 = vmax.f32 %v710, 0.0
        %v743 = vmax.f32 %v711, 0.0
        %v744 = vmax.f32 %v712, 0.0
        %v745 = vmax.f32 %v713, 0.0
        %v746 = vmax.f32 %v714, 0.0
        %v747 = vmax.f32 %v715, 0.0
        %v748 = vmax.f32 %v716, 0.0
        %v749 = vmax.f32 %v717, 0.0
        %v750 = vmax.f32 %v718, 0.0
        %v751 = vmax.f32 %v719, 0.0
        %v752 = vmax.f32 %v720, 0.0
        %v753 = vmax.f32 %v721, 0.0
        %v754 = vmax.f32 %v722, 0.0
        %v755 = vmax.f32 %v723, 0.0
        %v756 = vmax.f32 %v724, 0.0
        %v757 = vmax.f32 %v725, 0.0
        %v758 = vmax.f32 %v726, 0.0
        %v759 = vmax.f32 %v727, 0.0
        %v760 = vmax.f32 %v728, 0.0
        %v761 = vmax.f32 %v729, 0.0
        %v762 = vmax.f32 %v730, 0.0
        %v763 = vmax.f32 %v731, 0.0
        %v764 = vmax.f32 %v732, 0.0
        %v765 = vpack.c.bf16 %v734, %v733
        %v766 = vpack.c.bf16 %v736, %v735
        %v767 = vpack.c.bf16 %v738, %v737
        %v768 = vpack.c.bf16 %v740, %v739
        %v769 = vpack.c.bf16 %v742, %v741
        %v770 = vpack.c.bf16 %v744, %v743
        %v771 = vpack.c.bf16 %v746, %v745
        %v772 = vpack.c.bf16 %v748, %v747
        %v773 = vpack.c.bf16 %v750, %v749
        %v774 = vpack.c.bf16 %v752, %v751
        %v775 = vpack.c.bf16 %v754, %v753
        %v776 = vpack.c.bf16 %v756, %v755
        %v777 = vpack.c.bf16 %v758, %v757
        %v778 = vpack.c.bf16 %v760, %v759
        %v779 = vpack.c.bf16 %v762, %v761
        %v780 = vpack.c.bf16 %v764, %v763
        %v782 = vshrl.u32 %v765, 16
        %v784 = vrot.slane %v782, 7
        %v785 = vshll.u32 %v765, 16
        %v787 = vor.u32 %v784, %v785
        %v789 = vshrl.u32 %v766, 16
        %v791 = vrot.slane %v789, 7
        %v792 = vshll.u32 %v766, 16
        %v794 = vor.u32 %v791, %v792
        %v796 = vshrl.u32 %v767, 16
        %v798 = vrot.slane %v796, 7
        %v799 = vshll.u32 %v767, 16
        %v801 = vor.u32 %v798, %v799
        %v803 = vshrl.u32 %v768, 16
        %v805 = vrot.slane %v803, 7
        %v806 = vshll.u32 %v768, 16
        %v808 = vor.u32 %v805, %v806
        %v810 = vshrl.u32 %v769, 16
        %v812 = vrot.slane %v810, 7
        %v813 = vshll.u32 %v769, 16
        %v815 = vor.u32 %v812, %v813
        %v817 = vshrl.u32 %v770, 16
        %v819 = vrot.slane %v817, 7
        %v820 = vshll.u32 %v770, 16
        %v822 = vor.u32 %v819, %v820
        %v824 = vshrl.u32 %v771, 16
        %v826 = vrot.slane %v824, 7
        %v827 = vshll.u32 %v771, 16
        %v829 = vor.u32 %v826, %v827
        %v831 = vshrl.u32 %v772, 16
        %v833 = vrot.slane %v831, 7
        %v834 = vshll.u32 %v772, 16
        %v836 = vor.u32 %v833, %v834
        %v838 = vshrl.u32 %v773, 16
        %v840 = vrot.slane %v838, 7
        %v841 = vshll.u32 %v773, 16
        %v843 = vor.u32 %v840, %v841
        %v845 = vshrl.u32 %v774, 16
        %v847 = vrot.slane %v845, 7
        %v848 = vshll.u32 %v774, 16
        %v850 = vor.u32 %v847, %v848
        %v852 = vshrl.u32 %v775, 16
        %v854 = vrot.slane %v852, 7
        %v855 = vshll.u32 %v775, 16
        %v857 = vor.u32 %v854, %v855
        %v859 = vshrl.u32 %v776, 16
        %v861 = vrot.slane %v859, 7
        %v862 = vshll.u32 %v776, 16
        %v864 = vor.u32 %v861, %v862
        %v866 = vshrl.u32 %v777, 16
        %v868 = vrot.slane %v866, 7
        %v869 = vshll.u32 %v777, 16
        %v871 = vor.u32 %v868, %v869
        %v873 = vshrl.u32 %v778, 16
        %v875 = vrot.slane %v873, 7
        %v876 = vshll.u32 %v778, 16
        %v878 = vor.u32 %v875, %v876
        %v880 = vshrl.u32 %v779, 16
        %v882 = vrot.slane %v880, 7
        %v883 = vshll.u32 %v779, 16
        %v885 = vor.u32 %v882, %v883
        %v887 = vshrl.u32 %v780, 16
        %v889 = vrot.slane %v887, 7
        %v890 = vshll.u32 %v780, 16
        %v892 = vor.u32 %v889, %v890
        %893 = vrot.lane.b32.xlu0 %v787, 120
        %v894 = vpop.permute.xlu0 %893
        %895 = vrot.lane.b32.xlu0 %v784, 120
        %v896 = vpop.permute.xlu0 %895
        %897 = vrot.lane.b32.xlu0 %v794, 120
        %v898 = vpop.permute.xlu0 %897
        %899 = vrot.lane.b32.xlu0 %v791, 120
        %v900 = vpop.permute.xlu0 %899
        %901 = vrot.lane.b32.xlu0 %v801, 120
        %v902 = vpop.permute.xlu0 %901
        %903 = vrot.lane.b32.xlu0 %v798, 120
        %v904 = vpop.permute.xlu0 %903
        %905 = vrot.lane.b32.xlu0 %v808, 120
        %v906 = vpop.permute.xlu0 %905
        %907 = vrot.lane.b32.xlu0 %v805, 120
        %v908 = vpop.permute.xlu0 %907
        %909 = vrot.lane.b32.xlu0 %v815, 120
        %v910 = vpop.permute.xlu0 %909
        %911 = vrot.lane.b32.xlu0 %v812, 120
        %v912 = vpop.permute.xlu0 %911
        %913 = vrot.lane.b32.xlu0 %v822, 120
        %v914 = vpop.permute.xlu0 %913
        %915 = vrot.lane.b32.xlu0 %v819, 120
        %v916 = vpop.permute.xlu0 %915
        %917 = vrot.lane.b32.xlu0 %v829, 120
        %v918 = vpop.permute.xlu0 %917
        %919 = vrot.lane.b32.xlu0 %v826, 120
        %v920 = vpop.permute.xlu0 %919
        %921 = vrot.lane.b32.xlu0 %v836, 120
        %v922 = vpop.permute.xlu0 %921
        %923 = vrot.lane.b32.xlu0 %v833, 120
        %v924 = vpop.permute.xlu0 %923
        %925 = vrot.lane.b32.xlu0 %v843, 120
        %v926 = vpop.permute.xlu0 %925
        %927 = vrot.lane.b32.xlu0 %v840, 120
        %v928 = vpop.permute.xlu0 %927
        %929 = vrot.lane.b32.xlu0 %v850, 120
        %v930 = vpop.permute.xlu0 %929
        %931 = vrot.lane.b32.xlu0 %v847, 120
        %v932 = vpop.permute.xlu0 %931
        %933 = vrot.lane.b32.xlu0 %v857, 120
        %v934 = vpop.permute.xlu0 %933
        %935 = vrot.lane.b32.xlu0 %v854, 120
        %v936 = vpop.permute.xlu0 %935
        %937 = vrot.lane.b32.xlu0 %v864, 120
        %v938 = vpop.permute.xlu0 %937
        %939 = vrot.lane.b32.xlu0 %v861, 120
        %v940 = vpop.permute.xlu0 %939
        %941 = vrot.lane.b32.xlu0 %v871, 120
        %v942 = vpop.permute.xlu0 %941
        %943 = vrot.lane.b32.xlu0 %v868, 120
        %v944 = vpop.permute.xlu0 %943
        %945 = vrot.lane.b32.xlu0 %v878, 120
        %v946 = vpop.permute.xlu0 %945
        %947 = vrot.lane.b32.xlu0 %v875, 120
        %v948 = vpop.permute.xlu0 %947
        %949 = vrot.lane.b32.xlu0 %v885, 120
        %v950 = vpop.permute.xlu0 %949
        %951 = vrot.lane.b32.xlu0 %v882, 120
        %v952 = vpop.permute.xlu0 %951
        %953 = vrot.lane.b32.xlu0 %v892, 120
        %v954 = vpop.permute.xlu0 %953
        %955 = vrot.lane.b32.xlu0 %v889, 120
        %v956 = vpop.permute.xlu0 %955
        %vm989 = vcmask 1040384
        %vm990 = vsmask.f32 256
        %vm991 = vmand %vm989, %vm990
        %v992 = vsel %vm991, 0, %v894
        %v993 = vsel %vm991, 0, %v898
        %v994 = vsel %vm991, 0, %v902
        %v995 = vsel %vm991, 0, %v906
        %v996 = vsel %vm991, 0, %v910
        %v997 = vsel %vm991, 0, %v914
        %v998 = vsel %vm991, 0, %v918
        %v999 = vsel %vm991, 0, %v922
        %v1000 = vsel %vm991, 0, %v926
        %v1001 = vsel %vm991, 0, %v930
        %v1002 = vsel %vm991, 0, %v934
        %v1003 = vsel %vm991, 0, %v938
        %v1004 = vsel %vm991, 0, %v942
        %v1005 = vsel %vm991, 0, %v946
        %v1006 = vsel %vm991, 0, %v950
        %v1007 = vsel %vm991, 0, %v954
        %v1008 = vsel %vm991, %v896, 0
        %v1009 = vsel %vm991, %v900, 0
        %v1010 = vsel %vm991, %v904, 0
        %v1011 = vsel %vm991, %v908, 0
        %v1012 = vsel %vm991, %v912, 0
        %v1013 = vsel %vm991, %v916, 0
        %v1014 = vsel %vm991, %v920, 0
        %v1015 = vsel %vm991, %v924, 0
        %v1016 = vsel %vm991, %v928, 0
        %v1017 = vsel %vm991, %v932, 0
        %v1018 = vsel %vm991, %v936, 0
        %v1019 = vsel %vm991, %v940, 0
        %v1020 = vsel %vm991, %v944, 0
        %v1021 = vsel %vm991, %v948, 0
        %v1022 = vsel %vm991, %v952, 0
        %v1023 = vsel %vm991, %v956, 0
        %vm1024 = vsmask.f32 7424
        %v1026 = vshrl.u32 0, 16
        %v1028 = vshll.u32 0, 16
        %v1030 = vrot.slane %v1028, 1
        %v1031 = vor.u32 %v1026, %v1030
        %v1032 = vsel %vm1024, %v1031, %v1030
        %v1034 = vshrl.u32 %v992, 16
        %v1036 = vshll.u32 %v992, 16
        %v1038 = vrot.slane %v1036, 1
        %v1039 = vor.u32 %v1034, %v1038
        %v1041 = vshll.u32 %v1008, 16
        %v1043 = vrot.slane %v1041, 1
        %v1044 = vsel %vm1024, %v1039, %v1043
        %v1046 = vshrl.u32 %v993, 16
        %v1048 = vshll.u32 %v993, 16
        %v1050 = vrot.slane %v1048, 1
        %v1051 = vor.u32 %v1046, %v1050
        %v1053 = vshll.u32 %v1009, 16
        %v1055 = vrot.slane %v1053, 1
        %v1056 = vsel %vm1024, %v1051, %v1055
        %v1058 = vshrl.u32 %v994, 16
        %v1060 = vshll.u32 %v994, 16
        %v1062 = vrot.slane %v1060, 1
        %v1063 = vor.u32 %v1058, %v1062
        %v1065 = vshll.u32 %v1010, 16
        %v1067 = vrot.slane %v1065, 1
        %v1068 = vsel %vm1024, %v1063, %v1067
        %v1070 = vshrl.u32 %v995, 16
        %v1072 = vshll.u32 %v995, 16
        %v1074 = vrot.slane %v1072, 1
        %v1075 = vor.u32 %v1070, %v1074
        %v1077 = vshll.u32 %v1011, 16
        %v1079 = vrot.slane %v1077, 1
        %v1080 = vsel %vm1024, %v1075, %v1079
        %v1082 = vshrl.u32 %v996, 16
        %v1084 = vshll.u32 %v996, 16
        %v1086 = vrot.slane %v1084, 1
        %v1087 = vor.u32 %v1082, %v1086
        %v1089 = vshll.u32 %v1012, 16
        %v1091 = vrot.slane %v1089, 1
        %v1092 = vsel %vm1024, %v1087, %v1091
        %v1094 = vshrl.u32 %v997, 16
        %v1096 = vshll.u32 %v997, 16
        %v1098 = vrot.slane %v1096, 1
        %v1099 = vor.u32 %v1094, %v1098
        %v1101 = vshll.u32 %v1013, 16
        %v1103 = vrot.slane %v1101, 1
        %v1104 = vsel %vm1024, %v1099, %v1103
        %v1106 = vshrl.u32 %v998, 16
        %v1108 = vshll.u32 %v998, 16
        %v1110 = vrot.slane %v1108, 1
        %v1111 = vor.u32 %v1106, %v1110
        %v1113 = vshll.u32 %v1014, 16
        %v1115 = vrot.slane %v1113, 1
        %v1116 = vsel %vm1024, %v1111, %v1115
        %v1118 = vshrl.u32 %v999, 16
        %v1120 = vshll.u32 %v999, 16
        %v1122 = vrot.slane %v1120, 1
        %v1123 = vor.u32 %v1118, %v1122
        %v1125 = vshll.u32 %v1015, 16
        %v1127 = vrot.slane %v1125, 1
        %v1128 = vsel %vm1024, %v1123, %v1127
        %v1130 = vshrl.u32 %v1000, 16
        %v1132 = vshll.u32 %v1000, 16
        %v1134 = vrot.slane %v1132, 1
        %v1135 = vor.u32 %v1130, %v1134
        %v1137 = vshll.u32 %v1016, 16
        %v1139 = vrot.slane %v1137, 1
        %v1140 = vsel %vm1024, %v1135, %v1139
        %v1142 = vshrl.u32 %v1001, 16
        %v1144 = vshll.u32 %v1001, 16
        %v1146 = vrot.slane %v1144, 1
        %v1147 = vor.u32 %v1142, %v1146
        %v1149 = vshll.u32 %v1017, 16
        %v1151 = vrot.slane %v1149, 1
        %v1152 = vsel %vm1024, %v1147, %v1151
        %v1154 = vshrl.u32 %v1002, 16
        %v1156 = vshll.u32 %v1002, 16
        %v1158 = vrot.slane %v1156, 1
        %v1159 = vor.u32 %v1154, %v1158
        %v1161 = vshll.u32 %v1018, 16
        %v1163 = vrot.slane %v1161, 1
        %v1164 = vsel %vm1024, %v1159, %v1163
        %v1166 = vshrl.u32 %v1003, 16
        %v1168 = vshll.u32 %v1003, 16
        %v1170 = vrot.slane %v1168, 1
        %v1171 = vor.u32 %v1166, %v1170
        %v1173 = vshll.u32 %v1019, 16
        %v1175 = vrot.slane %v1173, 1
        %v1176 = vsel %vm1024, %v1171, %v1175
        %v1178 = vshrl.u32 %v1004, 16
        %v1180 = vshll.u32 %v1004, 16
        %v1182 = vrot.slane %v1180, 1
        %v1183 = vor.u32 %v1178, %v1182
        %v1185 = vshll.u32 %v1020, 16
        %v1187 = vrot.slane %v1185, 1
        %v1188 = vsel %vm1024, %v1183, %v1187
        %v1190 = vshrl.u32 %v1005, 16
        %v1192 = vshll.u32 %v1005, 16
        %v1194 = vrot.slane %v1192, 1
        %v1195 = vor.u32 %v1190, %v1194
        %v1197 = vshll.u32 %v1021, 16
        %v1199 = vrot.slane %v1197, 1
        %v1200 = vsel %vm1024, %v1195, %v1199
        %v1202 = vshrl.u32 %v1006, 16
        %v1204 = vshll.u32 %v1006, 16
        %v1206 = vrot.slane %v1204, 1
        %v1207 = vor.u32 %v1202, %v1206
        %v1209 = vshll.u32 %v1022, 16
        %v1211 = vrot.slane %v1209, 1
        %v1212 = vsel %vm1024, %v1207, %v1211
        %v1214 = vshrl.u32 %v1007, 16
        %v1216 = vshll.u32 %v1007, 16
        %v1218 = vrot.slane %v1216, 1
        %v1219 = vor.u32 %v1214, %v1218
        %v1221 = vshll.u32 %v1023, 16
        %v1223 = vrot.slane %v1221, 1
        %v1224 = vsel %vm1024, %v1219, %v1223
        %1225 = vrot.lane.b32.xlu0 %v1032, 4
        %v1226 = vpop.permute.xlu0 %1225
        %1227 = vrot.lane.b32.xlu0 %v1044, 4
        %v1228 = vpop.permute.xlu0 %1227
        %1229 = vrot.lane.b32.xlu0 %v1056, 4
        %v1230 = vpop.permute.xlu0 %1229
        %1231 = vrot.lane.b32.xlu0 %v1068, 4
        %v1232 = vpop.permute.xlu0 %1231
        %1233 = vrot.lane.b32.xlu0 %v1080, 4
        %v1234 = vpop.permute.xlu0 %1233
        %1235 = vrot.lane.b32.xlu0 %v1092, 4
        %v1236 = vpop.permute.xlu0 %1235
        %1237 = vrot.lane.b32.xlu0 %v1104, 4
        %v1238 = vpop.permute.xlu0 %1237
        %1239 = vrot.lane.b32.xlu0 %v1116, 4
        %v1240 = vpop.permute.xlu0 %1239
        %1241 = vrot.lane.b32.xlu0 %v1128, 4
        %v1242 = vpop.permute.xlu0 %1241
        %1243 = vrot.lane.b32.xlu0 %v1140, 4
        %v1244 = vpop.permute.xlu0 %1243
        %1245 = vrot.lane.b32.xlu0 %v1152, 4
        %v1246 = vpop.permute.xlu0 %1245
        %1247 = vrot.lane.b32.xlu0 %v1164, 4
        %v1248 = vpop.permute.xlu0 %1247
        %1249 = vrot.lane.b32.xlu0 %v1176, 4
        %v1250 = vpop.permute.xlu0 %1249
        %1251 = vrot.lane.b32.xlu0 %v1188, 4
        %v1252 = vpop.permute.xlu0 %1251
        %1253 = vrot.lane.b32.xlu0 %v1200, 4
        %v1254 = vpop.permute.xlu0 %1253
        %1255 = vrot.lane.b32.xlu0 %v1212, 4
        %v1256 = vpop.permute.xlu0 %1255
        %1257 = vrot.lane.b32.xlu0 %v1224, 4
        %v1258 = vpop.permute.xlu0 %1257
        %vm1292 = vcmask 1046528
        %v1293 = vrot.slane 0, 1
        %v1294 = vsel %vm1292, %v1293, %v1293
        %v1295 = vrot.slane %v992, 1
        %v1296 = vrot.slane %v1008, 1
        %v1297 = vsel %vm1292, %v1295, %v1296
        %v1298 = vrot.slane %v993, 1
        %v1299 = vrot.slane %v1009, 1
        %v1300 = vsel %vm1292, %v1298, %v1299
        %v1301 = vrot.slane %v994, 1
        %v1302 = vrot.slane %v1010, 1
        %v1303 = vsel %vm1292, %v1301, %v1302
        %v1304 = vrot.slane %v995, 1
        %v1305 = vrot.slane %v1011, 1
        %v1306 = vsel %vm1292, %v1304, %v1305
        %v1307 = vrot.slane %v996, 1
        %v1308 = vrot.slane %v1012, 1
        %v1309 = vsel %vm1292, %v1307, %v1308
        %v1310 = vrot.slane %v997, 1
        %v1311 = vrot.slane %v1013, 1
        %v1312 = vsel %vm1292, %v1310, %v1311
        %v1313 = vrot.slane %v998, 1
        %v1314 = vrot.slane %v1014, 1
        %v1315 = vsel %vm1292, %v1313, %v1314
        %v1316 = vrot.slane %v999, 1
        %v1317 = vrot.slane %v1015, 1
        %v1318 = vsel %vm1292, %v1316, %v1317
        %v1319 = vrot.slane %v1000, 1
        %v1320 = vrot.slane %v1016, 1
        %v1321 = vsel %vm1292, %v1319, %v1320
        %v1322 = vrot.slane %v1001, 1
        %v1323 = vrot.slane %v1017, 1
        %v1324 = vsel %vm1292, %v1322, %v1323
        %v1325 = vrot.slane %v1002, 1
        %v1326 = vrot.slane %v1018, 1
        %v1327 = vsel %vm1292, %v1325, %v1326
        %v1328 = vrot.slane %v1003, 1
        %v1329 = vrot.slane %v1019, 1
        %v1330 = vsel %vm1292, %v1328, %v1329
        %v1331 = vrot.slane %v1004, 1
        %v1332 = vrot.slane %v1020, 1
        %v1333 = vsel %vm1292, %v1331, %v1332
        %v1334 = vrot.slane %v1005, 1
        %v1335 = vrot.slane %v1021, 1
        %v1336 = vsel %vm1292, %v1334, %v1335
        %v1337 = vrot.slane %v1006, 1
        %v1338 = vrot.slane %v1022, 1
        %v1339 = vsel %vm1292, %v1337, %v1338
        %v1340 = vrot.slane %v1007, 1
        %v1341 = vrot.slane %v1023, 1
        %v1342 = vsel %vm1292, %v1340, %v1341
        %1343 = vrot.lane.b32.xlu0 %v1294, 8
        %v1344 = vpop.permute.xlu0 %1343
        %1345 = vrot.lane.b32.xlu0 %v1297, 8
        %v1346 = vpop.permute.xlu0 %1345
        %1347 = vrot.lane.b32.xlu0 %v1300, 8
        %v1348 = vpop.permute.xlu0 %1347
        %1349 = vrot.lane.b32.xlu0 %v1303, 8
        %v1350 = vpop.permute.xlu0 %1349
        %1351 = vrot.lane.b32.xlu0 %v1306, 8
        %v1352 = vpop.permute.xlu0 %1351
        %1353 = vrot.lane.b32.xlu0 %v1309, 8
        %v1354 = vpop.permute.xlu0 %1353
        %1355 = vrot.lane.b32.xlu0 %v1312, 8
        %v1356 = vpop.permute.xlu0 %1355
        %1357 = vrot.lane.b32.xlu0 %v1315, 8
        %v1358 = vpop.permute.xlu0 %1357
        %1359 = vrot.lane.b32.xlu0 %v1318, 8
        %v1360 = vpop.permute.xlu0 %1359
        %1361 = vrot.lane.b32.xlu0 %v1321, 8
        %v1362 = vpop.permute.xlu0 %1361
        %1363 = vrot.lane.b32.xlu0 %v1324, 8
        %v1364 = vpop.permute.xlu0 %1363
        %1365 = vrot.lane.b32.xlu0 %v1327, 8
        %v1366 = vpop.permute.xlu0 %1365
        %1367 = vrot.lane.b32.xlu0 %v1330, 8
        %v1368 = vpop.permute.xlu0 %1367
        %1369 = vrot.lane.b32.xlu0 %v1333, 8
        %v1370 = vpop.permute.xlu0 %1369
        %1371 = vrot.lane.b32.xlu0 %v1336, 8
        %v1372 = vpop.permute.xlu0 %1371
        %1373 = vrot.lane.b32.xlu0 %v1339, 8
        %v1374 = vpop.permute.xlu0 %1373
        %1375 = vrot.lane.b32.xlu0 %v1342, 8
        %v1376 = vpop.permute.xlu0 %1375
        %v1378 = vsel %vm447, 0, %v1226
        %v1380 = vsel %vm447, %v992, %v1228
        %v1382 = vsel %vm447, %v993, %v1230
        %v1384 = vsel %vm447, %v994, %v1232
        %v1386 = vsel %vm447, %v995, %v1234
        %v1388 = vsel %vm447, %v996, %v1236
        %v1390 = vsel %vm447, %v997, %v1238
        %v1392 = vsel %vm447, %v998, %v1240
        %v1394 = vsel %vm447, %v999, %v1242
        %v1396 = vsel %vm447, %v1000, %v1244
        %v1398 = vsel %vm447, %v1001, %v1246
        %v1400 = vsel %vm447, %v1002, %v1248
        %v1402 = vsel %vm447, %v1003, %v1250
        %v1404 = vsel %vm447, %v1004, %v1252
        %v1406 = vsel %vm447, %v1005, %v1254
        %v1408 = vsel %vm447, %v1006, %v1256
        %v1410 = vsel %vm447, %v1007, %v1258
        %vm1411 = vcmask 64512
        %v1413 = vsel %vm1411, %v1378, %v1344
        %v1415 = vsel %vm1411, %v1380, %v1346
        %v1417 = vsel %vm1411, %v1382, %v1348
        %v1419 = vsel %vm1411, %v1384, %v1350
        %v1421 = vsel %vm1411, %v1386, %v1352
        %v1423 = vsel %vm1411, %v1388, %v1354
        %v1425 = vsel %vm1411, %v1390, %v1356
        %v1427 = vsel %vm1411, %v1392, %v1358
        %v1429 = vsel %vm1411, %v1394, %v1360
        %v1431 = vsel %vm1411, %v1396, %v1362
        %v1433 = vsel %vm1411, %v1398, %v1364
        %v1435 = vsel %vm1411, %v1400, %v1366
        %v1437 = vsel %vm1411, %v1402, %v1368
        %v1439 = vsel %vm1411, %v1404, %v1370
        %v1441 = vsel %vm1411, %v1406, %v1372
        %v1443 = vsel %vm1411, %v1408, %v1374
        %v1445 = vsel %vm1411, %v1410, %v1376
        %v1446 = vld [vmem:[%s3] sm:$0xf]
        %v1447 = vld [vmem:[%s3 + $0x4] sm:$0x3]
        %s1448 = scalar_lea.vmem %s3, 8
        %v1449 = vld [vmem:[%s1448] sm:$0xf]
        %v1450 = vld [vmem:[%s1448 + $0x4] sm:$0x3]
        %v1453 = vunpack.c.l.b16 %v1449
        %v1454 = vunpack.c.l.b16 %v1450
        %v1455 = vpack.c.b16 %v1454, %v1453
        %vm1456 = vcmask 97280
        %v1457 = vsel %vm1456, %v1415, 0
        %v1459 = vsel %vm1456, %v1417, 0
        %v1461 = vsel %vm1456, %v1419, 0
        %v1463 = vsel %vm1456, %v1421, 0
        %v1465 = vsel %vm1456, %v1423, 0
        %v1467 = vsel %vm1456, %v1425, 0
        %v1469 = vsel %vm1456, %v1427, 0
        %v1471 = vsel %vm1456, %v1429, 0
        %v1473 = vsel %vm1456, %v1431, 0
        %v1475 = vsel %vm1456, %v1433, 0
        %v1477 = vsel %vm1456, %v1435, 0
        %v1479 = vsel %vm1456, %v1437, 0
        %v1481 = vsel %vm1456, %v1439, 0
        %v1483 = vsel %vm1456, %v1441, 0
        %v1485 = vsel %vm1456, %v1443, 0
        %v1487 = vsel %vm1456, %v1445, 0
        %vm1489 = vcmask 1045504
        %v1491 = vsel %vm1489, %v1455, 0
        %1493 = vmatprep.subr.bf16.mxu0 0
        %1494 = vmatpush1.bf16.msra.mxu0 %v1491
        %1495 = vmatprep.subr.bf16.mxu0 0
        %1496 = vmatpush1.bf16.msra.mxu0 0
        %1497 = vmatprep.subr.bf16.mxu0 0
        %1498 = vmatpush1.bf16.msra.mxu0 0
        %1499 = vmatprep.subr.bf16.mxu0 0
        %1500 = vmatpush1.bf16.msra.mxu0 0
        %1501 = vmatprep.subr.bf16.mxu0 0
        %1502 = vmatpush1.bf16.msra.mxu0 0
        %1503 = vmatprep.subr.bf16.mxu0 0
        %1504 = vmatpush1.bf16.msra.mxu0 0
        %1505 = vmatprep.subr.bf16.mxu0 0
        %1506 = vmatpush1.bf16.msra.mxu0 0
        %1507 = vmatprep.subr.bf16.mxu0 0
        %1508 = vmatpush1.bf16.msra.mxu0 0
        %1509 = vmatprep.subr.bf16.mxu0 0
        %1510 = vmatpush1.bf16.msra.mxu0 0
        %1511 = vmatprep.subr.bf16.mxu0 0
        %1512 = vmatpush1.bf16.msra.mxu0 0
        %1513 = vmatprep.subr.bf16.mxu0 0
        %1514 = vmatpush1.bf16.msra.mxu0 0
        %1515 = vmatprep.subr.bf16.mxu0 0
        %1516 = vmatpush1.bf16.msra.mxu0 0
        %1517 = vmatprep.subr.bf16.mxu0 0
        %1518 = vmatpush1.bf16.msra.mxu0 0
        %1519 = vmatprep.subr.bf16.mxu0 0
        %1520 = vmatpush1.bf16.msra.mxu0 0
        %1521 = vmatprep.subr.bf16.mxu0 0
        %1522 = vmatpush1.bf16.msra.mxu0 0
        %1523 = vmatprep.subr.bf16.mxu0 0
        %1524 = vmatpush1.bf16.msra.mxu0 0
        %1525 = vmatprep.mubr.bf16.mxu0 0
        %1526 = vmatmul.mubr.bf16.gmra.mrb[0].mxu0 %v1457
        %v1527 = vpop.f32.mrb[0].mxu0
        %v1528 = vadd.f32 0.0, %v1527
        %v1529 = vpop.f32.mrb[0].mxu0
        %v1530 = vpop.f32.mrb[0].mxu0
        %v1531 = vadd.f32 0.0, %v1530
        %v1532 = vpop.f32.mrb[0].mxu0
        %1533 = vmatprep.mubr.bf16.mxu0 0
        %1534 = vmatmul.mubr.bf16.gmra.mrb[0].mxu0 %v1459
        %v1535 = vpop.f32.mrb[0].mxu0
        %v1536 = vadd.f32 0.0, %v1535
        %v1537 = vpop.f32.mrb[0].mxu0
        %v1538 = vpop.f32.mrb[0].mxu0
        %v1539 = vadd.f32 0.0, %v1538
        %v1540 = vpop.f32.mrb[0].mxu0
        %1541 = vmatprep.mubr.bf16.mxu0 0
        %1542 = vmatmul.mubr.bf16.gmra.mrb[0].mxu0 %v1461
        %v1543 = vpop.f32.mrb[0].mxu0
        %v1544 = vadd.f32 0.0, %v1543
        %v1545 = vpop.f32.mrb[0].mxu0
        %v1546 = vpop.f32.mrb[0].mxu0
        %v1547 = vadd.f32 0.0, %v1546
        %v1548 = vpop.f32.mrb[0].mxu0
        %1549 = vmatprep.mubr.bf16.mxu0 0
        %1550 = vmatmul.mubr.bf16.gmra.mrb[0].mxu0 %v1463
        %v1551 = vpop.f32.mrb[0].mxu0
        %v1552 = vadd.f32 0.0, %v1551
        %v1553 = vpop.f32.mrb[0].mxu0
        %v1554 = vpop.f32.mrb[0].mxu0
        %v1555 = vadd.f32 0.0, %v1554
        %v1556 = vpop.f32.mrb[0].mxu0
        %1557 = vmatprep.mubr.bf16.mxu0 0
        %1558 = vmatmul.mubr.bf16.gmra.mrb[0].mxu0 %v1465
        %v1559 = vpop.f32.mrb[0].mxu0
        %v1560 = vadd.f32 0.0, %v1559
        %v1561 = vpop.f32.mrb[0].mxu0
        %v1562 = vpop.f32.mrb[0].mxu0
        %v1563 = vadd.f32 0.0, %v1562
        %v1564 = vpop.f32.mrb[0].mxu0
        %1565 = vmatprep.mubr.bf16.mxu0 0
        %1566 = vmatmul.mubr.bf16.gmra.mrb[0].mxu0 %v1467
        %v1567 = vpop.f32.mrb[0].mxu0
        %v1568 = vadd.f32 0.0, %v1567
        %v1569 = vpop.f32.mrb[0].mxu0
        %v1570 = vpop.f32.mrb[0].mxu0
        %v1571 = vadd.f32 0.0, %v1570
        %v1572 = vpop.f32.mrb[0].mxu0
        %1573 = vmatprep.mubr.bf16.mxu0 0
        %1574 = vmatmul.mubr.bf16.gmra.mrb[0].mxu0 %v1469
        %v1575 = vpop.f32.mrb[0].mxu0
        %v1576 = vadd.f32 0.0, %v1575
        %v1577 = vpop.f32.mrb[0].mxu0
        %v1578 = vpop.f32.mrb[0].mxu0
        %v1579 = vadd.f32 0.0, %v1578
        %v1580 = vpop.f32.mrb[0].mxu0
        %1581 = vmatprep.mubr.bf16.mxu0 0
        %1582 = vmatmul.mubr.bf16.gmra.mrb[0].mxu0 %v1471
        %v1583 = vpop.f32.mrb[0].mxu0
        %v1584 = vadd.f32 0.0, %v1583
        %v1585 = vpop.f32.mrb[0].mxu0
        %v1586 = vpop.f32.mrb[0].mxu0
        %v1587 = vadd.f32 0.0, %v1586
        %v1588 = vpop.f32.mrb[0].mxu0
        %1589 = vmatprep.mubr.bf16.mxu0 0
        %1590 = vmatmul.mubr.bf16.gmra.mrb[0].mxu0 %v1473
        %v1591 = vpop.f32.mrb[0].mxu0
        %v1592 = vadd.f32 0.0, %v1591
        %v1593 = vpop.f32.mrb[0].mxu0
        %v1594 = vpop.f32.mrb[0].mxu0
        %v1595 = vadd.f32 0.0, %v1594
        %v1596 = vpop.f32.mrb[0].mxu0
        %1597 = vmatprep.mubr.bf16.mxu0 0
        %1598 = vmatmul.mubr.bf16.gmra.mrb[0].mxu0 %v1475
        %v1599 = vpop.f32.mrb[0].mxu0
        %v1600 = vadd.f32 0.0, %v1599
        %v1601 = vpop.f32.mrb[0].mxu0
        %v1602 = vpop.f32.mrb[0].mxu0
        %v1603 = vadd.f32 0.0, %v1602
        %v1604 = vpop.f32.mrb[0].mxu0
        %1605 = vmatprep.mubr.bf16.mxu0 0
        %1606 = vmatmul.mubr.bf16.gmra.mrb[0].mxu0 %v1477
        %v1607 = vpop.f32.mrb[0].mxu0
        %v1608 = vadd.f32 0.0, %v1607
        %v1609 = vpop.f32.mrb[0].mxu0
        %v1610 = vpop.f32.mrb[0].mxu0
        %v1611 = vadd.f32 0.0, %v1610
        %v1612 = vpop.f32.mrb[0].mxu0
        %1613 = vmatprep.mubr.bf16.mxu0 0
        %1614 = vmatmul.mubr.bf16.gmra.mrb[0].mxu0 %v1479
        %v1615 = vpop.f32.mrb[0].mxu0
        %v1616 = vadd.f32 0.0, %v1615
        %v1617 = vpop.f32.mrb[0].mxu0
        %v1618 = vpop.f32.mrb[0].mxu0
        %v1619 = vadd.f32 0.0, %v1618
        %v1620 = vpop.f32.mrb[0].mxu0
        %1621 = vmatprep.mubr.bf16.mxu0 0
        %1622 = vmatmul.mubr.bf16.gmra.mrb[0].mxu0 %v1481
        %v1623 = vpop.f32.mrb[0].mxu0
        %v1624 = vadd.f32 0.0, %v1623
        %v1625 = vpop.f32.mrb[0].mxu0
        %v1626 = vpop.f32.mrb[0].mxu0
        %v1627 = vadd.f32 0.0, %v1626
        %v1628 = vpop.f32.mrb[0].mxu0
        %1629 = vmatprep.mubr.bf16.mxu0 0
        %1630 = vmatmul.mubr.bf16.gmra.mrb[0].mxu0 %v1483
        %v1631 = vpop.f32.mrb[0].mxu0
        %v1632 = vadd.f32 0.0, %v1631
        %v1633 = vpop.f32.mrb[0].mxu0
        %v1634 = vpop.f32.mrb[0].mxu0
        %v1635 = vadd.f32 0.0, %v1634
        %v1636 = vpop.f32.mrb[0].mxu0
        %1637 = vmatprep.mubr.bf16.mxu0 0
        %1638 = vmatmul.mubr.bf16.gmra.mrb[0].mxu0 %v1485
        %v1639 = vpop.f32.mrb[0].mxu0
        %v1640 = vadd.f32 0.0, %v1639
        %v1641 = vpop.f32.mrb[0].mxu0
        %v1642 = vpop.f32.mrb[0].mxu0
        %v1643 = vadd.f32 0.0, %v1642
        %v1644 = vpop.f32.mrb[0].mxu0
        %1645 = vmatprep.mubr.bf16.mxu0 0
        %1646 = vmatmul.mubr.bf16.gmra.mrb[0].mxu0 %v1487
        %v1647 = vpop.f32.mrb[0].mxu0
        %v1648 = vadd.f32 0.0, %v1647
        %v1649 = vpop.f32.mrb[0].mxu0
        %v1650 = vpop.f32.mrb[0].mxu0
        %v1651 = vadd.f32 0.0, %v1650
        %v1652 = vpop.f32.mrb[0].mxu0
        %1653 = vdwg.mxu0
        %v1656 = vunpack.c.l.b16 %v1446
        %v1657 = vunpack.c.l.b16 %v1447
        %v1658 = vpack.c.b16 %v1657, %v1656
        %v1659 = vsel %vm1456, %v1413, 0
        %v1662 = vsel %vm1489, %v1658, 0
        %1664 = vmatprep.subr.bf16.mxu0 0
        %1665 = vmatpush1.bf16.msra.mxu0 %v1662
        %1666 = vmatprep.subr.bf16.mxu0 0
        %1667 = vmatpush1.bf16.msra.mxu0 0
        %1668 = vmatprep.subr.bf16.mxu0 0
        %1669 = vmatpush1.bf16.msra.mxu0 0
        %1670 = vmatprep.subr.bf16.mxu0 0
        %1671 = vmatpush1.bf16.msra.mxu0 0
        %1672 = vmatprep.subr.bf16.mxu0 0
        %1673 = vmatpush1.bf16.msra.mxu0 0
        %1674 = vmatprep.subr.bf16.mxu0 0
        %1675 = vmatpush1.bf16.msra.mxu0 0
        %1676 = vmatprep.subr.bf16.mxu0 0
        %1677 = vmatpush1.bf16.msra.mxu0 0
        %1678 = vmatprep.subr.bf16.mxu0 0
        %1679 = vmatpush1.bf16.msra.mxu0 0
        %1680 = vmatprep.subr.bf16.mxu0 0
        %1681 = vmatpush1.bf16.msra.mxu0 0
        %1682 = vmatprep.subr.bf16.mxu0 0
        %1683 = vmatpush1.bf16.msra.mxu0 0
        %1684 = vmatprep.subr.bf16.mxu0 0
        %1685 = vmatpush1.bf16.msra.mxu0 0
        %1686 = vmatprep.subr.bf16.mxu0 0
        %1687 = vmatpush1.bf16.msra.mxu0 0
        %1688 = vmatprep.subr.bf16.mxu0 0
        %1689 = vmatpush1.bf16.msra.mxu0 0
        %1690 = vmatprep.subr.bf16.mxu0 0
        %1691 = vmatpush1.bf16.msra.mxu0 0
        %1692 = vmatprep.subr.bf16.mxu0 0
        %1693 = vmatpush1.bf16.msra.mxu0 0
        %1694 = vmatprep.subr.bf16.mxu0 0
        %1695 = vmatpush1.bf16.msra.mxu0 0
        %1696 = vmatprep.mubr.bf16.mxu0 0
        %1697 = vmatmul.mubr.bf16.gmra.mrb[0].mxu0 %v1659
        %v1698 = vpop.f32.mrb[0].mxu0
        %v1699 = vadd.f32 %v1528, %v1698
        %v1700 = vpop.f32.mrb[0].mxu0
        %v1701 = vpop.f32.mrb[0].mxu0
        %v1702 = vadd.f32 %v1531, %v1701
        %v1703 = vpop.f32.mrb[0].mxu0
        %1704 = vmatprep.mubr.bf16.mxu0 0
        %1705 = vmatmul.mubr.bf16.gmra.mrb[0].mxu0 %v1457
        %v1706 = vpop.f32.mrb[0].mxu0
        %v1707 = vadd.f32 %v1536, %v1706
        %v1708 = vpop.f32.mrb[0].mxu0
        %v1709 = vpop.f32.mrb[0].mxu0
        %v1710 = vadd.f32 %v1539, %v1709
        %v1711 = vpop.f32.mrb[0].mxu0
        %1712 = vmatprep.mubr.bf16.mxu0 0
        %1713 = vmatmul.mubr.bf16.gmra.mrb[0].mxu0 %v1459
        %v1714 = vpop.f32.mrb[0].mxu0
        %v1715 = vadd.f32 %v1544, %v1714
        %v1716 = vpop.f32.mrb[0].mxu0
        %v1717 = vpop.f32.mrb[0].mxu0
        %v1718 = vadd.f32 %v1547, %v1717
        %v1719 = vpop.f32.mrb[0].mxu0
        %1720 = vmatprep.mubr.bf16.mxu0 0
        %1721 = vmatmul.mubr.bf16.gmra.mrb[0].mxu0 %v1461
        %v1722 = vpop.f32.mrb[0].mxu0
        %v1723 = vadd.f32 %v1552, %v1722
        %v1724 = vpop.f32.mrb[0].mxu0
        %v1725 = vpop.f32.mrb[0].mxu0
        %v1726 = vadd.f32 %v1555, %v1725
        %v1727 = vpop.f32.mrb[0].mxu0
        %1728 = vmatprep.mubr.bf16.mxu0 0
        %1729 = vmatmul.mubr.bf16.gmra.mrb[0].mxu0 %v1463
        %v1730 = vpop.f32.mrb[0].mxu0
        %v1731 = vadd.f32 %v1560, %v1730
        %v1732 = vpop.f32.mrb[0].mxu0
        %v1733 = vpop.f32.mrb[0].mxu0
        %v1734 = vadd.f32 %v1563, %v1733
        %v1735 = vpop.f32.mrb[0].mxu0
        %1736 = vmatprep.mubr.bf16.mxu0 0
        %1737 = vmatmul.mubr.bf16.gmra.mrb[0].mxu0 %v1465
        %v1738 = vpop.f32.mrb[0].mxu0
        %v1739 = vadd.f32 %v1568, %v1738
        %v1740 = vpop.f32.mrb[0].mxu0
        %v1741 = vpop.f32.mrb[0].mxu0
        %v1742 = vadd.f32 %v1571, %v1741
        %v1743 = vpop.f32.mrb[0].mxu0
        %1744 = vmatprep.mubr.bf16.mxu0 0
        %1745 = vmatmul.mubr.bf16.gmra.mrb[0].mxu0 %v1467
        %v1746 = vpop.f32.mrb[0].mxu0
        %v1747 = vadd.f32 %v1576, %v1746
        %v1748 = vpop.f32.mrb[0].mxu0
        %v1749 = vpop.f32.mrb[0].mxu0
        %v1750 = vadd.f32 %v1579, %v1749
        %v1751 = vpop.f32.mrb[0].mxu0
        %1752 = vmatprep.mubr.bf16.mxu0 0
        %1753 = vmatmul.mubr.bf16.gmra.mrb[0].mxu0 %v1469
        %v1754 = vpop.f32.mrb[0].mxu0
        %v1755 = vadd.f32 %v1584, %v1754
        %v1756 = vpop.f32.mrb[0].mxu0
        %v1757 = vpop.f32.mrb[0].mxu0
        %v1758 = vadd.f32 %v1587, %v1757
        %v1759 = vpop.f32.mrb[0].mxu0
        %1760 = vmatprep.mubr.bf16.mxu0 0
        %1761 = vmatmul.mubr.bf16.gmra.mrb[0].mxu0 %v1471
        %v1762 = vpop.f32.mrb[0].mxu0
        %v1763 = vadd.f32 %v1592, %v1762
        %v1764 = vpop.f32.mrb[0].mxu0
        %v1765 = vpop.f32.mrb[0].mxu0
        %v1766 = vadd.f32 %v1595, %v1765
        %v1767 = vpop.f32.mrb[0].mxu0
        %1768 = vmatprep.mubr.bf16.mxu0 0
        %1769 = vmatmul.mubr.bf16.gmra.mrb[0].mxu0 %v1473
        %v1770 = vpop.f32.mrb[0].mxu0
        %v1771 = vadd.f32 %v1600, %v1770
        %v1772 = vpop.f32.mrb[0].mxu0
        %v1773 = vpop.f32.mrb[0].mxu0
        %v1774 = vadd.f32 %v1603, %v1773
        %v1775 = vpop.f32.mrb[0].mxu0
        %1776 = vmatprep.mubr.bf16.mxu0 0
        %1777 = vmatmul.mubr.bf16.gmra.mrb[0].mxu0 %v1475
        %v1778 = vpop.f32.mrb[0].mxu0
        %v1779 = vadd.f32 %v1608, %v1778
        %v1780 = vpop.f32.mrb[0].mxu0
        %v1781 = vpop.f32.mrb[0].mxu0
        %v1782 = vadd.f32 %v1611, %v1781
        %v1783 = vpop.f32.mrb[0].mxu0
        %1784 = vmatprep.mubr.bf16.mxu0 0
        %1785 = vmatmul.mubr.bf16.gmra.mrb[0].mxu0 %v1477
        %v1786 = vpop.f32.mrb[0].mxu0
        %v1787 = vadd.f32 %v1616, %v1786
        %v1788 = vpop.f32.mrb[0].mxu0
        %v1789 = vpop.f32.mrb[0].mxu0
        %v1790 = vadd.f32 %v1619, %v1789
        %v1791 = vpop.f32.mrb[0].mxu0
        %1792 = vmatprep.mubr.bf16.mxu0 0
        %1793 = vmatmul.mubr.bf16.gmra.mrb[0].mxu0 %v1479
        %v1794 = vpop.f32.mrb[0].mxu0
        %v1795 = vadd.f32 %v1624, %v1794
        %v1796 = vpop.f32.mrb[0].mxu0
        %v1797 = vpop.f32.mrb[0].mxu0
        %v1798 = vadd.f32 %v1627, %v1797
        %v1799 = vpop.f32.mrb[0].mxu0
        %1800 = vmatprep.mubr.bf16.mxu0 0
        %1801 = vmatmul.mubr.bf16.gmra.mrb[0].mxu0 %v1481
        %v1802 = vpop.f32.mrb[0].mxu0
        %v1803 = vadd.f32 %v1632, %v1802
        %v1804 = vpop.f32.mrb[0].mxu0
        %v1805 = vpop.f32.mrb[0].mxu0
        %v1806 = vadd.f32 %v1635, %v1805
        %v1807 = vpop.f32.mrb[0].mxu0
        %1808 = vmatprep.mubr.bf16.mxu0 0
        %1809 = vmatmul.mubr.bf16.gmra.mrb[0].mxu0 %v1483
        %v1810 = vpop.f32.mrb[0].mxu0
        %v1811 = vadd.f32 %v1640, %v1810
        %v1812 = vpop.f32.mrb[0].mxu0
        %v1813 = vpop.f32.mrb[0].mxu0
        %v1814 = vadd.f32 %v1643, %v1813
        %v1815 = vpop.f32.mrb[0].mxu0
        %1816 = vmatprep.mubr.bf16.mxu0 0
        %1817 = vmatmul.mubr.bf16.gmra.mrb[0].mxu0 %v1485
        %v1818 = vpop.f32.mrb[0].mxu0
        %v1819 = vadd.f32 %v1648, %v1818
        %v1820 = vpop.f32.mrb[0].mxu0
        %v1821 = vpop.f32.mrb[0].mxu0
        %v1822 = vadd.f32 %v1651, %v1821
        %v1823 = vpop.f32.mrb[0].mxu0
        %1824 = vdwg.mxu0
        %s1825 = scalar_lea.vmem %s3, 16
        %v1826 = vld [vmem:[%s1825] sm:$0xf]
        %v1827 = vld [vmem:[%s1825 + $0x4] sm:$0x3]
        %v1830 = vunpack.c.l.b16 %v1826
        %v1831 = vunpack.c.l.b16 %v1827
        %v1832 = vpack.c.b16 %v1831, %v1830
        %v1834 = vsel %vm1489, %v1832, 0
        %1836 = vmatprep.subr.bf16.mxu0 0
        %1837 = vmatpush1.bf16.msra.mxu0 %v1834
        %1838 = vmatprep.subr.bf16.mxu0 0
        %1839 = vmatpush1.bf16.msra.mxu0 0
        %1840 = vmatprep.subr.bf16.mxu0 0
        %1841 = vmatpush1.bf16.msra.mxu0 0
        %1842 = vmatprep.subr.bf16.mxu0 0
        %1843 = vmatpush1.bf16.msra.mxu0 0
        %1844 = vmatprep.subr.bf16.mxu0 0
        %1845 = vmatpush1.bf16.msra.mxu0 0
        %1846 = vmatprep.subr.bf16.mxu0 0
        %1847 = vmatpush1.bf16.msra.mxu0 0
        %1848 = vmatprep.subr.bf16.mxu0 0
        %1849 = vmatpush1.bf16.msra.mxu0 0
        %1850 = vmatprep.subr.bf16.mxu0 0
        %1851 = vmatpush1.bf16.msra.mxu0 0
        %1852 = vmatprep.subr.bf16.mxu0 0
        %1853 = vmatpush1.bf16.msra.mxu0 0
        %1854 = vmatprep.subr.bf16.mxu0 0
        %1855 = vmatpush1.bf16.msra.mxu0 0
        %1856 = vmatprep.subr.bf16.mxu0 0
        %1857 = vmatpush1.bf16.msra.mxu0 0
        %1858 = vmatprep.subr.bf16.mxu0 0
        %1859 = vmatpush1.bf16.msra.mxu0 0
        %1860 = vmatprep.subr.bf16.mxu0 0
        %1861 = vmatpush1.bf16.msra.mxu0 0
        %1862 = vmatprep.subr.bf16.mxu0 0
        %1863 = vmatpush1.bf16.msra.mxu0 0
        %1864 = vmatprep.subr.bf16.mxu0 0
        %1865 = vmatpush1.bf16.msra.mxu0 0
        %1866 = vmatprep.subr.bf16.mxu0 0
        %1867 = vmatpush1.bf16.msra.mxu0 0
        %1868 = vmatprep.mubr.bf16.mxu0 0
        %1869 = vmatmul.mubr.bf16.gmra.mrb[0].mxu0 %v1459
        %v1870 = vpop.f32.mrb[0].mxu0
        %v1871 = vadd.f32 0.0, %v1870
        %v1872 = vpop.f32.mrb[0].mxu0
        %v1873 = vpop.f32.mrb[0].mxu0
        %v1874 = vadd.f32 0.0, %v1873
        %v1875 = vpop.f32.mrb[0].mxu0
        %1876 = vmatprep.mubr.bf16.mxu0 0
        %1877 = vmatmul.mubr.bf16.gmra.mrb[0].mxu0 %v1461
        %v1878 = vpop.f32.mrb[0].mxu0
        %v1879 = vadd.f32 0.0, %v1878
        %v1880 = vpop.f32.mrb[0].mxu0
        %v1881 = vpop.f32.mrb[0].mxu0
        %v1882 = vadd.f32 0.0, %v1881
        %v1883 = vpop.f32.mrb[0].mxu0
        %1884 = vmatprep.mubr.bf16.mxu0 0
        %1885 = vmatmul.mubr.bf16.gmra.mrb[0].mxu0 %v1463
        %v1886 = vpop.f32.mrb[0].mxu0
        %v1887 = vadd.f32 0.0, %v1886
        %v1888 = vpop.f32.mrb[0].mxu0
        %v1889 = vpop.f32.mrb[0].mxu0
        %v1890 = vadd.f32 0.0, %v1889
        %v1891 = vpop.f32.mrb[0].mxu0
        %1892 = vmatprep.mubr.bf16.mxu0 0
        %1893 = vmatmul.mubr.bf16.gmra.mrb[0].mxu0 %v1465
        %v1894 = vpop.f32.mrb[0].mxu0
        %v1895 = vadd.f32 0.0, %v1894
        %v1896 = vpop.f32.mrb[0].mxu0
        %v1897 = vpop.f32.mrb[0].mxu0
        %v1898 = vadd.f32 0.0, %v1897
        %v1899 = vpop.f32.mrb[0].mxu0
        %1900 = vmatprep.mubr.bf16.mxu0 0
        %1901 = vmatmul.mubr.bf16.gmra.mrb[0].mxu0 %v1467
        %v1902 = vpop.f32.mrb[0].mxu0
        %v1903 = vadd.f32 0.0, %v1902
        %v1904 = vpop.f32.mrb[0].mxu0
        %v1905 = vpop.f32.mrb[0].mxu0
        %v1906 = vadd.f32 0.0, %v1905
        %v1907 = vpop.f32.mrb[0].mxu0
        %1908 = vmatprep.mubr.bf16.mxu0 0
        %1909 = vmatmul.mubr.bf16.gmra.mrb[0].mxu0 %v1469
        %v1910 = vpop.f32.mrb[0].mxu0
        %v1911 = vadd.f32 0.0, %v1910
        %v1912 = vpop.f32.mrb[0].mxu0
        %v1913 = vpop.f32.mrb[0].mxu0
        %v1914 = vadd.f32 0.0, %v1913
        %v1915 = vpop.f32.mrb[0].mxu0
        %1916 = vmatprep.mubr.bf16.mxu0 0
        %1917 = vmatmul.mubr.bf16.gmra.mrb[0].mxu0 %v1471
        %v1918 = vpop.f32.mrb[0].mxu0
        %v1919 = vadd.f32 0.0, %v1918
        %v1920 = vpop.f32.mrb[0].mxu0
        %v1921 = vpop.f32.mrb[0].mxu0
        %v1922 = vadd.f32 0.0, %v1921
        %v1923 = vpop.f32.mrb[0].mxu0
        %1924 = vmatprep.mubr.bf16.mxu0 0
        %1925 = vmatmul.mubr.bf16.gmra.mrb[0].mxu0 %v1473
        %v1926 = vpop.f32.mrb[0].mxu0
        %v1927 = vadd.f32 0.0, %v1926
        %v1928 = vpop.f32.mrb[0].mxu0
        %v1929 = vpop.f32.mrb[0].mxu0
        %v1930 = vadd.f32 0.0, %v1929
        %v1931 = vpop.f32.mrb[0].mxu0
        %1932 = vmatprep.mubr.bf16.mxu0 0
        %1933 = vmatmul.mubr.bf16.gmra.mrb[0].mxu0 %v1475
        %v1934 = vpop.f32.mrb[0].mxu0
        %v1935 = vadd.f32 0.0, %v1934
        %v1936 = vpop.f32.mrb[0].mxu0
        %v1937 = vpop.f32.mrb[0].mxu0
        %v1938 = vadd.f32 0.0, %v1937
        %v1939 = vpop.f32.mrb[0].mxu0
        %1940 = vmatprep.mubr.bf16.mxu0 0
        %1941 = vmatmul.mubr.bf16.gmra.mrb[0].mxu0 %v1477
        %v1942 = vpop.f32.mrb[0].mxu0
        %v1943 = vadd.f32 0.0, %v1942
        %v1944 = vpop.f32.mrb[0].mxu0
        %v1945 = vpop.f32.mrb[0].mxu0
        %v1946 = vadd.f32 0.0, %v1945
        %v1947 = vpop.f32.mrb[0].mxu0
        %1948 = vmatprep.mubr.bf16.mxu0 0
        %1949 = vmatmul.mubr.bf16.gmra.mrb[0].mxu0 %v1479
        %v1950 = vpop.f32.mrb[0].mxu0
        %v1951 = vadd.f32 0.0, %v1950
        %v1952 = vpop.f32.mrb[0].mxu0
        %v1953 = vpop.f32.mrb[0].mxu0
        %v1954 = vadd.f32 0.0, %v1953
        %v1955 = vpop.f32.mrb[0].mxu0
        %1956 = vmatprep.mubr.bf16.mxu0 0
        %1957 = vmatmul.mubr.bf16.gmra.mrb[0].mxu0 %v1481
        %v1958 = vpop.f32.mrb[0].mxu0
        %v1959 = vadd.f32 0.0, %v1958
        %v1960 = vpop.f32.mrb[0].mxu0
        %v1961 = vpop.f32.mrb[0].mxu0
        %v1962 = vadd.f32 0.0, %v1961
        %v1963 = vpop.f32.mrb[0].mxu0
        %1964 = vmatprep.mubr.bf16.mxu0 0
        %1965 = vmatmul.mubr.bf16.gmra.mrb[0].mxu0 %v1483
        %v1966 = vpop.f32.mrb[0].mxu0
        %v1967 = vadd.f32 0.0, %v1966
        %v1968 = vpop.f32.mrb[0].mxu0
        %v1969 = vpop.f32.mrb[0].mxu0
        %v1970 = vadd.f32 0.0, %v1969
        %v1971 = vpop.f32.mrb[0].mxu0
        %1972 = vmatprep.mubr.bf16.mxu0 0
        %1973 = vmatmul.mubr.bf16.gmra.mrb[0].mxu0 %v1485
        %v1974 = vpop.f32.mrb[0].mxu0
        %v1975 = vadd.f32 0.0, %v1974
        %v1976 = vpop.f32.mrb[0].mxu0
        %v1977 = vpop.f32.mrb[0].mxu0
        %v1978 = vadd.f32 0.0, %v1977
        %v1979 = vpop.f32.mrb[0].mxu0
        %1980 = vmatprep.mubr.bf16.mxu0 0
        %1981 = vmatmul.mubr.bf16.gmra.mrb[0].mxu0 %v1487
        %v1982 = vpop.f32.mrb[0].mxu0
        %v1983 = vadd.f32 0.0, %v1982
        %v1984 = vpop.f32.mrb[0].mxu0
        %v1985 = vpop.f32.mrb[0].mxu0
        %v1986 = vadd.f32 0.0, %v1985
        %v1987 = vpop.f32.mrb[0].mxu0
        %1988 = vmatprep.mubr.bf16.mxu0 0
        %1989 = vmatmul.mubr.bf16.gmra.mrb[0].mxu0 %v1659
        %v1990 = vpop.f32.mrb[0].mxu0
        %v1991 = vadd.f32 0.0, %v1990
        %v1992 = vpop.f32.mrb[0].mxu0
        %v1993 = vpop.f32.mrb[0].mxu0
        %v1994 = vadd.f32 0.0, %v1993
        %v1995 = vpop.f32.mrb[0].mxu0
        %1996 = vdwg.mxu0
        %v1997 = vadd.f32 %v1699, %v1871
        %v1998 = vadd.f32 %v1702, %v1874
        %v1999 = vadd.f32 %v1707, %v1879
        %v2000 = vadd.f32 %v1710, %v1882
        %v2001 = vadd.f32 %v1715, %v1887
        %v2002 = vadd.f32 %v1718, %v1890
        %v2003 = vadd.f32 %v1723, %v1895
        %v2004 = vadd.f32 %v1726, %v1898
        %v2005 = vadd.f32 %v1731, %v1903
        %v2006 = vadd.f32 %v1734, %v1906
        %v2007 = vadd.f32 %v1739, %v1911
        %v2008 = vadd.f32 %v1742, %v1914
        %v2009 = vadd.f32 %v1747, %v1919
        %v2010 = vadd.f32 %v1750, %v1922
        %v2011 = vadd.f32 %v1755, %v1927
        %v2012 = vadd.f32 %v1758, %v1930
        %v2013 = vadd.f32 %v1763, %v1935
        %v2014 = vadd.f32 %v1766, %v1938
        %v2015 = vadd.f32 %v1771, %v1943
        %v2016 = vadd.f32 %v1774, %v1946
        %v2017 = vadd.f32 %v1779, %v1951
        %v2018 = vadd.f32 %v1782, %v1954
        %v2019 = vadd.f32 %v1787, %v1959
        %v2020 = vadd.f32 %v1790, %v1962
        %v2021 = vadd.f32 %v1795, %v1967
        %v2022 = vadd.f32 %v1798, %v1970
        %v2023 = vadd.f32 %v1803, %v1975
        %v2024 = vadd.f32 %v1806, %v1978
        %v2025 = vadd.f32 %v1811, %v1983
        %v2026 = vadd.f32 %v1814, %v1986
        %v2027 = vadd.f32 %v1819, %v1991
        %v2028 = vadd.f32 %v1822, %v1994
        %v2029 = vld [vmem:[%s4] sm:$0x3]
        %v2030 = vlaneseq
        %v2031 = vshrl.u32 %v2030, 7
        %v2032 = vsub.s32 0, %v2031
        %v2033 = vrot.slane %v2029, %v2032
        %v2034 = vmul.f32 %v1997, %v2033
        %v2035 = vmul.f32 %v1998, %v2033
        %v2036 = vmul.f32 %v1999, %v2033
        %v2037 = vmul.f32 %v2000, %v2033
        %v2038 = vmul.f32 %v2001, %v2033
        %v2039 = vmul.f32 %v2002, %v2033
        %v2040 = vmul.f32 %v2003, %v2033
        %v2041 = vmul.f32 %v2004, %v2033
        %v2042 = vmul.f32 %v2005, %v2033
        %v2043 = vmul.f32 %v2006, %v2033
        %v2044 = vmul.f32 %v2007, %v2033
        %v2045 = vmul.f32 %v2008, %v2033
        %v2046 = vmul.f32 %v2009, %v2033
        %v2047 = vmul.f32 %v2010, %v2033
        %v2048 = vmul.f32 %v2011, %v2033
        %v2049 = vmul.f32 %v2012, %v2033
        %v2050 = vmul.f32 %v2013, %v2033
        %v2051 = vmul.f32 %v2014, %v2033
        %v2052 = vmul.f32 %v2015, %v2033
        %v2053 = vmul.f32 %v2016, %v2033
        %v2054 = vmul.f32 %v2017, %v2033
        %v2055 = vmul.f32 %v2018, %v2033
        %v2056 = vmul.f32 %v2019, %v2033
        %v2057 = vmul.f32 %v2020, %v2033
        %v2058 = vmul.f32 %v2021, %v2033
        %v2059 = vmul.f32 %v2022, %v2033
        %v2060 = vmul.f32 %v2023, %v2033
        %v2061 = vmul.f32 %v2024, %v2033
        %v2062 = vmul.f32 %v2025, %v2033
        %v2063 = vmul.f32 %v2026, %v2033
        %v2064 = vmul.f32 %v2027, %v2033
        %v2065 = vmul.f32 %v2028, %v2033
        %v2066 = vlaneseq
        %v2067 = vshrl.u32 %v2066, 7
        %v2068 = vsub.s32 1, %v2067
        %v2069 = vrot.slane %v2029, %v2068
        %v2070 = vadd.f32 %v2034, %v2069
        %v2071 = vadd.f32 %v2035, %v2069
        %v2072 = vadd.f32 %v2036, %v2069
        %v2073 = vadd.f32 %v2037, %v2069
        %v2074 = vadd.f32 %v2038, %v2069
        %v2075 = vadd.f32 %v2039, %v2069
        %v2076 = vadd.f32 %v2040, %v2069
        %v2077 = vadd.f32 %v2041, %v2069
        %v2078 = vadd.f32 %v2042, %v2069
        %v2079 = vadd.f32 %v2043, %v2069
        %v2080 = vadd.f32 %v2044, %v2069
        %v2081 = vadd.f32 %v2045, %v2069
        %v2082 = vadd.f32 %v2046, %v2069
        %v2083 = vadd.f32 %v2047, %v2069
        %v2084 = vadd.f32 %v2048, %v2069
        %v2085 = vadd.f32 %v2049, %v2069
        %v2086 = vadd.f32 %v2050, %v2069
        %v2087 = vadd.f32 %v2051, %v2069
        %v2088 = vadd.f32 %v2052, %v2069
        %v2089 = vadd.f32 %v2053, %v2069
        %v2090 = vadd.f32 %v2054, %v2069
        %v2091 = vadd.f32 %v2055, %v2069
        %v2092 = vadd.f32 %v2056, %v2069
        %v2093 = vadd.f32 %v2057, %v2069
        %v2094 = vadd.f32 %v2058, %v2069
        %v2095 = vadd.f32 %v2059, %v2069
        %v2096 = vadd.f32 %v2060, %v2069
        %v2097 = vadd.f32 %v2061, %v2069
        %v2098 = vadd.f32 %v2062, %v2069
        %v2099 = vadd.f32 %v2063, %v2069
        %v2100 = vadd.f32 %v2064, %v2069
        %v2101 = vadd.f32 %v2065, %v2069
        %v2102 = vmax.f32 %v2070, 0.0
        %v2103 = vmax.f32 %v2071, 0.0
        %v2104 = vmax.f32 %v2072, 0.0
        %v2105 = vmax.f32 %v2073, 0.0
        %v2106 = vmax.f32 %v2074, 0.0
        %v2107 = vmax.f32 %v2075, 0.0
        %v2108 = vmax.f32 %v2076, 0.0
        %v2109 = vmax.f32 %v2077, 0.0
        %v2110 = vmax.f32 %v2078, 0.0
        %v2111 = vmax.f32 %v2079, 0.0
        %v2112 = vmax.f32 %v2080, 0.0
        %v2113 = vmax.f32 %v2081, 0.0
        %v2114 = vmax.f32 %v2082, 0.0
        %v2115 = vmax.f32 %v2083, 0.0
        %v2116 = vmax.f32 %v2084, 0.0
        %v2117 = vmax.f32 %v2085, 0.0
        %v2118 = vmax.f32 %v2086, 0.0
        %v2119 = vmax.f32 %v2087, 0.0
        %v2120 = vmax.f32 %v2088, 0.0
        %v2121 = vmax.f32 %v2089, 0.0
        %v2122 = vmax.f32 %v2090, 0.0
        %v2123 = vmax.f32 %v2091, 0.0
        %v2124 = vmax.f32 %v2092, 0.0
        %v2125 = vmax.f32 %v2093, 0.0
        %v2126 = vmax.f32 %v2094, 0.0
        %v2127 = vmax.f32 %v2095, 0.0
        %v2128 = vmax.f32 %v2096, 0.0
        %v2129 = vmax.f32 %v2097, 0.0
        %v2130 = vmax.f32 %v2098, 0.0
        %v2131 = vmax.f32 %v2099, 0.0
        %v2132 = vmax.f32 %v2100, 0.0
        %v2133 = vmax.f32 %v2101, 0.0
        %v2150 = vrot.slane %v765, 7
        %v2151 = vrot.slane %v766, 7
        %v2152 = vrot.slane %v767, 7
        %v2153 = vrot.slane %v768, 7
        %v2154 = vrot.slane %v769, 7
        %v2155 = vrot.slane %v770, 7
        %v2156 = vrot.slane %v771, 7
        %v2157 = vrot.slane %v772, 7
        %v2158 = vrot.slane %v773, 7
        %v2159 = vrot.slane %v774, 7
        %v2160 = vrot.slane %v775, 7
        %v2161 = vrot.slane %v776, 7
        %v2162 = vrot.slane %v777, 7
        %v2163 = vrot.slane %v778, 7
        %v2164 = vrot.slane %v779, 7
        %v2165 = vrot.slane %v780, 7
        %2166 = vrot.lane.b32.xlu0 %v2150, 116
        %v2167 = vpop.permute.xlu0 %2166
        %2168 = vrot.lane.b32.xlu0 %v2151, 116
        %v2169 = vpop.permute.xlu0 %2168
        %2170 = vrot.lane.b32.xlu0 %v2152, 116
        %v2171 = vpop.permute.xlu0 %2170
        %2172 = vrot.lane.b32.xlu0 %v2153, 116
        %v2173 = vpop.permute.xlu0 %2172
        %2174 = vrot.lane.b32.xlu0 %v2154, 116
        %v2175 = vpop.permute.xlu0 %2174
        %2176 = vrot.lane.b32.xlu0 %v2155, 116
        %v2177 = vpop.permute.xlu0 %2176
        %2178 = vrot.lane.b32.xlu0 %v2156, 116
        %v2179 = vpop.permute.xlu0 %2178
        %2180 = vrot.lane.b32.xlu0 %v2157, 116
        %v2181 = vpop.permute.xlu0 %2180
        %2182 = vrot.lane.b32.xlu0 %v2158, 116
        %v2183 = vpop.permute.xlu0 %2182
        %2184 = vrot.lane.b32.xlu0 %v2159, 116
        %v2185 = vpop.permute.xlu0 %2184
        %2186 = vrot.lane.b32.xlu0 %v2160, 116
        %v2187 = vpop.permute.xlu0 %2186
        %2188 = vrot.lane.b32.xlu0 %v2161, 116
        %v2189 = vpop.permute.xlu0 %2188
        %2190 = vrot.lane.b32.xlu0 %v2162, 116
        %v2191 = vpop.permute.xlu0 %2190
        %2192 = vrot.lane.b32.xlu0 %v2163, 116
        %v2193 = vpop.permute.xlu0 %2192
        %2194 = vrot.lane.b32.xlu0 %v2164, 116
        %v2195 = vpop.permute.xlu0 %2194
        %2196 = vrot.lane.b32.xlu0 %v2165, 116
        %v2197 = vpop.permute.xlu0 %2196
        %vm2198 = vcmask 1040384
        %v2200 = vsel %vm2198, 0, %v2167
        %v2202 = vsel %vm2198, 0, %v2169
        %v2204 = vsel %vm2198, 0, %v2171
        %v2206 = vsel %vm2198, 0, %v2173
        %v2208 = vsel %vm2198, 0, %v2175
        %v2210 = vsel %vm2198, 0, %v2177
        %v2212 = vsel %vm2198, 0, %v2179
        %v2214 = vsel %vm2198, 0, %v2181
        %v2216 = vsel %vm2198, 0, %v2183
        %v2218 = vsel %vm2198, 0, %v2185
        %v2220 = vsel %vm2198, 0, %v2187
        %v2222 = vsel %vm2198, 0, %v2189
        %v2224 = vsel %vm2198, 0, %v2191
        %v2226 = vsel %vm2198, 0, %v2193
        %v2228 = vsel %vm2198, 0, %v2195
        %v2230 = vsel %vm2198, 0, %v2197
        %v2231 = vsel %vm2198, %v2167, 0
        %v2232 = vsel %vm2198, %v2169, 0
        %v2233 = vsel %vm2198, %v2171, 0
        %v2234 = vsel %vm2198, %v2173, 0
        %v2235 = vsel %vm2198, %v2175, 0
        %v2236 = vsel %vm2198, %v2177, 0
        %v2237 = vsel %vm2198, %v2179, 0
        %v2238 = vsel %vm2198, %v2181, 0
        %v2239 = vsel %vm2198, %v2183, 0
        %v2240 = vsel %vm2198, %v2185, 0
        %v2241 = vsel %vm2198, %v2187, 0
        %v2242 = vsel %vm2198, %v2189, 0
        %v2243 = vsel %vm2198, %v2191, 0
        %v2244 = vsel %vm2198, %v2193, 0
        %v2245 = vsel %vm2198, %v2195, 0
        %v2246 = vsel %vm2198, %v2197, 0
        %v2247 = vshrl.u32 %v2200, 16
        %v2249 = vshll.u32 %v2200, 16
        %v2251 = vrot.slane %v2249, 1
        %v2252 = vor.u32 %v2247, %v2251
        %v2253 = vshll.u32 %v2231, 16
        %v2255 = vrot.slane %v2253, 1
        %v2256 = vsel %vm1024, %v2252, %v2255
        %v2257 = vshrl.u32 %v2202, 16
        %v2259 = vshll.u32 %v2202, 16
        %v2261 = vrot.slane %v2259, 1
        %v2262 = vor.u32 %v2257, %v2261
        %v2263 = vshll.u32 %v2232, 16
        %v2265 = vrot.slane %v2263, 1
        %v2266 = vsel %vm1024, %v2262, %v2265
        %v2267 = vshrl.u32 %v2204, 16
        %v2269 = vshll.u32 %v2204, 16
        %v2271 = vrot.slane %v2269, 1
        %v2272 = vor.u32 %v2267, %v2271
        %v2273 = vshll.u32 %v2233, 16
        %v2275 = vrot.slane %v2273, 1
        %v2276 = vsel %vm1024, %v2272, %v2275
        %v2277 = vshrl.u32 %v2206, 16
        %v2279 = vshll.u32 %v2206, 16
        %v2281 = vrot.slane %v2279, 1
        %v2282 = vor.u32 %v2277, %v2281
        %v2283 = vshll.u32 %v2234, 16
        %v2285 = vrot.slane %v2283, 1
        %v2286 = vsel %vm1024, %v2282, %v2285
        %v2287 = vshrl.u32 %v2208, 16
        %v2289 = vshll.u32 %v2208, 16
        %v2291 = vrot.slane %v2289, 1
        %v2292 = vor.u32 %v2287, %v2291
        %v2293 = vshll.u32 %v2235, 16
        %v2295 = vrot.slane %v2293, 1
        %v2296 = vsel %vm1024, %v2292, %v2295
        %v2297 = vshrl.u32 %v2210, 16
        %v2299 = vshll.u32 %v2210, 16
        %v2301 = vrot.slane %v2299, 1
        %v2302 = vor.u32 %v2297, %v2301
        %v2303 = vshll.u32 %v2236, 16
        %v2305 = vrot.slane %v2303, 1
        %v2306 = vsel %vm1024, %v2302, %v2305
        %v2307 = vshrl.u32 %v2212, 16
        %v2309 = vshll.u32 %v2212, 16
        %v2311 = vrot.slane %v2309, 1
        %v2312 = vor.u32 %v2307, %v2311
        %v2313 = vshll.u32 %v2237, 16
        %v2315 = vrot.slane %v2313, 1
        %v2316 = vsel %vm1024, %v2312, %v2315
        %v2317 = vshrl.u32 %v2214, 16
        %v2319 = vshll.u32 %v2214, 16
        %v2321 = vrot.slane %v2319, 1
        %v2322 = vor.u32 %v2317, %v2321
        %v2323 = vshll.u32 %v2238, 16
        %v2325 = vrot.slane %v2323, 1
        %v2326 = vsel %vm1024, %v2322, %v2325
        %v2327 = vshrl.u32 %v2216, 16
        %v2329 = vshll.u32 %v2216, 16
        %v2331 = vrot.slane %v2329, 1
        %v2332 = vor.u32 %v2327, %v2331
        %v2333 = vshll.u32 %v2239, 16
        %v2335 = vrot.slane %v2333, 1
        %v2336 = vsel %vm1024, %v2332, %v2335
        %v2337 = vshrl.u32 %v2218, 16
        %v2339 = vshll.u32 %v2218, 16
        %v2341 = vrot.slane %v2339, 1
        %v2342 = vor.u32 %v2337, %v2341
        %v2343 = vshll.u32 %v2240, 16
        %v2345 = vrot.slane %v2343, 1
        %v2346 = vsel %vm1024, %v2342, %v2345
        %v2347 = vshrl.u32 %v2220, 16
        %v2349 = vshll.u32 %v2220, 16
        %v2351 = vrot.slane %v2349, 1
        %v2352 = vor.u32 %v2347, %v2351
        %v2353 = vshll.u32 %v2241, 16
        %v2355 = vrot.slane %v2353, 1
        %v2356 = vsel %vm1024, %v2352, %v2355
        %v2357 = vshrl.u32 %v2222, 16
        %v2359 = vshll.u32 %v2222, 16
        %v2361 = vrot.slane %v2359, 1
        %v2362 = vor.u32 %v2357, %v2361
        %v2363 = vshll.u32 %v2242, 16
        %v2365 = vrot.slane %v2363, 1
        %v2366 = vsel %vm1024, %v2362, %v2365
        %v2367 = vshrl.u32 %v2224, 16
        %v2369 = vshll.u32 %v2224, 16
        %v2371 = vrot.slane %v2369, 1
        %v2372 = vor.u32 %v2367, %v2371
        %v2373 = vshll.u32 %v2243, 16
        %v2375 = vrot.slane %v2373, 1
        %v2376 = vsel %vm1024, %v2372, %v2375
        %v2377 = vshrl.u32 %v2226, 16
        %v2379 = vshll.u32 %v2226, 16
        %v2381 = vrot.slane %v2379, 1
        %v2382 = vor.u32 %v2377, %v2381
        %v2383 = vshll.u32 %v2244, 16
        %v2385 = vrot.slane %v2383, 1
        %v2386 = vsel %vm1024, %v2382, %v2385
        %v2387 = vshrl.u32 %v2228, 16
        %v2389 = vshll.u32 %v2228, 16
        %v2391 = vrot.slane %v2389, 1
        %v2392 = vor.u32 %v2387, %v2391
        %v2393 = vshll.u32 %v2245, 16
        %v2395 = vrot.slane %v2393, 1
        %v2396 = vsel %vm1024, %v2392, %v2395
        %v2397 = vshrl.u32 %v2230, 16
        %v2399 = vshll.u32 %v2230, 16
        %v2401 = vrot.slane %v2399, 1
        %v2402 = vor.u32 %v2397, %v2401
        %v2403 = vshll.u32 %v2246, 16
        %v2405 = vrot.slane %v2403, 1
        %v2406 = vsel %vm1024, %v2402, %v2405
        %2407 = vrot.lane.b32.xlu0 %v2256, 4
        %v2408 = vpop.permute.xlu0 %2407
        %2409 = vrot.lane.b32.xlu0 %v2266, 4
        %v2410 = vpop.permute.xlu0 %2409
        %2411 = vrot.lane.b32.xlu0 %v2276, 4
        %v2412 = vpop.permute.xlu0 %2411
        %2413 = vrot.lane.b32.xlu0 %v2286, 4
        %v2414 = vpop.permute.xlu0 %2413
        %2415 = vrot.lane.b32.xlu0 %v2296, 4
        %v2416 = vpop.permute.xlu0 %2415
        %2417 = vrot.lane.b32.xlu0 %v2306, 4
        %v2418 = vpop.permute.xlu0 %2417
        %2419 = vrot.lane.b32.xlu0 %v2316, 4
        %v2420 = vpop.permute.xlu0 %2419
        %2421 = vrot.lane.b32.xlu0 %v2326, 4
        %v2422 = vpop.permute.xlu0 %2421
        %2423 = vrot.lane.b32.xlu0 %v2336, 4
        %v2424 = vpop.permute.xlu0 %2423
        %2425 = vrot.lane.b32.xlu0 %v2346, 4
        %v2426 = vpop.permute.xlu0 %2425
        %2427 = vrot.lane.b32.xlu0 %v2356, 4
        %v2428 = vpop.permute.xlu0 %2427
        %2429 = vrot.lane.b32.xlu0 %v2366, 4
        %v2430 = vpop.permute.xlu0 %2429
        %2431 = vrot.lane.b32.xlu0 %v2376, 4
        %v2432 = vpop.permute.xlu0 %2431
        %2433 = vrot.lane.b32.xlu0 %v2386, 4
        %v2434 = vpop.permute.xlu0 %2433
        %2435 = vrot.lane.b32.xlu0 %v2396, 4
        %v2436 = vpop.permute.xlu0 %2435
        %2437 = vrot.lane.b32.xlu0 %v2406, 4
        %v2438 = vpop.permute.xlu0 %2437
        %v2471 = vrot.slane %v2200, 1
        %v2472 = vrot.slane %v2231, 1
        %v2473 = vsel %vm1292, %v2471, %v2472
        %v2474 = vrot.slane %v2202, 1
        %v2475 = vrot.slane %v2232, 1
        %v2476 = vsel %vm1292, %v2474, %v2475
        %v2477 = vrot.slane %v2204, 1
        %v2478 = vrot.slane %v2233, 1
        %v2479 = vsel %vm1292, %v2477, %v2478
        %v2480 = vrot.slane %v2206, 1
        %v2481 = vrot.slane %v2234, 1
        %v2482 = vsel %vm1292, %v2480, %v2481
        %v2483 = vrot.slane %v2208, 1
        %v2484 = vrot.slane %v2235, 1
        %v2485 = vsel %vm1292, %v2483, %v2484
        %v2486 = vrot.slane %v2210, 1
        %v2487 = vrot.slane %v2236, 1
        %v2488 = vsel %vm1292, %v2486, %v2487
        %v2489 = vrot.slane %v2212, 1
        %v2490 = vrot.slane %v2237, 1
        %v2491 = vsel %vm1292, %v2489, %v2490
        %v2492 = vrot.slane %v2214, 1
        %v2493 = vrot.slane %v2238, 1
        %v2494 = vsel %vm1292, %v2492, %v2493
        %v2495 = vrot.slane %v2216, 1
        %v2496 = vrot.slane %v2239, 1
        %v2497 = vsel %vm1292, %v2495, %v2496
        %v2498 = vrot.slane %v2218, 1
        %v2499 = vrot.slane %v2240, 1
        %v2500 = vsel %vm1292, %v2498, %v2499
        %v2501 = vrot.slane %v2220, 1
        %v2502 = vrot.slane %v2241, 1
        %v2503 = vsel %vm1292, %v2501, %v2502
        %v2504 = vrot.slane %v2222, 1
        %v2505 = vrot.slane %v2242, 1
        %v2506 = vsel %vm1292, %v2504, %v2505
        %v2507 = vrot.slane %v2224, 1
        %v2508 = vrot.slane %v2243, 1
        %v2509 = vsel %vm1292, %v2507, %v2508
        %v2510 = vrot.slane %v2226, 1
        %v2511 = vrot.slane %v2244, 1
        %v2512 = vsel %vm1292, %v2510, %v2511
        %v2513 = vrot.slane %v2228, 1
        %v2514 = vrot.slane %v2245, 1
        %v2515 = vsel %vm1292, %v2513, %v2514
        %v2516 = vrot.slane %v2230, 1
        %v2517 = vrot.slane %v2246, 1
        %v2518 = vsel %vm1292, %v2516, %v2517
        %2519 = vrot.lane.b32.xlu0 %v2473, 8
        %v2520 = vpop.permute.xlu0 %2519
        %2521 = vrot.lane.b32.xlu0 %v2476, 8
        %v2522 = vpop.permute.xlu0 %2521
        %2523 = vrot.lane.b32.xlu0 %v2479, 8
        %v2524 = vpop.permute.xlu0 %2523
        %2525 = vrot.lane.b32.xlu0 %v2482, 8
        %v2526 = vpop.permute.xlu0 %2525
        %2527 = vrot.lane.b32.xlu0 %v2485, 8
        %v2528 = vpop.permute.xlu0 %2527
        %2529 = vrot.lane.b32.xlu0 %v2488, 8
        %v2530 = vpop.permute.xlu0 %2529
        %2531 = vrot.lane.b32.xlu0 %v2491, 8
        %v2532 = vpop.permute.xlu0 %2531
        %2533 = vrot.lane.b32.xlu0 %v2494, 8
        %v2534 = vpop.permute.xlu0 %2533
        %2535 = vrot.lane.b32.xlu0 %v2497, 8
        %v2536 = vpop.permute.xlu0 %2535
        %2537 = vrot.lane.b32.xlu0 %v2500, 8
        %v2538 = vpop.permute.xlu0 %2537
        %2539 = vrot.lane.b32.xlu0 %v2503, 8
        %v2540 = vpop.permute.xlu0 %2539
        %2541 = vrot.lane.b32.xlu0 %v2506, 8
        %v2542 = vpop.permute.xlu0 %2541
        %2543 = vrot.lane.b32.xlu0 %v2509, 8
        %v2544 = vpop.permute.xlu0 %2543
        %2545 = vrot.lane.b32.xlu0 %v2512, 8
        %v2546 = vpop.permute.xlu0 %2545
        %2547 = vrot.lane.b32.xlu0 %v2515, 8
        %v2548 = vpop.permute.xlu0 %2547
        %2549 = vrot.lane.b32.xlu0 %v2518, 8
        %v2550 = vpop.permute.xlu0 %2549
        %vm2551 = vsmask.f32 6400
        %v2552 = vrot.slane %v1026, 1
        %v2553 = vrot.slane %v1028, 2
        %v2554 = vor.u32 %v2552, %v2553
        %v2555 = vsel %vm2551, %v2554, %v2554
        %v2556 = vrot.slane %v2247, 1
        %v2557 = vrot.slane %v2249, 2
        %v2558 = vor.u32 %v2556, %v2557
        %v2559 = vshrl.u32 %v2231, 16
        %v2561 = vrot.slane %v2559, 1
        %v2562 = vrot.slane %v2253, 2
        %v2563 = vor.u32 %v2561, %v2562
        %v2564 = vsel %vm2551, %v2558, %v2563
        %v2565 = vrot.slane %v2257, 1
        %v2566 = vrot.slane %v2259, 2
        %v2567 = vor.u32 %v2565, %v2566
        %v2568 = vshrl.u32 %v2232, 16
        %v2570 = vrot.slane %v2568, 1
        %v2571 = vrot.slane %v2263, 2
        %v2572 = vor.u32 %v2570, %v2571
        %v2573 = vsel %vm2551, %v2567, %v2572
        %v2574 = vrot.slane %v2267, 1
        %v2575 = vrot.slane %v2269, 2
        %v2576 = vor.u32 %v2574, %v2575
        %v2577 = vshrl.u32 %v2233, 16
        %v2579 = vrot.slane %v2577, 1
        %v2580 = vrot.slane %v2273, 2
        %v2581 = vor.u32 %v2579, %v2580
        %v2582 = vsel %vm2551, %v2576, %v2581
        %v2583 = vrot.slane %v2277, 1
        %v2584 = vrot.slane %v2279, 2
        %v2585 = vor.u32 %v2583, %v2584
        %v2586 = vshrl.u32 %v2234, 16
        %v2588 = vrot.slane %v2586, 1
        %v2589 = vrot.slane %v2283, 2
        %v2590 = vor.u32 %v2588, %v2589
        %v2591 = vsel %vm2551, %v2585, %v2590
        %v2592 = vrot.slane %v2287, 1
        %v2593 = vrot.slane %v2289, 2
        %v2594 = vor.u32 %v2592, %v2593
        %v2595 = vshrl.u32 %v2235, 16
        %v2597 = vrot.slane %v2595, 1
        %v2598 = vrot.slane %v2293, 2
        %v2599 = vor.u32 %v2597, %v2598
        %v2600 = vsel %vm2551, %v2594, %v2599
        %v2601 = vrot.slane %v2297, 1
        %v2602 = vrot.slane %v2299, 2
        %v2603 = vor.u32 %v2601, %v2602
        %v2604 = vshrl.u32 %v2236, 16
        %v2606 = vrot.slane %v2604, 1
        %v2607 = vrot.slane %v2303, 2
        %v2608 = vor.u32 %v2606, %v2607
        %v2609 = vsel %vm2551, %v2603, %v2608
        %v2610 = vrot.slane %v2307, 1
        %v2611 = vrot.slane %v2309, 2
        %v2612 = vor.u32 %v2610, %v2611
        %v2613 = vshrl.u32 %v2237, 16
        %v2615 = vrot.slane %v2613, 1
        %v2616 = vrot.slane %v2313, 2
        %v2617 = vor.u32 %v2615, %v2616
        %v2618 = vsel %vm2551, %v2612, %v2617
        %v2619 = vrot.slane %v2317, 1
        %v2620 = vrot.slane %v2319, 2
        %v2621 = vor.u32 %v2619, %v2620
        %v2622 = vshrl.u32 %v2238, 16
        %v2624 = vrot.slane %v2622, 1
        %v2625 = vrot.slane %v2323, 2
        %v2626 = vor.u32 %v2624, %v2625
        %v2627 = vsel %vm2551, %v2621, %v2626
        %v2628 = vrot.slane %v2327, 1
        %v2629 = vrot.slane %v2329, 2
        %v2630 = vor.u32 %v2628, %v2629
        %v2631 = vshrl.u32 %v2239, 16
        %v2633 = vrot.slane %v2631, 1
        %v2634 = vrot.slane %v2333, 2
        %v2635 = vor.u32 %v2633, %v2634
        %v2636 = vsel %vm2551, %v2630, %v2635
        %v2637 = vrot.slane %v2337, 1
        %v2638 = vrot.slane %v2339, 2
        %v2639 = vor.u32 %v2637, %v2638
        %v2640 = vshrl.u32 %v2240, 16
        %v2642 = vrot.slane %v2640, 1
        %v2643 = vrot.slane %v2343, 2
        %v2644 = vor.u32 %v2642, %v2643
        %v2645 = vsel %vm2551, %v2639, %v2644
        %v2646 = vrot.slane %v2347, 1
        %v2647 = vrot.slane %v2349, 2
        %v2648 = vor.u32 %v2646, %v2647
        %v2649 = vshrl.u32 %v2241, 16
        %v2651 = vrot.slane %v2649, 1
        %v2652 = vrot.slane %v2353, 2
        %v2653 = vor.u32 %v2651, %v2652
        %v2654 = vsel %vm2551, %v2648, %v2653
        %v2655 = vrot.slane %v2357, 1
        %v2656 = vrot.slane %v2359, 2
        %v2657 = vor.u32 %v2655, %v2656
        %v2658 = vshrl.u32 %v2242, 16
        %v2660 = vrot.slane %v2658, 1
        %v2661 = vrot.slane %v2363, 2
        %v2662 = vor.u32 %v2660, %v2661
        %v2663 = vsel %vm2551, %v2657, %v2662
        %v2664 = vrot.slane %v2367, 1
        %v2665 = vrot.slane %v2369, 2
        %v2666 = vor.u32 %v2664, %v2665
        %v2667 = vshrl.u32 %v2243, 16
        %v2669 = vrot.slane %v2667, 1
        %v2670 = vrot.slane %v2373, 2
        %v2671 = vor.u32 %v2669, %v2670
        %v2672 = vsel %vm2551, %v2666, %v2671
        %v2673 = vrot.slane %v2377, 1
        %v2674 = vrot.slane %v2379, 2
        %v2675 = vor.u32 %v2673, %v2674
        %v2676 = vshrl.u32 %v2244, 16
        %v2678 = vrot.slane %v2676, 1
        %v2679 = vrot.slane %v2383, 2
        %v2680 = vor.u32 %v2678, %v2679
        %v2681 = vsel %vm2551, %v2675, %v2680
        %v2682 = vrot.slane %v2387, 1
        %v2683 = vrot.slane %v2389, 2
        %v2684 = vor.u32 %v2682, %v2683
        %v2685 = vshrl.u32 %v2245, 16
        %v2687 = vrot.slane %v2685, 1
        %v2688 = vrot.slane %v2393, 2
        %v2689 = vor.u32 %v2687, %v2688
        %v2690 = vsel %vm2551, %v2684, %v2689
        %v2691 = vrot.slane %v2397, 1
        %v2692 = vrot.slane %v2399, 2
        %v2693 = vor.u32 %v2691, %v2692
        %v2694 = vshrl.u32 %v2246, 16
        %v2696 = vrot.slane %v2694, 1
        %v2697 = vrot.slane %v2403, 2
        %v2698 = vor.u32 %v2696, %v2697
        %v2699 = vsel %vm2551, %v2693, %v2698
        %2700 = vrot.lane.b32.xlu0 %v2555, 12
        %v2701 = vpop.permute.xlu0 %2700
        %2702 = vrot.lane.b32.xlu0 %v2564, 12
        %v2703 = vpop.permute.xlu0 %2702
        %2704 = vrot.lane.b32.xlu0 %v2573, 12
        %v2705 = vpop.permute.xlu0 %2704
        %2706 = vrot.lane.b32.xlu0 %v2582, 12
        %v2707 = vpop.permute.xlu0 %2706
        %2708 = vrot.lane.b32.xlu0 %v2591, 12
        %v2709 = vpop.permute.xlu0 %2708
        %2710 = vrot.lane.b32.xlu0 %v2600, 12
        %v2711 = vpop.permute.xlu0 %2710
        %2712 = vrot.lane.b32.xlu0 %v2609, 12
        %v2713 = vpop.permute.xlu0 %2712
        %2714 = vrot.lane.b32.xlu0 %v2618, 12
        %v2715 = vpop.permute.xlu0 %2714
        %2716 = vrot.lane.b32.xlu0 %v2627, 12
        %v2717 = vpop.permute.xlu0 %2716
        %2718 = vrot.lane.b32.xlu0 %v2636, 12
        %v2719 = vpop.permute.xlu0 %2718
        %2720 = vrot.lane.b32.xlu0 %v2645, 12
        %v2721 = vpop.permute.xlu0 %2720
        %2722 = vrot.lane.b32.xlu0 %v2654, 12
        %v2723 = vpop.permute.xlu0 %2722
        %2724 = vrot.lane.b32.xlu0 %v2663, 12
        %v2725 = vpop.permute.xlu0 %2724
        %2726 = vrot.lane.b32.xlu0 %v2672, 12
        %v2727 = vpop.permute.xlu0 %2726
        %2728 = vrot.lane.b32.xlu0 %v2681, 12
        %v2729 = vpop.permute.xlu0 %2728
        %2730 = vrot.lane.b32.xlu0 %v2690, 12
        %v2731 = vpop.permute.xlu0 %2730
        %2732 = vrot.lane.b32.xlu0 %v2699, 12
        %v2733 = vpop.permute.xlu0 %2732
        %vm2734 = vcmask 1045504
        %v2735 = vrot.slane 0, 2
        %v2736 = vsel %vm2734, %v2735, %v2735
        %v2737 = vrot.slane %v2200, 2
        %v2738 = vrot.slane %v2231, 2
        %v2739 = vsel %vm2734, %v2737, %v2738
        %v2740 = vrot.slane %v2202, 2
        %v2741 = vrot.slane %v2232, 2
        %v2742 = vsel %vm2734, %v2740, %v2741
        %v2743 = vrot.slane %v2204, 2
        %v2744 = vrot.slane %v2233, 2
        %v2745 = vsel %vm2734, %v2743, %v2744
        %v2746 = vrot.slane %v2206, 2
        %v2747 = vrot.slane %v2234, 2
        %v2748 = vsel %vm2734, %v2746, %v2747
        %v2749 = vrot.slane %v2208, 2
        %v2750 = vrot.slane %v2235, 2
        %v2751 = vsel %vm2734, %v2749, %v2750
        %v2752 = vrot.slane %v2210, 2
        %v2753 = vrot.slane %v2236, 2
        %v2754 = vsel %vm2734, %v2752, %v2753
        %v2755 = vrot.slane %v2212, 2
        %v2756 = vrot.slane %v2237, 2
        %v2757 = vsel %vm2734, %v2755, %v2756
        %v2758 = vrot.slane %v2214, 2
        %v2759 = vrot.slane %v2238, 2
        %v2760 = vsel %vm2734, %v2758, %v2759
        %v2761 = vrot.slane %v2216, 2
        %v2762 = vrot.slane %v2239, 2
        %v2763 = vsel %vm2734, %v2761, %v2762
        %v2764 = vrot.slane %v2218, 2
        %v2765 = vrot.slane %v2240, 2
        %v2766 = vsel %vm2734, %v2764, %v2765
        %v2767 = vrot.slane %v2220, 2
        %v2768 = vrot.slane %v2241, 2
        %v2769 = vsel %vm2734, %v2767, %v2768
        %v2770 = vrot.slane %v2222, 2
        %v2771 = vrot.slane %v2242, 2
        %v2772 = vsel %vm2734, %v2770, %v2771
        %v2773 = vrot.slane %v2224, 2
        %v2774 = vrot.slane %v2243, 2
        %v2775 = vsel %vm2734, %v2773, %v2774
        %v2776 = vrot.slane %v2226, 2
        %v2777 = vrot.slane %v2244, 2
        %v2778 = vsel %vm2734, %v2776, %v2777
        %v2779 = vrot.slane %v2228, 2
        %v2780 = vrot.slane %v2245, 2
        %v2781 = vsel %vm2734, %v2779, %v2780
        %v2782 = vrot.slane %v2230, 2
        %v2783 = vrot.slane %v2246, 2
        %v2784 = vsel %vm2734, %v2782, %v2783
        %2785 = vrot.lane.b32.xlu0 %v2736, 16
        %v2786 = vpop.permute.xlu0 %2785
        %2787 = vrot.lane.b32.xlu0 %v2739, 16
        %v2788 = vpop.permute.xlu0 %2787
        %2789 = vrot.lane.b32.xlu0 %v2742, 16
        %v2790 = vpop.permute.xlu0 %2789
        %2791 = vrot.lane.b32.xlu0 %v2745, 16
        %v2792 = vpop.permute.xlu0 %2791
        %2793 = vrot.lane.b32.xlu0 %v2748, 16
        %v2794 = vpop.permute.xlu0 %2793
        %2795 = vrot.lane.b32.xlu0 %v2751, 16
        %v2796 = vpop.permute.xlu0 %2795
        %2797 = vrot.lane.b32.xlu0 %v2754, 16
        %v2798 = vpop.permute.xlu0 %2797
        %2799 = vrot.lane.b32.xlu0 %v2757, 16
        %v2800 = vpop.permute.xlu0 %2799
        %2801 = vrot.lane.b32.xlu0 %v2760, 16
        %v2802 = vpop.permute.xlu0 %2801
        %2803 = vrot.lane.b32.xlu0 %v2763, 16
        %v2804 = vpop.permute.xlu0 %2803
        %2805 = vrot.lane.b32.xlu0 %v2766, 16
        %v2806 = vpop.permute.xlu0 %2805
        %2807 = vrot.lane.b32.xlu0 %v2769, 16
        %v2808 = vpop.permute.xlu0 %2807
        %2809 = vrot.lane.b32.xlu0 %v2772, 16
        %v2810 = vpop.permute.xlu0 %2809
        %2811 = vrot.lane.b32.xlu0 %v2775, 16
        %v2812 = vpop.permute.xlu0 %2811
        %2813 = vrot.lane.b32.xlu0 %v2778, 16
        %v2814 = vpop.permute.xlu0 %2813
        %2815 = vrot.lane.b32.xlu0 %v2781, 16
        %v2816 = vpop.permute.xlu0 %2815
        %2817 = vrot.lane.b32.xlu0 %v2784, 16
        %v2818 = vpop.permute.xlu0 %2817
        %v2820 = vsel %vm447, %v2200, %v2408
        %v2822 = vsel %vm447, %v2202, %v2410
        %v2824 = vsel %vm447, %v2204, %v2412
        %v2826 = vsel %vm447, %v2206, %v2414
        %v2828 = vsel %vm447, %v2208, %v2416
        %v2830 = vsel %vm447, %v2210, %v2418
        %v2832 = vsel %vm447, %v2212, %v2420
        %v2834 = vsel %vm447, %v2214, %v2422
        %v2836 = vsel %vm447, %v2216, %v2424
        %v2838 = vsel %vm447, %v2218, %v2426
        %v2840 = vsel %vm447, %v2220, %v2428
        %v2842 = vsel %vm447, %v2222, %v2430
        %v2844 = vsel %vm447, %v2224, %v2432
        %v2846 = vsel %vm447, %v2226, %v2434
        %v2848 = vsel %vm447, %v2228, %v2436
        %v2850 = vsel %vm447, %v2230, %v2438
        %v2852 = vsel %vm1411, %v2820, %v2520
        %v2854 = vsel %vm1411, %v2822, %v2522
        %v2856 = vsel %vm1411, %v2824, %v2524
        %v2858 = vsel %vm1411, %v2826, %v2526
        %v2860 = vsel %vm1411, %v2828, %v2528
        %v2862 = vsel %vm1411, %v2830, %v2530
        %v2864 = vsel %vm1411, %v2832, %v2532
        %v2866 = vsel %vm1411, %v2834, %v2534
        %v2868 = vsel %vm1411, %v2836, %v2536
        %v2870 = vsel %vm1411, %v2838, %v2538
        %v2872 = vsel %vm1411, %v2840, %v2540
        %v2874 = vsel %vm1411, %v2842, %v2542
        %v2876 = vsel %vm1411, %v2844, %v2544
        %v2878 = vsel %vm1411, %v2846, %v2546
        %v2880 = vsel %vm1411, %v2848, %v2548
        %v2882 = vsel %vm1411, %v2850, %v2550
        %v2884 = vsel %vm1456, %v1413, %v2701
        %v2886 = vsel %vm1456, %v2852, %v2703
        %v2888 = vsel %vm1456, %v2854, %v2705
        %v2890 = vsel %vm1456, %v2856, %v2707
        %v2892 = vsel %vm1456, %v2858, %v2709
        %v2894 = vsel %vm1456, %v2860, %v2711
        %v2896 = vsel %vm1456, %v2862, %v2713
        %v2898 = vsel %vm1456, %v2864, %v2715
        %v2900 = vsel %vm1456, %v2866, %v2717
        %v2902 = vsel %vm1456, %v2868, %v2719
        %v2904 = vsel %vm1456, %v2870, %v2721
        %v2906 = vsel %vm1456, %v2872, %v2723
        %v2908 = vsel %vm1456, %v2874, %v2725
        %v2910 = vsel %vm1456, %v2876, %v2727
        %v2912 = vsel %vm1456, %v2878, %v2729
        %v2914 = vsel %vm1456, %v2880, %v2731
        %v2916 = vsel %vm1456, %v2882, %v2733
        %vm2917 = vcmask 130048
        %v2919 = vsel %vm2917, %v2884, %v2786
        %v2921 = vsel %vm2917, %v2886, %v2788
        %v2923 = vsel %vm2917, %v2888, %v2790
        %v2925 = vsel %vm2917, %v2890, %v2792
        %v2927 = vsel %vm2917, %v2892, %v2794
        %v2929 = vsel %vm2917, %v2894, %v2796
        %v2931 = vsel %vm2917, %v2896, %v2798
        %v2933 = vsel %vm2917, %v2898, %v2800
        %v2935 = vsel %vm2917, %v2900, %v2802
        %v2937 = vsel %vm2917, %v2902, %v2804
        %v2939 = vsel %vm2917, %v2904, %v2806
        %v2941 = vsel %vm2917, %v2906, %v2808
        %v2943 = vsel %vm2917, %v2908, %v2810
        %v2945 = vsel %vm2917, %v2910, %v2812
        %v2947 = vsel %vm2917, %v2912, %v2814
        %v2949 = vsel %vm2917, %v2914, %v2816
        %v2951 = vsel %vm2917, %v2916, %v2818
        %v2952 = vld [vmem:[%s5] sm:$0xf]
        %v2953 = vld [vmem:[%s5 + $0x4] sm:$0xf]
        %v2954 = vld [vmem:[%s5 + $0x8] sm:$0x3]
        %s2955 = scalar_lea.vmem %s5, 12
        %v2956 = vld [vmem:[%s2955] sm:$0xf]
        %v2957 = vld [vmem:[%s2955 + $0x4] sm:$0xf]
        %v2958 = vld [vmem:[%s2955 + $0x8] sm:$0x3]
        %v2962 = vunpack.c.l.b16 %v2956
        %v2963 = vunpack.c.l.b16 %v2957
        %v2964 = vunpack.c.l.b16 %v2958
        %v2965 = vpack.c.b16 %v2963, %v2962
        %v2966 = vpack.c.b16 %v2964, %v2964
        %vm2968 = vcmask 162816
        %v2969 = vsel %vm2968, %v2919, 0
        %v2971 = vsel %vm2968, %v2921, 0
        %v2973 = vsel %vm2968, %v2923, 0
        %v2975 = vsel %vm2968, %v2925, 0
        %v2977 = vsel %vm2968, %v2927, 0
        %v2979 = vsel %vm2968, %v2929, 0
        %v2981 = vsel %vm2968, %v2931, 0
        %v2983 = vsel %vm2968, %v2933, 0
        %v2985 = vsel %vm2968, %v2935, 0
        %v2987 = vsel %vm2968, %v2937, 0
        %v2989 = vsel %vm2968, %v2939, 0
        %v2991 = vsel %vm2968, %v2941, 0
        %v2993 = vsel %vm2968, %v2943, 0
        %v2995 = vsel %vm2968, %v2945, 0
        %v2997 = vsel %vm2968, %v2947, 0
        %v2999 = vsel %vm2968, %v2949, 0
        %v3002 = vsel %vm496, %v2966, 0
        %3004 = vmatprep.subr.bf16.mxu0 0
        %3005 = vmatpush1.bf16.msra.mxu0 %v2965
        %3006 = vmatprep.subr.bf16.mxu0 0
        %3007 = vmatpush1.bf16.msra.mxu0 %v3002
        %3008 = vmatprep.subr.bf16.mxu0 0
        %3009 = vmatpush1.bf16.msra.mxu0 0
        %3010 = vmatprep.subr.bf16.mxu0 0
        %3011 = vmatpush1.bf16.msra.mxu0 0
        %3012 = vmatprep.subr.bf16.mxu0 0
        %3013 = vmatpush1.bf16.msra.mxu0 0
        %3014 = vmatprep.subr.bf16.mxu0 0
        %3015 = vmatpush1.bf16.msra.mxu0 0
        %3016 = vmatprep.subr.bf16.mxu0 0
        %3017 = vmatpush1.bf16.msra.mxu0 0
        %3018 = vmatprep.subr.bf16.mxu0 0
        %3019 = vmatpush1.bf16.msra.mxu0 0
        %3020 = vmatprep.subr.bf16.mxu0 0
        %3021 = vmatpush1.bf16.msra.mxu0 0
        %3022 = vmatprep.subr.bf16.mxu0 0
        %3023 = vmatpush1.bf16.msra.mxu0 0
        %3024 = vmatprep.subr.bf16.mxu0 0
        %3025 = vmatpush1.bf16.msra.mxu0 0
        %3026 = vmatprep.subr.bf16.mxu0 0
        %3027 = vmatpush1.bf16.msra.mxu0 0
        %3028 = vmatprep.subr.bf16.mxu0 0
        %3029 = vmatpush1.bf16.msra.mxu0 0
        %3030 = vmatprep.subr.bf16.mxu0 0
        %3031 = vmatpush1.bf16.msra.mxu0 0
        %3032 = vmatprep.subr.bf16.mxu0 0
        %3033 = vmatpush1.bf16.msra.mxu0 0
        %3034 = vmatprep.subr.bf16.mxu0 0
        %3035 = vmatpush1.bf16.msra.mxu0 0
        %3036 = vmatprep.mubr.bf16.mxu0 0
        %3037 = vmatmul.mubr.bf16.gmra.mrb[0].mxu0 %v2969
        %v3038 = vpop.f32.mrb[0].mxu0
        %v3039 = vadd.f32 0.0, %v3038
        %v3040 = vpop.f32.mrb[0].mxu0
        %v3041 = vpop.f32.mrb[0].mxu0
        %v3042 = vadd.f32 0.0, %v3041
        %v3043 = vpop.f32.mrb[0].mxu0
        %3044 = vmatprep.mubr.bf16.mxu0 0
        %3045 = vmatmul.mubr.bf16.gmra.mrb[0].mxu0 %v2971
        %v3046 = vpop.f32.mrb[0].mxu0
        %v3047 = vadd.f32 0.0, %v3046
        %v3048 = vpop.f32.mrb[0].mxu0
        %v3049 = vpop.f32.mrb[0].mxu0
        %v3050 = vadd.f32 0.0, %v3049
        %v3051 = vpop.f32.mrb[0].mxu0
        %3052 = vmatprep.mubr.bf16.mxu0 0
        %3053 = vmatmul.mubr.bf16.gmra.mrb[0].mxu0 %v2973
        %v3054 = vpop.f32.mrb[0].mxu0
        %v3055 = vadd.f32 0.0, %v3054
        %v3056 = vpop.f32.mrb[0].mxu0
        %v3057 = vpop.f32.mrb[0].mxu0
        %v3058 = vadd.f32 0.0, %v3057
        %v3059 = vpop.f32.mrb[0].mxu0
        %3060 = vmatprep.mubr.bf16.mxu0 0
        %3061 = vmatmul.mubr.bf16.gmra.mrb[0].mxu0 %v2975
        %v3062 = vpop.f32.mrb[0].mxu0
        %v3063 = vadd.f32 0.0, %v3062
        %v3064 = vpop.f32.mrb[0].mxu0
        %v3065 = vpop.f32.mrb[0].mxu0
        %v3066 = vadd.f32 0.0, %v3065
        %v3067 = vpop.f32.mrb[0].mxu0
        %3068 = vmatprep.mubr.bf16.mxu0 0
        %3069 = vmatmul.mubr.bf16.gmra.mrb[0].mxu0 %v2977
        %v3070 = vpop.f32.mrb[0].mxu0
        %v3071 = vadd.f32 0.0, %v3070
        %v3072 = vpop.f32.mrb[0].mxu0
        %v3073 = vpop.f32.mrb[0].mxu0
        %v3074 = vadd.f32 0.0, %v3073
        %v3075 = vpop.f32.mrb[0].mxu0
        %3076 = vmatprep.mubr.bf16.mxu0 0
        %3077 = vmatmul.mubr.bf16.gmra.mrb[0].mxu0 %v2979
        %v3078 = vpop.f32.mrb[0].mxu0
        %v3079 = vadd.f32 0.0, %v3078
        %v3080 = vpop.f32.mrb[0].mxu0
        %v3081 = vpop.f32.mrb[0].mxu0
        %v3082 = vadd.f32 0.0, %v3081
        %v3083 = vpop.f32.mrb[0].mxu0
        %3084 = vmatprep.mubr.bf16.mxu0 0
        %3085 = vmatmul.mubr.bf16.gmra.mrb[0].mxu0 %v2981
        %v3086 = vpop.f32.mrb[0].mxu0
        %v3087 = vadd.f32 0.0, %v3086
        %v3088 = vpop.f32.mrb[0].mxu0
        %v3089 = vpop.f32.mrb[0].mxu0
        %v3090 = vadd.f32 0.0, %v3089
        %v3091 = vpop.f32.mrb[0].mxu0
        %3092 = vmatprep.mubr.bf16.mxu0 0
        %3093 = vmatmul.mubr.bf16.gmra.mrb[0].mxu0 %v2983
        %v3094 = vpop.f32.mrb[0].mxu0
        %v3095 = vadd.f32 0.0, %v3094
        %v3096 = vpop.f32.mrb[0].mxu0
        %v3097 = vpop.f32.mrb[0].mxu0
        %v3098 = vadd.f32 0.0, %v3097
        %v3099 = vpop.f32.mrb[0].mxu0
        %3100 = vmatprep.mubr.bf16.mxu0 0
        %3101 = vmatmul.mubr.bf16.gmra.mrb[0].mxu0 %v2985
        %v3102 = vpop.f32.mrb[0].mxu0
        %v3103 = vadd.f32 0.0, %v3102
        %v3104 = vpop.f32.mrb[0].mxu0
        %v3105 = vpop.f32.mrb[0].mxu0
        %v3106 = vadd.f32 0.0, %v3105
        %v3107 = vpop.f32.mrb[0].mxu0
        %3108 = vmatprep.mubr.bf16.mxu0 0
        %3109 = vmatmul.mubr.bf16.gmra.mrb[0].mxu0 %v2987
        %v3110 = vpop.f32.mrb[0].mxu0
        %v3111 = vadd.f32 0.0, %v3110
        %v3112 = vpop.f32.mrb[0].mxu0
        %v3113 = vpop.f32.mrb[0].mxu0
        %v3114 = vadd.f32 0.0, %v3113
        %v3115 = vpop.f32.mrb[0].mxu0
        %3116 = vmatprep.mubr.bf16.mxu0 0
        %3117 = vmatmul.mubr.bf16.gmra.mrb[0].mxu0 %v2989
        %v3118 = vpop.f32.mrb[0].mxu0
        %v3119 = vadd.f32 0.0, %v3118
        %v3120 = vpop.f32.mrb[0].mxu0
        %v3121 = vpop.f32.mrb[0].mxu0
        %v3122 = vadd.f32 0.0, %v3121
        %v3123 = vpop.f32.mrb[0].mxu0
        %3124 = vmatprep.mubr.bf16.mxu0 0
        %3125 = vmatmul.mubr.bf16.gmra.mrb[0].mxu0 %v2991
        %v3126 = vpop.f32.mrb[0].mxu0
        %v3127 = vadd.f32 0.0, %v3126
        %v3128 = vpop.f32.mrb[0].mxu0
        %v3129 = vpop.f32.mrb[0].mxu0
        %v3130 = vadd.f32 0.0, %v3129
        %v3131 = vpop.f32.mrb[0].mxu0
        %3132 = vmatprep.mubr.bf16.mxu0 0
        %3133 = vmatmul.mubr.bf16.gmra.mrb[0].mxu0 %v2993
        %v3134 = vpop.f32.mrb[0].mxu0
        %v3135 = vadd.f32 0.0, %v3134
        %v3136 = vpop.f32.mrb[0].mxu0
        %v3137 = vpop.f32.mrb[0].mxu0
        %v3138 = vadd.f32 0.0, %v3137
        %v3139 = vpop.f32.mrb[0].mxu0
        %3140 = vmatprep.mubr.bf16.mxu0 0
        %3141 = vmatmul.mubr.bf16.gmra.mrb[0].mxu0 %v2995
        %v3142 = vpop.f32.mrb[0].mxu0
        %v3143 = vadd.f32 0.0, %v3142
        %v3144 = vpop.f32.mrb[0].mxu0
        %v3145 = vpop.f32.mrb[0].mxu0
        %v3146 = vadd.f32 0.0, %v3145
        %v3147 = vpop.f32.mrb[0].mxu0
        %3148 = vmatprep.mubr.bf16.mxu0 0
        %3149 = vmatmul.mubr.bf16.gmra.mrb[0].mxu0 %v2997
        %v3150 = vpop.f32.mrb[0].mxu0
        %v3151 = vadd.f32 0.0, %v3150
        %v3152 = vpop.f32.mrb[0].mxu0
        %v3153 = vpop.f32.mrb[0].mxu0
        %v3154 = vadd.f32 0.0, %v3153
        %v3155 = vpop.f32.mrb[0].mxu0
        %3156 = vmatprep.mubr.bf16.mxu0 0
        %3157 = vmatmul.mubr.bf16.gmra.mrb[0].mxu0 %v2999
        %v3158 = vpop.f32.mrb[0].mxu0
        %v3159 = vadd.f32 0.0, %v3158
        %v3160 = vpop.f32.mrb[0].mxu0
        %v3161 = vpop.f32.mrb[0].mxu0
        %v3162 = vadd.f32 0.0, %v3161
        %v3163 = vpop.f32.mrb[0].mxu0
        %3164 = vdwg.mxu0
        %v3168 = vunpack.c.l.b16 %v2952
        %v3169 = vunpack.c.l.b16 %v2953
        %v3170 = vunpack.c.l.b16 %v2954
        %v3171 = vpack.c.b16 %v3169, %v3168
        %v3172 = vpack.c.b16 %v3170, %v3170
        %v3175 = vsel %vm496, %v3172, 0
        %3177 = vmatprep.subr.bf16.mxu0 0
        %3178 = vmatpush1.bf16.msra.mxu0 %v3171
        %3179 = vmatprep.subr.bf16.mxu0 0
        %3180 = vmatpush1.bf16.msra.mxu0 %v3175
        %3181 = vmatprep.subr.bf16.mxu0 0
        %3182 = vmatpush1.bf16.msra.mxu0 0
        %3183 = vmatprep.subr.bf16.mxu0 0
        %3184 = vmatpush1.bf16.msra.mxu0 0
        %3185 = vmatprep.subr.bf16.mxu0 0
        %3186 = vmatpush1.bf16.msra.mxu0 0
        %3187 = vmatprep.subr.bf16.mxu0 0
        %3188 = vmatpush1.bf16.msra.mxu0 0
        %3189 = vmatprep.subr.bf16.mxu0 0
        %3190 = vmatpush1.bf16.msra.mxu0 0
        %3191 = vmatprep.subr.bf16.mxu0 0
        %3192 = vmatpush1.bf16.msra.mxu0 0
        %3193 = vmatprep.subr.bf16.mxu0 0
        %3194 = vmatpush1.bf16.msra.mxu0 0
        %3195 = vmatprep.subr.bf16.mxu0 0
        %3196 = vmatpush1.bf16.msra.mxu0 0
        %3197 = vmatprep.subr.bf16.mxu0 0
        %3198 = vmatpush1.bf16.msra.mxu0 0
        %3199 = vmatprep.subr.bf16.mxu0 0
        %3200 = vmatpush1.bf16.msra.mxu0 0
        %3201 = vmatprep.subr.bf16.mxu0 0
        %3202 = vmatpush1.bf16.msra.mxu0 0
        %3203 = vmatprep.subr.bf16.mxu0 0
        %3204 = vmatpush1.bf16.msra.mxu0 0
        %3205 = vmatprep.subr.bf16.mxu0 0
        %3206 = vmatpush1.bf16.msra.mxu0 0
        %3207 = vmatprep.subr.bf16.mxu0 0
        %3208 = vmatpush1.bf16.msra.mxu0 0
        %3209 = vmatprep.mubr.bf16.mxu0 0
        %3210 = vmatmul.mubr.bf16.gmra.mrb[0].mxu0 %v2969
        %v3211 = vpop.f32.mrb[0].mxu0
        %v3212 = vadd.f32 %v3039, %v3211
        %v3213 = vpop.f32.mrb[0].mxu0
        %v3214 = vpop.f32.mrb[0].mxu0
        %v3215 = vadd.f32 %v3042, %v3214
        %v3216 = vpop.f32.mrb[0].mxu0
        %3217 = vmatprep.mubr.bf16.mxu0 0
        %3218 = vmatmul.mubr.bf16.gmra.mrb[0].mxu0 %v2969
        %v3219 = vpop.f32.mrb[0].mxu0
        %v3220 = vadd.f32 %v3047, %v3219
        %v3221 = vpop.f32.mrb[0].mxu0
        %v3222 = vpop.f32.mrb[0].mxu0
        %v3223 = vadd.f32 %v3050, %v3222
        %v3224 = vpop.f32.mrb[0].mxu0
        %3225 = vmatprep.mubr.bf16.mxu0 0
        %3226 = vmatmul.mubr.bf16.gmra.mrb[0].mxu0 %v2971
        %v3227 = vpop.f32.mrb[0].mxu0
        %v3228 = vadd.f32 %v3055, %v3227
        %v3229 = vpop.f32.mrb[0].mxu0
        %v3230 = vpop.f32.mrb[0].mxu0
        %v3231 = vadd.f32 %v3058, %v3230
        %v3232 = vpop.f32.mrb[0].mxu0
        %3233 = vmatprep.mubr.bf16.mxu0 0
        %3234 = vmatmul.mubr.bf16.gmra.mrb[0].mxu0 %v2973
        %v3235 = vpop.f32.mrb[0].mxu0
        %v3236 = vadd.f32 %v3063, %v3235
        %v3237 = vpop.f32.mrb[0].mxu0
        %v3238 = vpop.f32.mrb[0].mxu0
        %v3239 = vadd.f32 %v3066, %v3238
        %v3240 = vpop.f32.mrb[0].mxu0
        %3241 = vmatprep.mubr.bf16.mxu0 0
        %3242 = vmatmul.mubr.bf16.gmra.mrb[0].mxu0 %v2975
        %v3243 = vpop.f32.mrb[0].mxu0
        %v3244 = vadd.f32 %v3071, %v3243
        %v3245 = vpop.f32.mrb[0].mxu0
        %v3246 = vpop.f32.mrb[0].mxu0
        %v3247 = vadd.f32 %v3074, %v3246
        %v3248 = vpop.f32.mrb[0].mxu0
        %3249 = vmatprep.mubr.bf16.mxu0 0
        %3250 = vmatmul.mubr.bf16.gmra.mrb[0].mxu0 %v2977
        %v3251 = vpop.f32.mrb[0].mxu0
        %v3252 = vadd.f32 %v3079, %v3251
        %v3253 = vpop.f32.mrb[0].mxu0
        %v3254 = vpop.f32.mrb[0].mxu0
        %v3255 = vadd.f32 %v3082, %v3254
        %v3256 = vpop.f32.mrb[0].mxu0
        %3257 = vmatprep.mubr.bf16.mxu0 0
        %3258 = vmatmul.mubr.bf16.gmra.mrb[0].mxu0 %v2979
        %v3259 = vpop.f32.mrb[0].mxu0
        %v3260 = vadd.f32 %v3087, %v3259
        %v3261 = vpop.f32.mrb[0].mxu0
        %v3262 = vpop.f32.mrb[0].mxu0
        %v3263 = vadd.f32 %v3090, %v3262
        %v3264 = vpop.f32.mrb[0].mxu0
        %3265 = vmatprep.mubr.bf16.mxu0 0
        %3266 = vmatmul.mubr.bf16.gmra.mrb[0].mxu0 %v2981
        %v3267 = vpop.f32.mrb[0].mxu0
        %v3268 = vadd.f32 %v3095, %v3267
        %v3269 = vpop.f32.mrb[0].mxu0
        %v3270 = vpop.f32.mrb[0].mxu0
        %v3271 = vadd.f32 %v3098, %v3270
        %v3272 = vpop.f32.mrb[0].mxu0
        %3273 = vmatprep.mubr.bf16.mxu0 0
        %3274 = vmatmul.mubr.bf16.gmra.mrb[0].mxu0 %v2983
        %v3275 = vpop.f32.mrb[0].mxu0
        %v3276 = vadd.f32 %v3103, %v3275
        %v3277 = vpop.f32.mrb[0].mxu0
        %v3278 = vpop.f32.mrb[0].mxu0
        %v3279 = vadd.f32 %v3106, %v3278
        %v3280 = vpop.f32.mrb[0].mxu0
        %3281 = vmatprep.mubr.bf16.mxu0 0
        %3282 = vmatmul.mubr.bf16.gmra.mrb[0].mxu0 %v2985
        %v3283 = vpop.f32.mrb[0].mxu0
        %v3284 = vadd.f32 %v3111, %v3283
        %v3285 = vpop.f32.mrb[0].mxu0
        %v3286 = vpop.f32.mrb[0].mxu0
        %v3287 = vadd.f32 %v3114, %v3286
        %v3288 = vpop.f32.mrb[0].mxu0
        %3289 = vmatprep.mubr.bf16.mxu0 0
        %3290 = vmatmul.mubr.bf16.gmra.mrb[0].mxu0 %v2987
        %v3291 = vpop.f32.mrb[0].mxu0
        %v3292 = vadd.f32 %v3119, %v3291
        %v3293 = vpop.f32.mrb[0].mxu0
        %v3294 = vpop.f32.mrb[0].mxu0
        %v3295 = vadd.f32 %v3122, %v3294
        %v3296 = vpop.f32.mrb[0].mxu0
        %3297 = vmatprep.mubr.bf16.mxu0 0
        %3298 = vmatmul.mubr.bf16.gmra.mrb[0].mxu0 %v2989
        %v3299 = vpop.f32.mrb[0].mxu0
        %v3300 = vadd.f32 %v3127, %v3299
        %v3301 = vpop.f32.mrb[0].mxu0
        %v3302 = vpop.f32.mrb[0].mxu0
        %v3303 = vadd.f32 %v3130, %v3302
        %v3304 = vpop.f32.mrb[0].mxu0
        %3305 = vmatprep.mubr.bf16.mxu0 0
        %3306 = vmatmul.mubr.bf16.gmra.mrb[0].mxu0 %v2991
        %v3307 = vpop.f32.mrb[0].mxu0
        %v3308 = vadd.f32 %v3135, %v3307
        %v3309 = vpop.f32.mrb[0].mxu0
        %v3310 = vpop.f32.mrb[0].mxu0
        %v3311 = vadd.f32 %v3138, %v3310
        %v3312 = vpop.f32.mrb[0].mxu0
        %3313 = vmatprep.mubr.bf16.mxu0 0
        %3314 = vmatmul.mubr.bf16.gmra.mrb[0].mxu0 %v2993
        %v3315 = vpop.f32.mrb[0].mxu0
        %v3316 = vadd.f32 %v3143, %v3315
        %v3317 = vpop.f32.mrb[0].mxu0
        %v3318 = vpop.f32.mrb[0].mxu0
        %v3319 = vadd.f32 %v3146, %v3318
        %v3320 = vpop.f32.mrb[0].mxu0
        %3321 = vmatprep.mubr.bf16.mxu0 0
        %3322 = vmatmul.mubr.bf16.gmra.mrb[0].mxu0 %v2995
        %v3323 = vpop.f32.mrb[0].mxu0
        %v3324 = vadd.f32 %v3151, %v3323
        %v3325 = vpop.f32.mrb[0].mxu0
        %v3326 = vpop.f32.mrb[0].mxu0
        %v3327 = vadd.f32 %v3154, %v3326
        %v3328 = vpop.f32.mrb[0].mxu0
        %3329 = vmatprep.mubr.bf16.mxu0 0
        %3330 = vmatmul.mubr.bf16.gmra.mrb[0].mxu0 %v2997
        %v3331 = vpop.f32.mrb[0].mxu0
        %v3332 = vadd.f32 %v3159, %v3331
        %v3333 = vpop.f32.mrb[0].mxu0
        %v3334 = vpop.f32.mrb[0].mxu0
        %v3335 = vadd.f32 %v3162, %v3334
        %v3336 = vpop.f32.mrb[0].mxu0
        %3337 = vdwg.mxu0
        %s3338 = scalar_lea.vmem %s5, 24
        %v3339 = vld [vmem:[%s3338] sm:$0xf]
        %v3340 = vld [vmem:[%s3338 + $0x4] sm:$0xf]
        %v3341 = vld [vmem:[%s3338 + $0x8] sm:$0x3]
        %v3345 = vunpack.c.l.b16 %v3339
        %v3346 = vunpack.c.l.b16 %v3340
        %v3347 = vunpack.c.l.b16 %v3341
        %v3348 = vpack.c.b16 %v3346, %v3345
        %v3349 = vpack.c.b16 %v3347, %v3347
        %v3351 = vsel %vm2968, %v2951, 0
        %v3354 = vsel %vm496, %v3349, 0
        %3356 = vmatprep.subr.bf16.mxu0 0
        %3357 = vmatpush1.bf16.msra.mxu0 %v3348
        %3358 = vmatprep.subr.bf16.mxu0 0
        %3359 = vmatpush1.bf16.msra.mxu0 %v3354
        %3360 = vmatprep.subr.bf16.mxu0 0
        %3361 = vmatpush1.bf16.msra.mxu0 0
        %3362 = vmatprep.subr.bf16.mxu0 0
        %3363 = vmatpush1.bf16.msra.mxu0 0
        %3364 = vmatprep.subr.bf16.mxu0 0
        %3365 = vmatpush1.bf16.msra.mxu0 0
        %3366 = vmatprep.subr.bf16.mxu0 0
        %3367 = vmatpush1.bf16.msra.mxu0 0
        %3368 = vmatprep.subr.bf16.mxu0 0
        %3369 = vmatpush1.bf16.msra.mxu0 0
        %3370 = vmatprep.subr.bf16.mxu0 0
        %3371 = vmatpush1.bf16.msra.mxu0 0
        %3372 = vmatprep.subr.bf16.mxu0 0
        %3373 = vmatpush1.bf16.msra.mxu0 0
        %3374 = vmatprep.subr.bf16.mxu0 0
        %3375 = vmatpush1.bf16.msra.mxu0 0
        %3376 = vmatprep.subr.bf16.mxu0 0
        %3377 = vmatpush1.bf16.msra.mxu0 0
        %3378 = vmatprep.subr.bf16.mxu0 0
        %3379 = vmatpush1.bf16.msra.mxu0 0
        %3380 = vmatprep.subr.bf16.mxu0 0
        %3381 = vmatpush1.bf16.msra.mxu0 0
        %3382 = vmatprep.subr.bf16.mxu0 0
        %3383 = vmatpush1.bf16.msra.mxu0 0
        %3384 = vmatprep.subr.bf16.mxu0 0
        %3385 = vmatpush1.bf16.msra.mxu0 0
        %3386 = vmatprep.subr.bf16.mxu0 0
        %3387 = vmatpush1.bf16.msra.mxu0 0
        %3388 = vmatprep.mubr.bf16.mxu0 0
        %3389 = vmatmul.mubr.bf16.gmra.mrb[0].mxu0 %v2971
        %v3390 = vpop.f32.mrb[0].mxu0
        %v3391 = vadd.f32 0.0, %v3390
        %v3392 = vpop.f32.mrb[0].mxu0
        %v3393 = vpop.f32.mrb[0].mxu0
        %v3394 = vadd.f32 0.0, %v3393
        %v3395 = vpop.f32.mrb[0].mxu0
        %3396 = vmatprep.mubr.bf16.mxu0 0
        %3397 = vmatmul.mubr.bf16.gmra.mrb[0].mxu0 %v2973
        %v3398 = vpop.f32.mrb[0].mxu0
        %v3399 = vadd.f32 0.0, %v3398
        %v3400 = vpop.f32.mrb[0].mxu0
        %v3401 = vpop.f32.mrb[0].mxu0
        %v3402 = vadd.f32 0.0, %v3401
        %v3403 = vpop.f32.mrb[0].mxu0
        %3404 = vmatprep.mubr.bf16.mxu0 0
        %3405 = vmatmul.mubr.bf16.gmra.mrb[0].mxu0 %v2975
        %v3406 = vpop.f32.mrb[0].mxu0
        %v3407 = vadd.f32 0.0, %v3406
        %v3408 = vpop.f32.mrb[0].mxu0
        %v3409 = vpop.f32.mrb[0].mxu0
        %v3410 = vadd.f32 0.0, %v3409
        %v3411 = vpop.f32.mrb[0].mxu0
        %3412 = vmatprep.mubr.bf16.mxu0 0
        %3413 = vmatmul.mubr.bf16.gmra.mrb[0].mxu0 %v2977
        %v3414 = vpop.f32.mrb[0].mxu0
        %v3415 = vadd.f32 0.0, %v3414
        %v3416 = vpop.f32.mrb[0].mxu0
        %v3417 = vpop.f32.mrb[0].mxu0
        %v3418 = vadd.f32 0.0, %v3417
        %v3419 = vpop.f32.mrb[0].mxu0
        %3420 = vmatprep.mubr.bf16.mxu0 0
        %3421 = vmatmul.mubr.bf16.gmra.mrb[0].mxu0 %v2979
        %v3422 = vpop.f32.mrb[0].mxu0
        %v3423 = vadd.f32 0.0, %v3422
        %v3424 = vpop.f32.mrb[0].mxu0
        %v3425 = vpop.f32.mrb[0].mxu0
        %v3426 = vadd.f32 0.0, %v3425
        %v3427 = vpop.f32.mrb[0].mxu0
        %3428 = vmatprep.mubr.bf16.mxu0 0
        %3429 = vmatmul.mubr.bf16.gmra.mrb[0].mxu0 %v2981
        %v3430 = vpop.f32.mrb[0].mxu0
        %v3431 = vadd.f32 0.0, %v3430
        %v3432 = vpop.f32.mrb[0].mxu0
        %v3433 = vpop.f32.mrb[0].mxu0
        %v3434 = vadd.f32 0.0, %v3433
        %v3435 = vpop.f32.mrb[0].mxu0
        %3436 = vmatprep.mubr.bf16.mxu0 0
        %3437 = vmatmul.mubr.bf16.gmra.mrb[0].mxu0 %v2983
        %v3438 = vpop.f32.mrb[0].mxu0
        %v3439 = vadd.f32 0.0, %v3438
        %v3440 = vpop.f32.mrb[0].mxu0
        %v3441 = vpop.f32.mrb[0].mxu0
        %v3442 = vadd.f32 0.0, %v3441
        %v3443 = vpop.f32.mrb[0].mxu0
        %3444 = vmatprep.mubr.bf16.mxu0 0
        %3445 = vmatmul.mubr.bf16.gmra.mrb[0].mxu0 %v2985
        %v3446 = vpop.f32.mrb[0].mxu0
        %v3447 = vadd.f32 0.0, %v3446
        %v3448 = vpop.f32.mrb[0].mxu0
        %v3449 = vpop.f32.mrb[0].mxu0
        %v3450 = vadd.f32 0.0, %v3449
        %v3451 = vpop.f32.mrb[0].mxu0
        %3452 = vmatprep.mubr.bf16.mxu0 0
        %3453 = vmatmul.mubr.bf16.gmra.mrb[0].mxu0 %v2987
        %v3454 = vpop.f32.mrb[0].mxu0
        %v3455 = vadd.f32 0.0, %v3454
        %v3456 = vpop.f32.mrb[0].mxu0
        %v3457 = vpop.f32.mrb[0].mxu0
        %v3458 = vadd.f32 0.0, %v3457
        %v3459 = vpop.f32.mrb[0].mxu0
        %3460 = vmatprep.mubr.bf16.mxu0 0
        %3461 = vmatmul.mubr.bf16.gmra.mrb[0].mxu0 %v2989
        %v3462 = vpop.f32.mrb[0].mxu0
        %v3463 = vadd.f32 0.0, %v3462
        %v3464 = vpop.f32.mrb[0].mxu0
        %v3465 = vpop.f32.mrb[0].mxu0
        %v3466 = vadd.f32 0.0, %v3465
        %v3467 = vpop.f32.mrb[0].mxu0
        %3468 = vmatprep.mubr.bf16.mxu0 0
        %3469 = vmatmul.mubr.bf16.gmra.mrb[0].mxu0 %v2991
        %v3470 = vpop.f32.mrb[0].mxu0
        %v3471 = vadd.f32 0.0, %v3470
        %v3472 = vpop.f32.mrb[0].mxu0
        %v3473 = vpop.f32.mrb[0].mxu0
        %v3474 = vadd.f32 0.0, %v3473
        %v3475 = vpop.f32.mrb[0].mxu0
        %3476 = vmatprep.mubr.bf16.mxu0 0
        %3477 = vmatmul.mubr.bf16.gmra.mrb[0].mxu0 %v2993
        %v3478 = vpop.f32.mrb[0].mxu0
        %v3479 = vadd.f32 0.0, %v3478
        %v3480 = vpop.f32.mrb[0].mxu0
        %v3481 = vpop.f32.mrb[0].mxu0
        %v3482 = vadd.f32 0.0, %v3481
        %v3483 = vpop.f32.mrb[0].mxu0
        %3484 = vmatprep.mubr.bf16.mxu0 0
        %3485 = vmatmul.mubr.bf16.gmra.mrb[0].mxu0 %v2995
        %v3486 = vpop.f32.mrb[0].mxu0
        %v3487 = vadd.f32 0.0, %v3486
        %v3488 = vpop.f32.mrb[0].mxu0
        %v3489 = vpop.f32.mrb[0].mxu0
        %v3490 = vadd.f32 0.0, %v3489
        %v3491 = vpop.f32.mrb[0].mxu0
        %3492 = vmatprep.mubr.bf16.mxu0 0
        %3493 = vmatmul.mubr.bf16.gmra.mrb[0].mxu0 %v2997
        %v3494 = vpop.f32.mrb[0].mxu0
        %v3495 = vadd.f32 0.0, %v3494
        %v3496 = vpop.f32.mrb[0].mxu0
        %v3497 = vpop.f32.mrb[0].mxu0
        %v3498 = vadd.f32 0.0, %v3497
        %v3499 = vpop.f32.mrb[0].mxu0
        %3500 = vmatprep.mubr.bf16.mxu0 0
        %3501 = vmatmul.mubr.bf16.gmra.mrb[0].mxu0 %v2999
        %v3502 = vpop.f32.mrb[0].mxu0
        %v3503 = vadd.f32 0.0, %v3502
        %v3504 = vpop.f32.mrb[0].mxu0
        %v3505 = vpop.f32.mrb[0].mxu0
        %v3506 = vadd.f32 0.0, %v3505
        %v3507 = vpop.f32.mrb[0].mxu0
        %3508 = vmatprep.mubr.bf16.mxu0 0
        %3509 = vmatmul.mubr.bf16.gmra.mrb[0].mxu0 %v3351
        %v3510 = vpop.f32.mrb[0].mxu0
        %v3511 = vadd.f32 0.0, %v3510
        %v3512 = vpop.f32.mrb[0].mxu0
        %v3513 = vpop.f32.mrb[0].mxu0
        %v3514 = vadd.f32 0.0, %v3513
        %v3515 = vpop.f32.mrb[0].mxu0
        %3516 = vdwg.mxu0
        %v3517 = vadd.f32 %v3212, %v3391
        %v3518 = vadd.f32 %v3215, %v3394
        %v3519 = vadd.f32 %v3220, %v3399
        %v3520 = vadd.f32 %v3223, %v3402
        %v3521 = vadd.f32 %v3228, %v3407
        %v3522 = vadd.f32 %v3231, %v3410
        %v3523 = vadd.f32 %v3236, %v3415
        %v3524 = vadd.f32 %v3239, %v3418
        %v3525 = vadd.f32 %v3244, %v3423
        %v3526 = vadd.f32 %v3247, %v3426
        %v3527 = vadd.f32 %v3252, %v3431
        %v3528 = vadd.f32 %v3255, %v3434
        %v3529 = vadd.f32 %v3260, %v3439
        %v3530 = vadd.f32 %v3263, %v3442
        %v3531 = vadd.f32 %v3268, %v3447
        %v3532 = vadd.f32 %v3271, %v3450
        %v3533 = vadd.f32 %v3276, %v3455
        %v3534 = vadd.f32 %v3279, %v3458
        %v3535 = vadd.f32 %v3284, %v3463
        %v3536 = vadd.f32 %v3287, %v3466
        %v3537 = vadd.f32 %v3292, %v3471
        %v3538 = vadd.f32 %v3295, %v3474
        %v3539 = vadd.f32 %v3300, %v3479
        %v3540 = vadd.f32 %v3303, %v3482
        %v3541 = vadd.f32 %v3308, %v3487
        %v3542 = vadd.f32 %v3311, %v3490
        %v3543 = vadd.f32 %v3316, %v3495
        %v3544 = vadd.f32 %v3319, %v3498
        %v3545 = vadd.f32 %v3324, %v3503
        %v3546 = vadd.f32 %v3327, %v3506
        %v3547 = vadd.f32 %v3332, %v3511
        %v3548 = vadd.f32 %v3335, %v3514
        %s3549 = scalar_lea.vmem %s5, 36
        %v3550 = vld [vmem:[%s3549] sm:$0xf]
        %v3551 = vld [vmem:[%s3549 + $0x4] sm:$0xf]
        %v3552 = vld [vmem:[%s3549 + $0x8] sm:$0x3]
        %v3556 = vunpack.c.l.b16 %v3550
        %v3557 = vunpack.c.l.b16 %v3551
        %v3558 = vunpack.c.l.b16 %v3552
        %v3559 = vpack.c.b16 %v3557, %v3556
        %v3560 = vpack.c.b16 %v3558, %v3558
        %v3563 = vsel %vm496, %v3560, 0
        %3565 = vmatprep.subr.bf16.mxu0 0
        %3566 = vmatpush1.bf16.msra.mxu0 %v3559
        %3567 = vmatprep.subr.bf16.mxu0 0
        %3568 = vmatpush1.bf16.msra.mxu0 %v3563
        %3569 = vmatprep.subr.bf16.mxu0 0
        %3570 = vmatpush1.bf16.msra.mxu0 0
        %3571 = vmatprep.subr.bf16.mxu0 0
        %3572 = vmatpush1.bf16.msra.mxu0 0
        %3573 = vmatprep.subr.bf16.mxu0 0
        %3574 = vmatpush1.bf16.msra.mxu0 0
        %3575 = vmatprep.subr.bf16.mxu0 0
        %3576 = vmatpush1.bf16.msra.mxu0 0
        %3577 = vmatprep.subr.bf16.mxu0 0
        %3578 = vmatpush1.bf16.msra.mxu0 0
        %3579 = vmatprep.subr.bf16.mxu0 0
        %3580 = vmatpush1.bf16.msra.mxu0 0
        %3581 = vmatprep.subr.bf16.mxu0 0
        %3582 = vmatpush1.bf16.msra.mxu0 0
        %3583 = vmatprep.subr.bf16.mxu0 0
        %3584 = vmatpush1.bf16.msra.mxu0 0
        %3585 = vmatprep.subr.bf16.mxu0 0
        %3586 = vmatpush1.bf16.msra.mxu0 0
        %3587 = vmatprep.subr.bf16.mxu0 0
        %3588 = vmatpush1.bf16.msra.mxu0 0
        %3589 = vmatprep.subr.bf16.mxu0 0
        %3590 = vmatpush1.bf16.msra.mxu0 0
        %3591 = vmatprep.subr.bf16.mxu0 0
        %3592 = vmatpush1.bf16.msra.mxu0 0
        %3593 = vmatprep.subr.bf16.mxu0 0
        %3594 = vmatpush1.bf16.msra.mxu0 0
        %3595 = vmatprep.subr.bf16.mxu0 0
        %3596 = vmatpush1.bf16.msra.mxu0 0
        %3597 = vmatprep.mubr.bf16.mxu0 0
        %3598 = vmatmul.mubr.bf16.gmra.mrb[0].mxu0 %v2973
        %v3599 = vpop.f32.mrb[0].mxu0
        %v3600 = vadd.f32 0.0, %v3599
        %v3601 = vpop.f32.mrb[0].mxu0
        %v3602 = vpop.f32.mrb[0].mxu0
        %v3603 = vadd.f32 0.0, %v3602
        %v3604 = vpop.f32.mrb[0].mxu0
        %3605 = vmatprep.mubr.bf16.mxu0 0
        %3606 = vmatmul.mubr.bf16.gmra.mrb[0].mxu0 %v2975
        %v3607 = vpop.f32.mrb[0].mxu0
        %v3608 = vadd.f32 0.0, %v3607
        %v3609 = vpop.f32.mrb[0].mxu0
        %v3610 = vpop.f32.mrb[0].mxu0
        %v3611 = vadd.f32 0.0, %v3610
        %v3612 = vpop.f32.mrb[0].mxu0
        %3613 = vmatprep.mubr.bf16.mxu0 0
        %3614 = vmatmul.mubr.bf16.gmra.mrb[0].mxu0 %v2977
        %v3615 = vpop.f32.mrb[0].mxu0
        %v3616 = vadd.f32 0.0, %v3615
        %v3617 = vpop.f32.mrb[0].mxu0
        %v3618 = vpop.f32.mrb[0].mxu0
        %v3619 = vadd.f32 0.0, %v3618
        %v3620 = vpop.f32.mrb[0].mxu0
        %3621 = vmatprep.mubr.bf16.mxu0 0
        %3622 = vmatmul.mubr.bf16.gmra.mrb[0].mxu0 %v2979
        %v3623 = vpop.f32.mrb[0].mxu0
        %v3624 = vadd.f32 0.0, %v3623
        %v3625 = vpop.f32.mrb[0].mxu0
        %v3626 = vpop.f32.mrb[0].mxu0
        %v3627 = vadd.f32 0.0, %v3626
        %v3628 = vpop.f32.mrb[0].mxu0
        %3629 = vmatprep.mubr.bf16.mxu0 0
        %3630 = vmatmul.mubr.bf16.gmra.mrb[0].mxu0 %v2981
        %v3631 = vpop.f32.mrb[0].mxu0
        %v3632 = vadd.f32 0.0, %v3631
        %v3633 = vpop.f32.mrb[0].mxu0
        %v3634 = vpop.f32.mrb[0].mxu0
        %v3635 = vadd.f32 0.0, %v3634
        %v3636 = vpop.f32.mrb[0].mxu0
        %3637 = vmatprep.mubr.bf16.mxu0 0
        %3638 = vmatmul.mubr.bf16.gmra.mrb[0].mxu0 %v2983
        %v3639 = vpop.f32.mrb[0].mxu0
        %v3640 = vadd.f32 0.0, %v3639
        %v3641 = vpop.f32.mrb[0].mxu0
        %v3642 = vpop.f32.mrb[0].mxu0
        %v3643 = vadd.f32 0.0, %v3642
        %v3644 = vpop.f32.mrb[0].mxu0
        %3645 = vmatprep.mubr.bf16.mxu0 0
        %3646 = vmatmul.mubr.bf16.gmra.mrb[0].mxu0 %v2985
        %v3647 = vpop.f32.mrb[0].mxu0
        %v3648 = vadd.f32 0.0, %v3647
        %v3649 = vpop.f32.mrb[0].mxu0
        %v3650 = vpop.f32.mrb[0].mxu0
        %v3651 = vadd.f32 0.0, %v3650
        %v3652 = vpop.f32.mrb[0].mxu0
        %3653 = vmatprep.mubr.bf16.mxu0 0
        %3654 = vmatmul.mubr.bf16.gmra.mrb[0].mxu0 %v2987
        %v3655 = vpop.f32.mrb[0].mxu0
        %v3656 = vadd.f32 0.0, %v3655
        %v3657 = vpop.f32.mrb[0].mxu0
        %v3658 = vpop.f32.mrb[0].mxu0
        %v3659 = vadd.f32 0.0, %v3658
        %v3660 = vpop.f32.mrb[0].mxu0
        %3661 = vmatprep.mubr.bf16.mxu0 0
        %3662 = vmatmul.mubr.bf16.gmra.mrb[0].mxu0 %v2989
        %v3663 = vpop.f32.mrb[0].mxu0
        %v3664 = vadd.f32 0.0, %v3663
        %v3665 = vpop.f32.mrb[0].mxu0
        %v3666 = vpop.f32.mrb[0].mxu0
        %v3667 = vadd.f32 0.0, %v3666
        %v3668 = vpop.f32.mrb[0].mxu0
        %3669 = vmatprep.mubr.bf16.mxu0 0
        %3670 = vmatmul.mubr.bf16.gmra.mrb[0].mxu0 %v2991
        %v3671 = vpop.f32.mrb[0].mxu0
        %v3672 = vadd.f32 0.0, %v3671
        %v3673 = vpop.f32.mrb[0].mxu0
        %v3674 = vpop.f32.mrb[0].mxu0
        %v3675 = vadd.f32 0.0, %v3674
        %v3676 = vpop.f32.mrb[0].mxu0
        %3677 = vmatprep.mubr.bf16.mxu0 0
        %3678 = vmatmul.mubr.bf16.gmra.mrb[0].mxu0 %v2993
        %v3679 = vpop.f32.mrb[0].mxu0
        %v3680 = vadd.f32 0.0, %v3679
        %v3681 = vpop.f32.mrb[0].mxu0
        %v3682 = vpop.f32.mrb[0].mxu0
        %v3683 = vadd.f32 0.0, %v3682
        %v3684 = vpop.f32.mrb[0].mxu0
        %3685 = vmatprep.mubr.bf16.mxu0 0
        %3686 = vmatmul.mubr.bf16.gmra.mrb[0].mxu0 %v2995
        %v3687 = vpop.f32.mrb[0].mxu0
        %v3688 = vadd.f32 0.0, %v3687
        %v3689 = vpop.f32.mrb[0].mxu0
        %v3690 = vpop.f32.mrb[0].mxu0
        %v3691 = vadd.f32 0.0, %v3690
        %v3692 = vpop.f32.mrb[0].mxu0
        %3693 = vmatprep.mubr.bf16.mxu0 0
        %3694 = vmatmul.mubr.bf16.gmra.mrb[0].mxu0 %v2997
        %v3695 = vpop.f32.mrb[0].mxu0
        %v3696 = vadd.f32 0.0, %v3695
        %v3697 = vpop.f32.mrb[0].mxu0
        %v3698 = vpop.f32.mrb[0].mxu0
        %v3699 = vadd.f32 0.0, %v3698
        %v3700 = vpop.f32.mrb[0].mxu0
        %3701 = vmatprep.mubr.bf16.mxu0 0
        %3702 = vmatmul.mubr.bf16.gmra.mrb[0].mxu0 %v2999
        %v3703 = vpop.f32.mrb[0].mxu0
        %v3704 = vadd.f32 0.0, %v3703
        %v3705 = vpop.f32.mrb[0].mxu0
        %v3706 = vpop.f32.mrb[0].mxu0
        %v3707 = vadd.f32 0.0, %v3706
        %v3708 = vpop.f32.mrb[0].mxu0
        %3709 = vmatprep.mubr.bf16.mxu0 0
        %3710 = vmatmul.mubr.bf16.gmra.mrb[0].mxu0 %v3351
        %v3711 = vpop.f32.mrb[0].mxu0
        %v3712 = vadd.f32 0.0, %v3711
        %v3713 = vpop.f32.mrb[0].mxu0
        %v3714 = vpop.f32.mrb[0].mxu0
        %v3715 = vadd.f32 0.0, %v3714
        %v3716 = vpop.f32.mrb[0].mxu0
        %3717 = vmatprep.mubr.bf16.mxu0 0
        %3718 = vmatmul.mubr.bf16.gmra.mrb[0].mxu0 %v2969
        %v3719 = vpop.f32.mrb[0].mxu0
        %v3720 = vadd.f32 0.0, %v3719
        %v3721 = vpop.f32.mrb[0].mxu0
        %v3722 = vpop.f32.mrb[0].mxu0
        %v3723 = vadd.f32 0.0, %v3722
        %v3724 = vpop.f32.mrb[0].mxu0
        %3725 = vdwg.mxu0
        %v3726 = vadd.f32 %v3517, %v3600
        %v3727 = vadd.f32 %v3518, %v3603
        %v3728 = vadd.f32 %v3519, %v3608
        %v3729 = vadd.f32 %v3520, %v3611
        %v3730 = vadd.f32 %v3521, %v3616
        %v3731 = vadd.f32 %v3522, %v3619
        %v3732 = vadd.f32 %v3523, %v3624
        %v3733 = vadd.f32 %v3524, %v3627
        %v3734 = vadd.f32 %v3525, %v3632
        %v3735 = vadd.f32 %v3526, %v3635
        %v3736 = vadd.f32 %v3527, %v3640
        %v3737 = vadd.f32 %v3528, %v3643
        %v3738 = vadd.f32 %v3529, %v3648
        %v3739 = vadd.f32 %v3530, %v3651
        %v3740 = vadd.f32 %v3531, %v3656
        %v3741 = vadd.f32 %v3532, %v3659
        %v3742 = vadd.f32 %v3533, %v3664
        %v3743 = vadd.f32 %v3534, %v3667
        %v3744 = vadd.f32 %v3535, %v3672
        %v3745 = vadd.f32 %v3536, %v3675
        %v3746 = vadd.f32 %v3537, %v3680
        %v3747 = vadd.f32 %v3538, %v3683
        %v3748 = vadd.f32 %v3539, %v3688
        %v3749 = vadd.f32 %v3540, %v3691
        %v3750 = vadd.f32 %v3541, %v3696
        %v3751 = vadd.f32 %v3542, %v3699
        %v3752 = vadd.f32 %v3543, %v3704
        %v3753 = vadd.f32 %v3544, %v3707
        %v3754 = vadd.f32 %v3545, %v3712
        %v3755 = vadd.f32 %v3546, %v3715
        %v3756 = vadd.f32 %v3547, %v3720
        %v3757 = vadd.f32 %v3548, %v3723
        %s3758 = scalar_lea.vmem %s5, 48
        %v3759 = vld [vmem:[%s3758] sm:$0xf]
        %v3760 = vld [vmem:[%s3758 + $0x4] sm:$0xf]
        %v3761 = vld [vmem:[%s3758 + $0x8] sm:$0x3]
        %v3765 = vunpack.c.l.b16 %v3759
        %v3766 = vunpack.c.l.b16 %v3760
        %v3767 = vunpack.c.l.b16 %v3761
        %v3768 = vpack.c.b16 %v3766, %v3765
        %v3769 = vpack.c.b16 %v3767, %v3767
        %v3772 = vsel %vm496, %v3769, 0
        %3774 = vmatprep.subr.bf16.mxu0 0
        %3775 = vmatpush1.bf16.msra.mxu0 %v3768
        %3776 = vmatprep.subr.bf16.mxu0 0
        %3777 = vmatpush1.bf16.msra.mxu0 %v3772
        %3778 = vmatprep.subr.bf16.mxu0 0
        %3779 = vmatpush1.bf16.msra.mxu0 0
        %3780 = vmatprep.subr.bf16.mxu0 0
        %3781 = vmatpush1.bf16.msra.mxu0 0
        %3782 = vmatprep.subr.bf16.mxu0 0
        %3783 = vmatpush1.bf16.msra.mxu0 0
        %3784 = vmatprep.subr.bf16.mxu0 0
        %3785 = vmatpush1.bf16.msra.mxu0 0
        %3786 = vmatprep.subr.bf16.mxu0 0
        %3787 = vmatpush1.bf16.msra.mxu0 0
        %3788 = vmatprep.subr.bf16.mxu0 0
        %3789 = vmatpush1.bf16.msra.mxu0 0
        %3790 = vmatprep.subr.bf16.mxu0 0
        %3791 = vmatpush1.bf16.msra.mxu0 0
        %3792 = vmatprep.subr.bf16.mxu0 0
        %3793 = vmatpush1.bf16.msra.mxu0 0
        %3794 = vmatprep.subr.bf16.mxu0 0
        %3795 = vmatpush1.bf16.msra.mxu0 0
        %3796 = vmatprep.subr.bf16.mxu0 0
        %3797 = vmatpush1.bf16.msra.mxu0 0
        %3798 = vmatprep.subr.bf16.mxu0 0
        %3799 = vmatpush1.bf16.msra.mxu0 0
        %3800 = vmatprep.subr.bf16.mxu0 0
        %3801 = vmatpush1.bf16.msra.mxu0 0
        %3802 = vmatprep.subr.bf16.mxu0 0
        %3803 = vmatpush1.bf16.msra.mxu0 0
        %3804 = vmatprep.subr.bf16.mxu0 0
        %3805 = vmatpush1.bf16.msra.mxu0 0
        %3806 = vmatprep.mubr.bf16.mxu0 0
        %3807 = vmatmul.mubr.bf16.gmra.mrb[0].mxu0 %v2975
        %v3808 = vpop.f32.mrb[0].mxu0
        %v3809 = vadd.f32 0.0, %v3808
        %v3810 = vpop.f32.mrb[0].mxu0
        %v3811 = vpop.f32.mrb[0].mxu0
        %v3812 = vadd.f32 0.0, %v3811
        %v3813 = vpop.f32.mrb[0].mxu0
        %3814 = vmatprep.mubr.bf16.mxu0 0
        %3815 = vmatmul.mubr.bf16.gmra.mrb[0].mxu0 %v2977
        %v3816 = vpop.f32.mrb[0].mxu0
        %v3817 = vadd.f32 0.0, %v3816
        %v3818 = vpop.f32.mrb[0].mxu0
        %v3819 = vpop.f32.mrb[0].mxu0
        %v3820 = vadd.f32 0.0, %v3819
        %v3821 = vpop.f32.mrb[0].mxu0
        %3822 = vmatprep.mubr.bf16.mxu0 0
        %3823 = vmatmul.mubr.bf16.gmra.mrb[0].mxu0 %v2979
        %v3824 = vpop.f32.mrb[0].mxu0
        %v3825 = vadd.f32 0.0, %v3824
        %v3826 = vpop.f32.mrb[0].mxu0
        %v3827 = vpop.f32.mrb[0].mxu0
        %v3828 = vadd.f32 0.0, %v3827
        %v3829 = vpop.f32.mrb[0].mxu0
        %3830 = vmatprep.mubr.bf16.mxu0 0
        %3831 = vmatmul.mubr.bf16.gmra.mrb[0].mxu0 %v2981
        %v3832 = vpop.f32.mrb[0].mxu0
        %v3833 = vadd.f32 0.0, %v3832
        %v3834 = vpop.f32.mrb[0].mxu0
        %v3835 = vpop.f32.mrb[0].mxu0
        %v3836 = vadd.f32 0.0, %v3835
        %v3837 = vpop.f32.mrb[0].mxu0
        %3838 = vmatprep.mubr.bf16.mxu0 0
        %3839 = vmatmul.mubr.bf16.gmra.mrb[0].mxu0 %v2983
        %v3840 = vpop.f32.mrb[0].mxu0
        %v3841 = vadd.f32 0.0, %v3840
        %v3842 = vpop.f32.mrb[0].mxu0
        %v3843 = vpop.f32.mrb[0].mxu0
        %v3844 = vadd.f32 0.0, %v3843
        %v3845 = vpop.f32.mrb[0].mxu0
        %3846 = vmatprep.mubr.bf16.mxu0 0
        %3847 = vmatmul.mubr.bf16.gmra.mrb[0].mxu0 %v2985
        %v3848 = vpop.f32.mrb[0].mxu0
        %v3849 = vadd.f32 0.0, %v3848
        %v3850 = vpop.f32.mrb[0].mxu0
        %v3851 = vpop.f32.mrb[0].mxu0
        %v3852 = vadd.f32 0.0, %v3851
        %v3853 = vpop.f32.mrb[0].mxu0
        %3854 = vmatprep.mubr.bf16.mxu0 0
        %3855 = vmatmul.mubr.bf16.gmra.mrb[0].mxu0 %v2987
        %v3856 = vpop.f32.mrb[0].mxu0
        %v3857 = vadd.f32 0.0, %v3856
        %v3858 = vpop.f32.mrb[0].mxu0
        %v3859 = vpop.f32.mrb[0].mxu0
        %v3860 = vadd.f32 0.0, %v3859
        %v3861 = vpop.f32.mrb[0].mxu0
        %3862 = vmatprep.mubr.bf16.mxu0 0
        %3863 = vmatmul.mubr.bf16.gmra.mrb[0].mxu0 %v2989
        %v3864 = vpop.f32.mrb[0].mxu0
        %v3865 = vadd.f32 0.0, %v3864
        %v3866 = vpop.f32.mrb[0].mxu0
        %v3867 = vpop.f32.mrb[0].mxu0
        %v3868 = vadd.f32 0.0, %v3867
        %v3869 = vpop.f32.mrb[0].mxu0
        %3870 = vmatprep.mubr.bf16.mxu0 0
        %3871 = vmatmul.mubr.bf16.gmra.mrb[0].mxu0 %v2991
        %v3872 = vpop.f32.mrb[0].mxu0
        %v3873 = vadd.f32 0.0, %v3872
        %v3874 = vpop.f32.mrb[0].mxu0
        %v3875 = vpop.f32.mrb[0].mxu0
        %v3876 = vadd.f32 0.0, %v3875
        %v3877 = vpop.f32.mrb[0].mxu0
        %3878 = vmatprep.mubr.bf16.mxu0 0
        %3879 = vmatmul.mubr.bf16.gmra.mrb[0].mxu0 %v2993
        %v3880 = vpop.f32.mrb[0].mxu0
        %v3881 = vadd.f32 0.0, %v3880
        %v3882 = vpop.f32.mrb[0].mxu0
        %v3883 = vpop.f32.mrb[0].mxu0
        %v3884 = vadd.f32 0.0, %v3883
        %v3885 = vpop.f32.mrb[0].mxu0
        %3886 = vmatprep.mubr.bf16.mxu0 0
        %3887 = vmatmul.mubr.bf16.gmra.mrb[0].mxu0 %v2995
        %v3888 = vpop.f32.mrb[0].mxu0
        %v3889 = vadd.f32 0.0, %v3888
        %v3890 = vpop.f32.mrb[0].mxu0
        %v3891 = vpop.f32.mrb[0].mxu0
        %v3892 = vadd.f32 0.0, %v3891
        %v3893 = vpop.f32.mrb[0].mxu0
        %3894 = vmatprep.mubr.bf16.mxu0 0
        %3895 = vmatmul.mubr.bf16.gmra.mrb[0].mxu0 %v2997
        %v3896 = vpop.f32.mrb[0].mxu0
        %v3897 = vadd.f32 0.0, %v3896
        %v3898 = vpop.f32.mrb[0].mxu0
        %v3899 = vpop.f32.mrb[0].mxu0
        %v3900 = vadd.f32 0.0, %v3899
        %v3901 = vpop.f32.mrb[0].mxu0
        %3902 = vmatprep.mubr.bf16.mxu0 0
        %3903 = vmatmul.mubr.bf16.gmra.mrb[0].mxu0 %v2999
        %v3904 = vpop.f32.mrb[0].mxu0
        %v3905 = vadd.f32 0.0, %v3904
        %v3906 = vpop.f32.mrb[0].mxu0
        %v3907 = vpop.f32.mrb[0].mxu0
        %v3908 = vadd.f32 0.0, %v3907
        %v3909 = vpop.f32.mrb[0].mxu0
        %3910 = vmatprep.mubr.bf16.mxu0 0
        %3911 = vmatmul.mubr.bf16.gmra.mrb[0].mxu0 %v3351
        %v3912 = vpop.f32.mrb[0].mxu0
        %v3913 = vadd.f32 0.0, %v3912
        %v3914 = vpop.f32.mrb[0].mxu0
        %v3915 = vpop.f32.mrb[0].mxu0
        %v3916 = vadd.f32 0.0, %v3915
        %v3917 = vpop.f32.mrb[0].mxu0
        %3918 = vmatprep.mubr.bf16.mxu0 0
        %3919 = vmatmul.mubr.bf16.gmra.mrb[0].mxu0 %v2969
        %v3920 = vpop.f32.mrb[0].mxu0
        %v3921 = vadd.f32 0.0, %v3920
        %v3922 = vpop.f32.mrb[0].mxu0
        %v3923 = vpop.f32.mrb[0].mxu0
        %v3924 = vadd.f32 0.0, %v3923
        %v3925 = vpop.f32.mrb[0].mxu0
        %3926 = vmatprep.mubr.bf16.mxu0 0
        %3927 = vmatmul.mubr.bf16.gmra.mrb[0].mxu0 %v2969
        %v3928 = vpop.f32.mrb[0].mxu0
        %v3929 = vadd.f32 0.0, %v3928
        %v3930 = vpop.f32.mrb[0].mxu0
        %v3931 = vpop.f32.mrb[0].mxu0
        %v3932 = vadd.f32 0.0, %v3931
        %v3933 = vpop.f32.mrb[0].mxu0
        %3934 = vdwg.mxu0
        %v3935 = vadd.f32 %v3726, %v3809
        %v3936 = vadd.f32 %v3727, %v3812
        %v3937 = vadd.f32 %v3728, %v3817
        %v3938 = vadd.f32 %v3729, %v3820
        %v3939 = vadd.f32 %v3730, %v3825
        %v3940 = vadd.f32 %v3731, %v3828
        %v3941 = vadd.f32 %v3732, %v3833
        %v3942 = vadd.f32 %v3733, %v3836
        %v3943 = vadd.f32 %v3734, %v3841
        %v3944 = vadd.f32 %v3735, %v3844
        %v3945 = vadd.f32 %v3736, %v3849
        %v3946 = vadd.f32 %v3737, %v3852
        %v3947 = vadd.f32 %v3738, %v3857
        %v3948 = vadd.f32 %v3739, %v3860
        %v3949 = vadd.f32 %v3740, %v3865
        %v3950 = vadd.f32 %v3741, %v3868
        %v3951 = vadd.f32 %v3742, %v3873
        %v3952 = vadd.f32 %v3743, %v3876
        %v3953 = vadd.f32 %v3744, %v3881
        %v3954 = vadd.f32 %v3745, %v3884
        %v3955 = vadd.f32 %v3746, %v3889
        %v3956 = vadd.f32 %v3747, %v3892
        %v3957 = vadd.f32 %v3748, %v3897
        %v3958 = vadd.f32 %v3749, %v3900
        %v3959 = vadd.f32 %v3750, %v3905
        %v3960 = vadd.f32 %v3751, %v3908
        %v3961 = vadd.f32 %v3752, %v3913
        %v3962 = vadd.f32 %v3753, %v3916
        %v3963 = vadd.f32 %v3754, %v3921
        %v3964 = vadd.f32 %v3755, %v3924
        %v3965 = vadd.f32 %v3756, %v3929
        %v3966 = vadd.f32 %v3757, %v3932
        %v3967 = vld [vmem:[%s6] sm:$0x3]
        %v3968 = vlaneseq
        %v3969 = vshrl.u32 %v3968, 7
        %v3970 = vsub.s32 0, %v3969
        %v3971 = vrot.slane %v3967, %v3970
        %v3972 = vmul.f32 %v3935, %v3971
        %v3973 = vmul.f32 %v3936, %v3971
        %v3974 = vmul.f32 %v3937, %v3971
        %v3975 = vmul.f32 %v3938, %v3971
        %v3976 = vmul.f32 %v3939, %v3971
        %v3977 = vmul.f32 %v3940, %v3971
        %v3978 = vmul.f32 %v3941, %v3971
        %v3979 = vmul.f32 %v3942, %v3971
        %v3980 = vmul.f32 %v3943, %v3971
        %v3981 = vmul.f32 %v3944, %v3971
        %v3982 = vmul.f32 %v3945, %v3971
        %v3983 = vmul.f32 %v3946, %v3971
        %v3984 = vmul.f32 %v3947, %v3971
        %v3985 = vmul.f32 %v3948, %v3971
        %v3986 = vmul.f32 %v3949, %v3971
        %v3987 = vmul.f32 %v3950, %v3971
        %v3988 = vmul.f32 %v3951, %v3971
        %v3989 = vmul.f32 %v3952, %v3971
        %v3990 = vmul.f32 %v3953, %v3971
        %v3991 = vmul.f32 %v3954, %v3971
        %v3992 = vmul.f32 %v3955, %v3971
        %v3993 = vmul.f32 %v3956, %v3971
        %v3994 = vmul.f32 %v3957, %v3971
        %v3995 = vmul.f32 %v3958, %v3971
        %v3996 = vmul.f32 %v3959, %v3971
        %v3997 = vmul.f32 %v3960, %v3971
        %v3998 = vmul.f32 %v3961, %v3971
        %v3999 = vmul.f32 %v3962, %v3971
        %v4000 = vmul.f32 %v3963, %v3971
        %v4001 = vmul.f32 %v3964, %v3971
        %v4002 = vmul.f32 %v3965, %v3971
        %v4003 = vmul.f32 %v3966, %v3971
        %v4004 = vlaneseq
        %v4005 = vshrl.u32 %v4004, 7
        %v4006 = vsub.s32 1, %v4005
        %v4007 = vrot.slane %v3967, %v4006
        %v4008 = vadd.f32 %v3972, %v4007
        %v4009 = vadd.f32 %v3973, %v4007
        %v4010 = vadd.f32 %v3974, %v4007
        %v4011 = vadd.f32 %v3975, %v4007
        %v4012 = vadd.f32 %v3976, %v4007
        %v4013 = vadd.f32 %v3977, %v4007
        %v4014 = vadd.f32 %v3978, %v4007
        %v4015 = vadd.f32 %v3979, %v4007
        %v4016 = vadd.f32 %v3980, %v4007
        %v4017 = vadd.f32 %v3981, %v4007
        %v4018 = vadd.f32 %v3982, %v4007
        %v4019 = vadd.f32 %v3983, %v4007
        %v4020 = vadd.f32 %v3984, %v4007
        %v4021 = vadd.f32 %v3985, %v4007
        %v4022 = vadd.f32 %v3986, %v4007
        %v4023 = vadd.f32 %v3987, %v4007
        %v4024 = vadd.f32 %v3988, %v4007
        %v4025 = vadd.f32 %v3989, %v4007
        %v4026 = vadd.f32 %v3990, %v4007
        %v4027 = vadd.f32 %v3991, %v4007
        %v4028 = vadd.f32 %v3992, %v4007
        %v4029 = vadd.f32 %v3993, %v4007
        %v4030 = vadd.f32 %v3994, %v4007
        %v4031 = vadd.f32 %v3995, %v4007
        %v4032 = vadd.f32 %v3996, %v4007
        %v4033 = vadd.f32 %v3997, %v4007
        %v4034 = vadd.f32 %v3998, %v4007
        %v4035 = vadd.f32 %v3999, %v4007
        %v4036 = vadd.f32 %v4000, %v4007
        %v4037 = vadd.f32 %v4001, %v4007
        %v4038 = vadd.f32 %v4002, %v4007
        %v4039 = vadd.f32 %v4003, %v4007
        %v4040 = vmax.f32 %v4008, 0.0
        %v4041 = vmax.f32 %v4009, 0.0
        %v4042 = vmax.f32 %v4010, 0.0
        %v4043 = vmax.f32 %v4011, 0.0
        %v4044 = vmax.f32 %v4012, 0.0
        %v4045 = vmax.f32 %v4013, 0.0
        %v4046 = vmax.f32 %v4014, 0.0
        %v4047 = vmax.f32 %v4015, 0.0
        %v4048 = vmax.f32 %v4016, 0.0
        %v4049 = vmax.f32 %v4017, 0.0
        %v4050 = vmax.f32 %v4018, 0.0
        %v4051 = vmax.f32 %v4019, 0.0
        %v4052 = vmax.f32 %v4020, 0.0
        %v4053 = vmax.f32 %v4021, 0.0
        %v4054 = vmax.f32 %v4022, 0.0
        %v4055 = vmax.f32 %v4023, 0.0
        %v4056 = vmax.f32 %v4024, 0.0
        %v4057 = vmax.f32 %v4025, 0.0
        %v4058 = vmax.f32 %v4026, 0.0
        %v4059 = vmax.f32 %v4027, 0.0
        %v4060 = vmax.f32 %v4028, 0.0
        %v4061 = vmax.f32 %v4029, 0.0
        %v4062 = vmax.f32 %v4030, 0.0
        %v4063 = vmax.f32 %v4031, 0.0
        %v4064 = vmax.f32 %v4032, 0.0
        %v4065 = vmax.f32 %v4033, 0.0
        %v4066 = vmax.f32 %v4034, 0.0
        %v4067 = vmax.f32 %v4035, 0.0
        %v4068 = vmax.f32 %v4036, 0.0
        %v4069 = vmax.f32 %v4037, 0.0
        %v4070 = vmax.f32 %v4038, 0.0
        %v4071 = vmax.f32 %v4039, 0.0
        %v4072 = vshrl.u32 %v431, 16
        %v4074 = vrot.slane %v4072, 7
        %v4075 = vshll.u32 %v431, 16
        %v4077 = vor.u32 %v4074, %v4075
        %v4078 = vshrl.u32 %v432, 16
        %v4080 = vrot.slane %v4078, 7
        %v4081 = vshll.u32 %v432, 16
        %v4083 = vor.u32 %v4080, %v4081
        %v4084 = vshrl.u32 %v433, 16
        %v4086 = vrot.slane %v4084, 7
        %v4087 = vshll.u32 %v433, 16
        %v4089 = vor.u32 %v4086, %v4087
        %v4090 = vshrl.u32 %v434, 16
        %v4092 = vrot.slane %v4090, 7
        %v4093 = vshll.u32 %v434, 16
        %v4095 = vor.u32 %v4092, %v4093
        %v4096 = vshrl.u32 %v435, 16
        %v4098 = vrot.slane %v4096, 7
        %v4099 = vshll.u32 %v435, 16
        %v4101 = vor.u32 %v4098, %v4099
        %v4102 = vshrl.u32 %v436, 16
        %v4104 = vrot.slane %v4102, 7
        %v4105 = vshll.u32 %v436, 16
        %v4107 = vor.u32 %v4104, %v4105
        %v4108 = vshrl.u32 %v437, 16
        %v4110 = vrot.slane %v4108, 7
        %v4111 = vshll.u32 %v437, 16
        %v4113 = vor.u32 %v4110, %v4111
        %v4114 = vshrl.u32 %v438, 16
        %v4116 = vrot.slane %v4114, 7
        %v4117 = vshll.u32 %v438, 16
        %v4119 = vor.u32 %v4116, %v4117
        %v4120 = vshrl.u32 %v439, 16
        %v4122 = vrot.slane %v4120, 7
        %v4123 = vshll.u32 %v439, 16
        %v4125 = vor.u32 %v4122, %v4123
        %v4126 = vshrl.u32 %v440, 16
        %v4128 = vrot.slane %v4126, 7
        %v4129 = vshll.u32 %v440, 16
        %v4131 = vor.u32 %v4128, %v4129
        %v4132 = vshrl.u32 %v441, 16
        %v4134 = vrot.slane %v4132, 7
        %v4135 = vshll.u32 %v441, 16
        %v4137 = vor.u32 %v4134, %v4135
        %v4138 = vshrl.u32 %v442, 16
        %v4140 = vrot.slane %v4138, 7
        %v4141 = vshll.u32 %v442, 16
        %v4143 = vor.u32 %v4140, %v4141
        %v4144 = vshrl.u32 %v443, 16
        %v4146 = vrot.slane %v4144, 7
        %v4147 = vshll.u32 %v443, 16
        %v4149 = vor.u32 %v4146, %v4147
        %v4150 = vshrl.u32 %v444, 16
        %v4152 = vrot.slane %v4150, 7
        %v4153 = vshll.u32 %v444, 16
        %v4155 = vor.u32 %v4152, %v4153
        %v4156 = vshrl.u32 %v445, 16
        %v4158 = vrot.slane %v4156, 7
        %v4159 = vshll.u32 %v445, 16
        %v4161 = vor.u32 %v4158, %v4159
        %v4162 = vshrl.u32 %v446, 16
        %v4164 = vrot.slane %v4162, 7
        %v4165 = vshll.u32 %v446, 16
        %v4167 = vor.u32 %v4164, %v4165
        %v4200 = vsel %vm991, 4286644096, %v4077
        %v4201 = vsel %vm991, 4286644096, %v4083
        %v4202 = vsel %vm991, 4286644096, %v4089
        %v4203 = vsel %vm991, 4286644096, %v4095
        %v4204 = vsel %vm991, 4286644096, %v4101
        %v4205 = vsel %vm991, 4286644096, %v4107
        %v4206 = vsel %vm991, 4286644096, %v4113
        %v4207 = vsel %vm991, 4286644096, %v4119
        %v4208 = vsel %vm991, 4286644096, %v4125
        %v4209 = vsel %vm991, 4286644096, %v4131
        %v4210 = vsel %vm991, 4286644096, %v4137
        %v4211 = vsel %vm991, 4286644096, %v4143
        %v4212 = vsel %vm991, 4286644096, %v4149
        %v4213 = vsel %vm991, 4286644096, %v4155
        %v4214 = vsel %vm991, 4286644096, %v4161
        %v4215 = vsel %vm991, 4286644096, %v4167
        %v4216 = vsel %vm991, %v4074, 4286644096
        %v4217 = vsel %vm991, %v4080, 4286644096
        %v4218 = vsel %vm991, %v4086, 4286644096
        %v4219 = vsel %vm991, %v4092, 4286644096
        %v4220 = vsel %vm991, %v4098, 4286644096
        %v4221 = vsel %vm991, %v4104, 4286644096
        %v4222 = vsel %vm991, %v4110, 4286644096
        %v4223 = vsel %vm991, %v4116, 4286644096
        %v4224 = vsel %vm991, %v4122, 4286644096
        %v4225 = vsel %vm991, %v4128, 4286644096
        %v4226 = vsel %vm991, %v4134, 4286644096
        %v4227 = vsel %vm991, %v4140, 4286644096
        %v4228 = vsel %vm991, %v4146, 4286644096
        %v4229 = vsel %vm991, %v4152, 4286644096
        %v4230 = vsel %vm991, %v4158, 4286644096
        %v4231 = vsel %vm991, %v4164, 4286644096
        %v4233 = vshrl.u32 4286644096, 16
        %v4235 = vshll.u32 4286644096, 16
        %v4237 = vrot.slane %v4235, 1
        %v4238 = vor.u32 %v4233, %v4237
        %v4239 = vsel %vm1024, %v4238, %v4237
        %v4241 = vshrl.u32 %v4200, 16
        %v4243 = vshll.u32 %v4200, 16
        %v4245 = vrot.slane %v4243, 1
        %v4246 = vor.u32 %v4241, %v4245
        %v4248 = vshll.u32 %v4216, 16
        %v4250 = vrot.slane %v4248, 1
        %v4251 = vsel %vm1024, %v4246, %v4250
        %v4253 = vshrl.u32 %v4201, 16
        %v4255 = vshll.u32 %v4201, 16
        %v4257 = vrot.slane %v4255, 1
        %v4258 = vor.u32 %v4253, %v4257
        %v4260 = vshll.u32 %v4217, 16
        %v4262 = vrot.slane %v4260, 1
        %v4263 = vsel %vm1024, %v4258, %v4262
        %v4265 = vshrl.u32 %v4202, 16
        %v4267 = vshll.u32 %v4202, 16
        %v4269 = vrot.slane %v4267, 1
        %v4270 = vor.u32 %v4265, %v4269
        %v4272 = vshll.u32 %v4218, 16
        %v4274 = vrot.slane %v4272, 1
        %v4275 = vsel %vm1024, %v4270, %v4274
        %v4277 = vshrl.u32 %v4203, 16
        %v4279 = vshll.u32 %v4203, 16
        %v4281 = vrot.slane %v4279, 1
        %v4282 = vor.u32 %v4277, %v4281
        %v4284 = vshll.u32 %v4219, 16
        %v4286 = vrot.slane %v4284, 1
        %v4287 = vsel %vm1024, %v4282, %v4286
        %v4289 = vshrl.u32 %v4204, 16
        %v4291 = vshll.u32 %v4204, 16
        %v4293 = vrot.slane %v4291, 1
        %v4294 = vor.u32 %v4289, %v4293
        %v4296 = vshll.u32 %v4220, 16
        %v4298 = vrot.slane %v4296, 1
        %v4299 = vsel %vm1024, %v4294, %v4298
        %v4301 = vshrl.u32 %v4205, 16
        %v4303 = vshll.u32 %v4205, 16
        %v4305 = vrot.slane %v4303, 1
        %v4306 = vor.u32 %v4301, %v4305
        %v4308 = vshll.u32 %v4221, 16
        %v4310 = vrot.slane %v4308, 1
        %v4311 = vsel %vm1024, %v4306, %v4310
        %v4313 = vshrl.u32 %v4206, 16
        %v4315 = vshll.u32 %v4206, 16
        %v4317 = vrot.slane %v4315, 1
        %v4318 = vor.u32 %v4313, %v4317
        %v4320 = vshll.u32 %v4222, 16
        %v4322 = vrot.slane %v4320, 1
        %v4323 = vsel %vm1024, %v4318, %v4322
        %v4325 = vshrl.u32 %v4207, 16
        %v4327 = vshll.u32 %v4207, 16
        %v4329 = vrot.slane %v4327, 1
        %v4330 = vor.u32 %v4325, %v4329
        %v4332 = vshll.u32 %v4223, 16
        %v4334 = vrot.slane %v4332, 1
        %v4335 = vsel %vm1024, %v4330, %v4334
        %v4337 = vshrl.u32 %v4208, 16
        %v4339 = vshll.u32 %v4208, 16
        %v4341 = vrot.slane %v4339, 1
        %v4342 = vor.u32 %v4337, %v4341
        %v4344 = vshll.u32 %v4224, 16
        %v4346 = vrot.slane %v4344, 1
        %v4347 = vsel %vm1024, %v4342, %v4346
        %v4349 = vshrl.u32 %v4209, 16
        %v4351 = vshll.u32 %v4209, 16
        %v4353 = vrot.slane %v4351, 1
        %v4354 = vor.u32 %v4349, %v4353
        %v4356 = vshll.u32 %v4225, 16
        %v4358 = vrot.slane %v4356, 1
        %v4359 = vsel %vm1024, %v4354, %v4358
        %v4361 = vshrl.u32 %v4210, 16
        %v4363 = vshll.u32 %v4210, 16
        %v4365 = vrot.slane %v4363, 1
        %v4366 = vor.u32 %v4361, %v4365
        %v4368 = vshll.u32 %v4226, 16
        %v4370 = vrot.slane %v4368, 1
        %v4371 = vsel %vm1024, %v4366, %v4370
        %v4373 = vshrl.u32 %v4211, 16
        %v4375 = vshll.u32 %v4211, 16
        %v4377 = vrot.slane %v4375, 1
        %v4378 = vor.u32 %v4373, %v4377
        %v4380 = vshll.u32 %v4227, 16
        %v4382 = vrot.slane %v4380, 1
        %v4383 = vsel %vm1024, %v4378, %v4382
        %v4385 = vshrl.u32 %v4212, 16
        %v4387 = vshll.u32 %v4212, 16
        %v4389 = vrot.slane %v4387, 1
        %v4390 = vor.u32 %v4385, %v4389
        %v4392 = vshll.u32 %v4228, 16
        %v4394 = vrot.slane %v4392, 1
        %v4395 = vsel %vm1024, %v4390, %v4394
        %v4397 = vshrl.u32 %v4213, 16
        %v4399 = vshll.u32 %v4213, 16
        %v4401 = vrot.slane %v4399, 1
        %v4402 = vor.u32 %v4397, %v4401
        %v4404 = vshll.u32 %v4229, 16
        %v4406 = vrot.slane %v4404, 1
        %v4407 = vsel %vm1024, %v4402, %v4406
        %v4409 = vshrl.u32 %v4214, 16
        %v4411 = vshll.u32 %v4214, 16
        %v4413 = vrot.slane %v4411, 1
        %v4414 = vor.u32 %v4409, %v4413
        %v4416 = vshll.u32 %v4230, 16
        %v4418 = vrot.slane %v4416, 1
        %v4419 = vsel %vm1024, %v4414, %v4418
        %v4421 = vshrl.u32 %v4215, 16
        %v4423 = vshll.u32 %v4215, 16
        %v4425 = vrot.slane %v4423, 1
        %v4426 = vor.u32 %v4421, %v4425
        %v4428 = vshll.u32 %v4231, 16
        %v4430 = vrot.slane %v4428, 1
        %v4431 = vsel %vm1024, %v4426, %v4430
        %v4449 = vmax.bf16 %v4200, %v4251
        %v4450 = vmax.bf16 %v4201, %v4263
        %v4451 = vmax.bf16 %v4202, %v4275
        %v4452 = vmax.bf16 %v4203, %v4287
        %v4453 = vmax.bf16 %v4204, %v4299
        %v4454 = vmax.bf16 %v4205, %v4311
        %v4455 = vmax.bf16 %v4206, %v4323
        %v4456 = vmax.bf16 %v4207, %v4335
        %v4457 = vmax.bf16 %v4208, %v4347
        %v4458 = vmax.bf16 %v4209, %v4359
        %v4459 = vmax.bf16 %v4210, %v4371
        %v4460 = vmax.bf16 %v4211, %v4383
        %v4461 = vmax.bf16 %v4212, %v4395
        %v4462 = vmax.bf16 %v4213, %v4407
        %v4463 = vmax.bf16 %v4214, %v4419
        %v4464 = vmax.bf16 %v4215, %v4431
        %v4498 = vrot.slane 4286644096, 1
        %v4499 = vsel %vm1292, %v4498, %v4498
        %v4500 = vrot.slane %v4200, 1
        %v4501 = vrot.slane %v4216, 1
        %v4502 = vsel %vm1292, %v4500, %v4501
        %v4503 = vrot.slane %v4201, 1
        %v4504 = vrot.slane %v4217, 1
        %v4505 = vsel %vm1292, %v4503, %v4504
        %v4506 = vrot.slane %v4202, 1
        %v4507 = vrot.slane %v4218, 1
        %v4508 = vsel %vm1292, %v4506, %v4507
        %v4509 = vrot.slane %v4203, 1
        %v4510 = vrot.slane %v4219, 1
        %v4511 = vsel %vm1292, %v4509, %v4510
        %v4512 = vrot.slane %v4204, 1
        %v4513 = vrot.slane %v4220, 1
        %v4514 = vsel %vm1292, %v4512, %v4513
        %v4515 = vrot.slane %v4205, 1
        %v4516 = vrot.slane %v4221, 1
        %v4517 = vsel %vm1292, %v4515, %v4516
        %v4518 = vrot.slane %v4206, 1
        %v4519 = vrot.slane %v4222, 1
        %v4520 = vsel %vm1292, %v4518, %v4519
        %v4521 = vrot.slane %v4207, 1
        %v4522 = vrot.slane %v4223, 1
        %v4523 = vsel %vm1292, %v4521, %v4522
        %v4524 = vrot.slane %v4208, 1
        %v4525 = vrot.slane %v4224, 1
        %v4526 = vsel %vm1292, %v4524, %v4525
        %v4527 = vrot.slane %v4209, 1
        %v4528 = vrot.slane %v4225, 1
        %v4529 = vsel %vm1292, %v4527, %v4528
        %v4530 = vrot.slane %v4210, 1
        %v4531 = vrot.slane %v4226, 1
        %v4532 = vsel %vm1292, %v4530, %v4531
        %v4533 = vrot.slane %v4211, 1
        %v4534 = vrot.slane %v4227, 1
        %v4535 = vsel %vm1292, %v4533, %v4534
        %v4536 = vrot.slane %v4212, 1
        %v4537 = vrot.slane %v4228, 1
        %v4538 = vsel %vm1292, %v4536, %v4537
        %v4539 = vrot.slane %v4213, 1
        %v4540 = vrot.slane %v4229, 1
        %v4541 = vsel %vm1292, %v4539, %v4540
        %v4542 = vrot.slane %v4214, 1
        %v4543 = vrot.slane %v4230, 1
        %v4544 = vsel %vm1292, %v4542, %v4543
        %v4545 = vrot.slane %v4215, 1
        %v4546 = vrot.slane %v4231, 1
        %v4547 = vsel %vm1292, %v4545, %v4546
        %v4565 = vmax.bf16 %v4239, %v4499
        %v4566 = vmax.bf16 %v4449, %v4502
        %v4567 = vmax.bf16 %v4450, %v4505
        %v4568 = vmax.bf16 %v4451, %v4508
        %v4569 = vmax.bf16 %v4452, %v4511
        %v4570 = vmax.bf16 %v4453, %v4514
        %v4571 = vmax.bf16 %v4454, %v4517
        %v4572 = vmax.bf16 %v4455, %v4520
        %v4573 = vmax.bf16 %v4456, %v4523
        %v4574 = vmax.bf16 %v4457, %v4526
        %v4575 = vmax.bf16 %v4458, %v4529
        %v4576 = vmax.bf16 %v4459, %v4532
        %v4577 = vmax.bf16 %v4460, %v4535
        %v4578 = vmax.bf16 %v4461, %v4538
        %v4579 = vmax.bf16 %v4462, %v4541
        %v4580 = vmax.bf16 %v4463, %v4544
        %v4581 = vmax.bf16 %v4464, %v4547
        %v4582 = vmax.bf16 %v4565, %v4566
        %v4583 = vmax.bf16 %v4566, %v4567
        %v4584 = vmax.bf16 %v4567, %v4568
        %v4585 = vmax.bf16 %v4568, %v4569
        %v4586 = vmax.bf16 %v4569, %v4570
        %v4587 = vmax.bf16 %v4570, %v4571
        %v4588 = vmax.bf16 %v4571, %v4572
        %v4589 = vmax.bf16 %v4572, %v4573
        %v4590 = vmax.bf16 %v4573, %v4574
        %v4591 = vmax.bf16 %v4574, %v4575
        %v4592 = vmax.bf16 %v4575, %v4576
        %v4593 = vmax.bf16 %v4576, %v4577
        %v4594 = vmax.bf16 %v4577, %v4578
        %v4595 = vmax.bf16 %v4578, %v4579
        %v4596 = vmax.bf16 %v4579, %v4580
        %v4597 = vmax.bf16 %v4580, %v4581
        %v4598 = vmax.bf16 %v4582, %v4567
        %v4599 = vmax.bf16 %v4583, %v4568
        %v4600 = vmax.bf16 %v4584, %v4569
        %v4601 = vmax.bf16 %v4585, %v4570
        %v4602 = vmax.bf16 %v4586, %v4571
        %v4603 = vmax.bf16 %v4587, %v4572
        %v4604 = vmax.bf16 %v4588, %v4573
        %v4605 = vmax.bf16 %v4589, %v4574
        %v4606 = vmax.bf16 %v4590, %v4575
        %v4607 = vmax.bf16 %v4591, %v4576
        %v4608 = vmax.bf16 %v4592, %v4577
        %v4609 = vmax.bf16 %v4593, %v4578
        %v4610 = vmax.bf16 %v4594, %v4579
        %v4611 = vmax.bf16 %v4595, %v4580
        %v4612 = vmax.bf16 %v4596, %v4581
        %v4613 = vmax.bf16 %v4597, %v4565
        %v4614 = vld [vmem:[%s8] sm:$0x3]
        %v4615 = vld [vmem:[%s7] sm:$0x3]
        %v4617 = vsel %vm447, %v4598, 0
        %v4620 = vsel %vm447, %v4599, 0
        %v4623 = vsel %vm447, %v4600, 0
        %v4626 = vsel %vm447, %v4601, 0
        %v4629 = vsel %vm447, %v4602, 0
        %v4632 = vsel %vm447, %v4603, 0
        %v4635 = vsel %vm447, %v4604, 0
        %v4638 = vsel %vm447, %v4605, 0
        %v4641 = vsel %vm447, %v4606, 0
        %v4644 = vsel %vm447, %v4607, 0
        %v4647 = vsel %vm447, %v4608, 0
        %v4650 = vsel %vm447, %v4609, 0
        %v4653 = vsel %vm447, %v4610, 0
        %v4656 = vsel %vm447, %v4611, 0
        %v4659 = vsel %vm447, %v4612, 0
        %v4662 = vsel %vm447, %v4613, 0
        %v4665 = vsel %vm496, %v4615, 0
        %4667 = vmatprep.subr.bf16.mxu0 0
        %4668 = vmatpush1.bf16.msra.mxu0 %v4665
        %4669 = vmatprep.subr.bf16.mxu0 0
        %4670 = vmatpush1.bf16.msra.mxu0 0
        %4671 = vmatprep.subr.bf16.mxu0 0
        %4672 = vmatpush1.bf16.msra.mxu0 0
        %4673 = vmatprep.subr.bf16.mxu0 0
        %4674 = vmatpush1.bf16.msra.mxu0 0
        %4675 = vmatprep.subr.bf16.mxu0 0
        %4676 = vmatpush1.bf16.msra.mxu0 0
        %4677 = vmatprep.subr.bf16.mxu0 0
        %4678 = vmatpush1.bf16.msra.mxu0 0
        %4679 = vmatprep.subr.bf16.mxu0 0
        %4680 = vmatpush1.bf16.msra.mxu0 0
        %4681 = vmatprep.subr.bf16.mxu0 0
        %4682 = vmatpush1.bf16.msra.mxu0 0
        %4683 = vmatprep.subr.bf16.mxu0 0
        %4684 = vmatpush1.bf16.msra.mxu0 0
        %4685 = vmatprep.subr.bf16.mxu0 0
        %4686 = vmatpush1.bf16.msra.mxu0 0
        %4687 = vmatprep.subr.bf16.mxu0 0
        %4688 = vmatpush1.bf16.msra.mxu0 0
        %4689 = vmatprep.subr.bf16.mxu0 0
        %4690 = vmatpush1.bf16.msra.mxu0 0
        %4691 = vmatprep.subr.bf16.mxu0 0
        %4692 = vmatpush1.bf16.msra.mxu0 0
        %4693 = vmatprep.subr.bf16.mxu0 0
        %4694 = vmatpush1.bf16.msra.mxu0 0
        %4695 = vmatprep.subr.bf16.mxu0 0
        %4696 = vmatpush1.bf16.msra.mxu0 0
        %4697 = vmatprep.subr.bf16.mxu0 0
        %4698 = vmatpush1.bf16.msra.mxu0 0
        %4699 = vmatprep.mubr.bf16.mxu0 0
        %4700 = vmatmul.mubr.bf16.gmra.mrb[0].mxu0 %v4617
        %v4701 = vpop.f32.mrb[0].mxu0
        %v4702 = vadd.f32 0.0, %v4701
        %v4703 = vpop.f32.mrb[0].mxu0
        %v4704 = vpop.f32.mrb[0].mxu0
        %v4705 = vadd.f32 0.0, %v4704
        %v4706 = vpop.f32.mrb[0].mxu0
        %4707 = vmatprep.mubr.bf16.mxu0 0
        %4708 = vmatmul.mubr.bf16.gmra.mrb[0].mxu0 %v4620
        %v4709 = vpop.f32.mrb[0].mxu0
        %v4710 = vadd.f32 0.0, %v4709
        %v4711 = vpop.f32.mrb[0].mxu0
        %v4712 = vpop.f32.mrb[0].mxu0
        %v4713 = vadd.f32 0.0, %v4712
        %v4714 = vpop.f32.mrb[0].mxu0
        %4715 = vmatprep.mubr.bf16.mxu0 0
        %4716 = vmatmul.mubr.bf16.gmra.mrb[0].mxu0 %v4623
        %v4717 = vpop.f32.mrb[0].mxu0
        %v4718 = vadd.f32 0.0, %v4717
        %v4719 = vpop.f32.mrb[0].mxu0
        %v4720 = vpop.f32.mrb[0].mxu0
        %v4721 = vadd.f32 0.0, %v4720
        %v4722 = vpop.f32.mrb[0].mxu0
        %4723 = vmatprep.mubr.bf16.mxu0 0
        %4724 = vmatmul.mubr.bf16.gmra.mrb[0].mxu0 %v4626
        %v4725 = vpop.f32.mrb[0].mxu0
        %v4726 = vadd.f32 0.0, %v4725
        %v4727 = vpop.f32.mrb[0].mxu0
        %v4728 = vpop.f32.mrb[0].mxu0
        %v4729 = vadd.f32 0.0, %v4728
        %v4730 = vpop.f32.mrb[0].mxu0
        %4731 = vmatprep.mubr.bf16.mxu0 0
        %4732 = vmatmul.mubr.bf16.gmra.mrb[0].mxu0 %v4629
        %v4733 = vpop.f32.mrb[0].mxu0
        %v4734 = vadd.f32 0.0, %v4733
        %v4735 = vpop.f32.mrb[0].mxu0
        %v4736 = vpop.f32.mrb[0].mxu0
        %v4737 = vadd.f32 0.0, %v4736
        %v4738 = vpop.f32.mrb[0].mxu0
        %4739 = vmatprep.mubr.bf16.mxu0 0
        %4740 = vmatmul.mubr.bf16.gmra.mrb[0].mxu0 %v4632
        %v4741 = vpop.f32.mrb[0].mxu0
        %v4742 = vadd.f32 0.0, %v4741
        %v4743 = vpop.f32.mrb[0].mxu0
        %v4744 = vpop.f32.mrb[0].mxu0
        %v4745 = vadd.f32 0.0, %v4744
        %v4746 = vpop.f32.mrb[0].mxu0
        %4747 = vmatprep.mubr.bf16.mxu0 0
        %4748 = vmatmul.mubr.bf16.gmra.mrb[0].mxu0 %v4635
        %v4749 = vpop.f32.mrb[0].mxu0
        %v4750 = vadd.f32 0.0, %v4749
        %v4751 = vpop.f32.mrb[0].mxu0
        %v4752 = vpop.f32.mrb[0].mxu0
        %v4753 = vadd.f32 0.0, %v4752
        %v4754 = vpop.f32.mrb[0].mxu0
        %4755 = vmatprep.mubr.bf16.mxu0 0
        %4756 = vmatmul.mubr.bf16.gmra.mrb[0].mxu0 %v4638
        %v4757 = vpop.f32.mrb[0].mxu0
        %v4758 = vadd.f32 0.0, %v4757
        %v4759 = vpop.f32.mrb[0].mxu0
        %v4760 = vpop.f32.mrb[0].mxu0
        %v4761 = vadd.f32 0.0, %v4760
        %v4762 = vpop.f32.mrb[0].mxu0
        %4763 = vmatprep.mubr.bf16.mxu0 0
        %4764 = vmatmul.mubr.bf16.gmra.mrb[0].mxu0 %v4641
        %v4765 = vpop.f32.mrb[0].mxu0
        %v4766 = vadd.f32 0.0, %v4765
        %v4767 = vpop.f32.mrb[0].mxu0
        %v4768 = vpop.f32.mrb[0].mxu0
        %v4769 = vadd.f32 0.0, %v4768
        %v4770 = vpop.f32.mrb[0].mxu0
        %4771 = vmatprep.mubr.bf16.mxu0 0
        %4772 = vmatmul.mubr.bf16.gmra.mrb[0].mxu0 %v4644
        %v4773 = vpop.f32.mrb[0].mxu0
        %v4774 = vadd.f32 0.0, %v4773
        %v4775 = vpop.f32.mrb[0].mxu0
        %v4776 = vpop.f32.mrb[0].mxu0
        %v4777 = vadd.f32 0.0, %v4776
        %v4778 = vpop.f32.mrb[0].mxu0
        %4779 = vmatprep.mubr.bf16.mxu0 0
        %4780 = vmatmul.mubr.bf16.gmra.mrb[0].mxu0 %v4647
        %v4781 = vpop.f32.mrb[0].mxu0
        %v4782 = vadd.f32 0.0, %v4781
        %v4783 = vpop.f32.mrb[0].mxu0
        %v4784 = vpop.f32.mrb[0].mxu0
        %v4785 = vadd.f32 0.0, %v4784
        %v4786 = vpop.f32.mrb[0].mxu0
        %4787 = vmatprep.mubr.bf16.mxu0 0
        %4788 = vmatmul.mubr.bf16.gmra.mrb[0].mxu0 %v4650
        %v4789 = vpop.f32.mrb[0].mxu0
        %v4790 = vadd.f32 0.0, %v4789
        %v4791 = vpop.f32.mrb[0].mxu0
        %v4792 = vpop.f32.mrb[0].mxu0
        %v4793 = vadd.f32 0.0, %v4792
        %v4794 = vpop.f32.mrb[0].mxu0
        %4795 = vmatprep.mubr.bf16.mxu0 0
        %4796 = vmatmul.mubr.bf16.gmra.mrb[0].mxu0 %v4653
        %v4797 = vpop.f32.mrb[0].mxu0
        %v4798 = vadd.f32 0.0, %v4797
        %v4799 = vpop.f32.mrb[0].mxu0
        %v4800 = vpop.f32.mrb[0].mxu0
        %v4801 = vadd.f32 0.0, %v4800
        %v4802 = vpop.f32.mrb[0].mxu0
        %4803 = vmatprep.mubr.bf16.mxu0 0
        %4804 = vmatmul.mubr.bf16.gmra.mrb[0].mxu0 %v4656
        %v4805 = vpop.f32.mrb[0].mxu0
        %v4806 = vadd.f32 0.0, %v4805
        %v4807 = vpop.f32.mrb[0].mxu0
        %v4808 = vpop.f32.mrb[0].mxu0
        %v4809 = vadd.f32 0.0, %v4808
        %v4810 = vpop.f32.mrb[0].mxu0
        %4811 = vmatprep.mubr.bf16.mxu0 0
        %4812 = vmatmul.mubr.bf16.gmra.mrb[0].mxu0 %v4659
        %v4813 = vpop.f32.mrb[0].mxu0
        %v4814 = vadd.f32 0.0, %v4813
        %v4815 = vpop.f32.mrb[0].mxu0
        %v4816 = vpop.f32.mrb[0].mxu0
        %v4817 = vadd.f32 0.0, %v4816
        %v4818 = vpop.f32.mrb[0].mxu0
        %4819 = vmatprep.mubr.bf16.mxu0 0
        %4820 = vmatmul.mubr.bf16.gmra.mrb[0].mxu0 %v4662
        %v4821 = vpop.f32.mrb[0].mxu0
        %v4822 = vadd.f32 0.0, %v4821
        %v4823 = vpop.f32.mrb[0].mxu0
        %v4824 = vpop.f32.mrb[0].mxu0
        %v4825 = vadd.f32 0.0, %v4824
        %v4826 = vpop.f32.mrb[0].mxu0
        %4827 = vdwg.mxu0
        %v4828 = vlaneseq
        %v4829 = vshrl.u32 %v4828, 7
        %v4830 = vsub.s32 0, %v4829
        %v4831 = vrot.slane %v4614, %v4830
        %v4832 = vmul.f32 %v4702, %v4831
        %v4833 = vmul.f32 %v4705, %v4831
        %v4834 = vmul.f32 %v4710, %v4831
        %v4835 = vmul.f32 %v4713, %v4831
        %v4836 = vmul.f32 %v4718, %v4831
        %v4837 = vmul.f32 %v4721, %v4831
        %v4838 = vmul.f32 %v4726, %v4831
        %v4839 = vmul.f32 %v4729, %v4831
        %v4840 = vmul.f32 %v4734, %v4831
        %v4841 = vmul.f32 %v4737, %v4831
        %v4842 = vmul.f32 %v4742, %v4831
        %v4843 = vmul.f32 %v4745, %v4831
        %v4844 = vmul.f32 %v4750, %v4831
        %v4845 = vmul.f32 %v4753, %v4831
        %v4846 = vmul.f32 %v4758, %v4831
        %v4847 = vmul.f32 %v4761, %v4831
        %v4848 = vmul.f32 %v4766, %v4831
        %v4849 = vmul.f32 %v4769, %v4831
        %v4850 = vmul.f32 %v4774, %v4831
        %v4851 = vmul.f32 %v4777, %v4831
        %v4852 = vmul.f32 %v4782, %v4831
        %v4853 = vmul.f32 %v4785, %v4831
        %v4854 = vmul.f32 %v4790, %v4831
        %v4855 = vmul.f32 %v4793, %v4831
        %v4856 = vmul.f32 %v4798, %v4831
        %v4857 = vmul.f32 %v4801, %v4831
        %v4858 = vmul.f32 %v4806, %v4831
        %v4859 = vmul.f32 %v4809, %v4831
        %v4860 = vmul.f32 %v4814, %v4831
        %v4861 = vmul.f32 %v4817, %v4831
        %v4862 = vmul.f32 %v4822, %v4831
        %v4863 = vmul.f32 %v4825, %v4831
        %v4864 = vlaneseq
        %v4865 = vshrl.u32 %v4864, 7
        %v4866 = vsub.s32 1, %v4865
        %v4867 = vrot.slane %v4614, %v4866
        %v4868 = vadd.f32 %v4832, %v4867
        %v4869 = vadd.f32 %v4833, %v4867
        %v4870 = vadd.f32 %v4834, %v4867
        %v4871 = vadd.f32 %v4835, %v4867
        %v4872 = vadd.f32 %v4836, %v4867
        %v4873 = vadd.f32 %v4837, %v4867
        %v4874 = vadd.f32 %v4838, %v4867
        %v4875 = vadd.f32 %v4839, %v4867
        %v4876 = vadd.f32 %v4840, %v4867
        %v4877 = vadd.f32 %v4841, %v4867
        %v4878 = vadd.f32 %v4842, %v4867
        %v4879 = vadd.f32 %v4843, %v4867
        %v4880 = vadd.f32 %v4844, %v4867
        %v4881 = vadd.f32 %v4845, %v4867
        %v4882 = vadd.f32 %v4846, %v4867
        %v4883 = vadd.f32 %v4847, %v4867
        %v4884 = vadd.f32 %v4848, %v4867
        %v4885 = vadd.f32 %v4849, %v4867
        %v4886 = vadd.f32 %v4850, %v4867
        %v4887 = vadd.f32 %v4851, %v4867
        %v4888 = vadd.f32 %v4852, %v4867
        %v4889 = vadd.f32 %v4853, %v4867
        %v4890 = vadd.f32 %v4854, %v4867
        %v4891 = vadd.f32 %v4855, %v4867
        %v4892 = vadd.f32 %v4856, %v4867
        %v4893 = vadd.f32 %v4857, %v4867
        %v4894 = vadd.f32 %v4858, %v4867
        %v4895 = vadd.f32 %v4859, %v4867
        %v4896 = vadd.f32 %v4860, %v4867
        %v4897 = vadd.f32 %v4861, %v4867
        %v4898 = vadd.f32 %v4862, %v4867
        %v4899 = vadd.f32 %v4863, %v4867
        %v4900 = vmax.f32 %v4868, 0.0
        %v4901 = vmax.f32 %v4869, 0.0
        %v4902 = vmax.f32 %v4870, 0.0
        %v4903 = vmax.f32 %v4871, 0.0
        %v4904 = vmax.f32 %v4872, 0.0
        %v4905 = vmax.f32 %v4873, 0.0
        %v4906 = vmax.f32 %v4874, 0.0
        %v4907 = vmax.f32 %v4875, 0.0
        %v4908 = vmax.f32 %v4876, 0.0
        %v4909 = vmax.f32 %v4877, 0.0
        %v4910 = vmax.f32 %v4878, 0.0
        %v4911 = vmax.f32 %v4879, 0.0
        %v4912 = vmax.f32 %v4880, 0.0
        %v4913 = vmax.f32 %v4881, 0.0
        %v4914 = vmax.f32 %v4882, 0.0
        %v4915 = vmax.f32 %v4883, 0.0
        %v4916 = vmax.f32 %v4884, 0.0
        %v4917 = vmax.f32 %v4885, 0.0
        %v4918 = vmax.f32 %v4886, 0.0
        %v4919 = vmax.f32 %v4887, 0.0
        %v4920 = vmax.f32 %v4888, 0.0
        %v4921 = vmax.f32 %v4889, 0.0
        %v4922 = vmax.f32 %v4890, 0.0
        %v4923 = vmax.f32 %v4891, 0.0
        %v4924 = vmax.f32 %v4892, 0.0
        %v4925 = vmax.f32 %v4893, 0.0
        %v4926 = vmax.f32 %v4894, 0.0
        %v4927 = vmax.f32 %v4895, 0.0
        %v4928 = vmax.f32 %v4896, 0.0
        %v4929 = vmax.f32 %v4897, 0.0
        %v4930 = vmax.f32 %v4898, 0.0
        %v4931 = vmax.f32 %v4899, 0.0
        %4964 = vrot.lane.b32.xlu0 %v2102, 8
        %v4965 = vpop.permute.xlu0 %4964
        %4966 = vrot.lane.b32.xlu0 %v2103, 8
        %v4967 = vpop.permute.xlu0 %4966
        %4968 = vrot.lane.b32.xlu0 %v2104, 8
        %v4969 = vpop.permute.xlu0 %4968
        %4970 = vrot.lane.b32.xlu0 %v2105, 8
        %v4971 = vpop.permute.xlu0 %4970
        %4972 = vrot.lane.b32.xlu0 %v2106, 8
        %v4973 = vpop.permute.xlu0 %4972
        %4974 = vrot.lane.b32.xlu0 %v2107, 8
        %v4975 = vpop.permute.xlu0 %4974
        %4976 = vrot.lane.b32.xlu0 %v2108, 8
        %v4977 = vpop.permute.xlu0 %4976
        %4978 = vrot.lane.b32.xlu0 %v2109, 8
        %v4979 = vpop.permute.xlu0 %4978
        %4980 = vrot.lane.b32.xlu0 %v2110, 8
        %v4981 = vpop.permute.xlu0 %4980
        %4982 = vrot.lane.b32.xlu0 %v2111, 8
        %v4983 = vpop.permute.xlu0 %4982
        %4984 = vrot.lane.b32.xlu0 %v2112, 8
        %v4985 = vpop.permute.xlu0 %4984
        %4986 = vrot.lane.b32.xlu0 %v2113, 8
        %v4987 = vpop.permute.xlu0 %4986
        %4988 = vrot.lane.b32.xlu0 %v2114, 8
        %v4989 = vpop.permute.xlu0 %4988
        %4990 = vrot.lane.b32.xlu0 %v2115, 8
        %v4991 = vpop.permute.xlu0 %4990
        %4992 = vrot.lane.b32.xlu0 %v2116, 8
        %v4993 = vpop.permute.xlu0 %4992
        %4994 = vrot.lane.b32.xlu0 %v2117, 8
        %v4995 = vpop.permute.xlu0 %4994
        %4996 = vrot.lane.b32.xlu0 %v2118, 8
        %v4997 = vpop.permute.xlu0 %4996
        %4998 = vrot.lane.b32.xlu0 %v2119, 8
        %v4999 = vpop.permute.xlu0 %4998
        %5000 = vrot.lane.b32.xlu0 %v2120, 8
        %v5001 = vpop.permute.xlu0 %5000
        %5002 = vrot.lane.b32.xlu0 %v2121, 8
        %v5003 = vpop.permute.xlu0 %5002
        %5004 = vrot.lane.b32.xlu0 %v2122, 8
        %v5005 = vpop.permute.xlu0 %5004
        %5006 = vrot.lane.b32.xlu0 %v2123, 8
        %v5007 = vpop.permute.xlu0 %5006
        %5008 = vrot.lane.b32.xlu0 %v2124, 8
        %v5009 = vpop.permute.xlu0 %5008
        %5010 = vrot.lane.b32.xlu0 %v2125, 8
        %v5011 = vpop.permute.xlu0 %5010
        %5012 = vrot.lane.b32.xlu0 %v2126, 8
        %v5013 = vpop.permute.xlu0 %5012
        %5014 = vrot.lane.b32.xlu0 %v2127, 8
        %v5015 = vpop.permute.xlu0 %5014
        %5016 = vrot.lane.b32.xlu0 %v2128, 8
        %v5017 = vpop.permute.xlu0 %5016
        %5018 = vrot.lane.b32.xlu0 %v2129, 8
        %v5019 = vpop.permute.xlu0 %5018
        %5020 = vrot.lane.b32.xlu0 %v2130, 8
        %v5021 = vpop.permute.xlu0 %5020
        %5022 = vrot.lane.b32.xlu0 %v2131, 8
        %v5023 = vpop.permute.xlu0 %5022
        %5024 = vrot.lane.b32.xlu0 %v2132, 8
        %v5025 = vpop.permute.xlu0 %5024
        %5026 = vrot.lane.b32.xlu0 %v2133, 8
        %v5027 = vpop.permute.xlu0 %5026
        %5092 = vrot.lane.b32.xlu0 %v4040, 16
        %v5093 = vpop.permute.xlu0 %5092
        %5094 = vrot.lane.b32.xlu0 %v4041, 16
        %v5095 = vpop.permute.xlu0 %5094
        %5096 = vrot.lane.b32.xlu0 %v4042, 16
        %v5097 = vpop.permute.xlu0 %5096
        %5098 = vrot.lane.b32.xlu0 %v4043, 16
        %v5099 = vpop.permute.xlu0 %5098
        %5100 = vrot.lane.b32.xlu0 %v4044, 16
        %v5101 = vpop.permute.xlu0 %5100
        %5102 = vrot.lane.b32.xlu0 %v4045, 16
        %v5103 = vpop.permute.xlu0 %5102
        %5104 = vrot.lane.b32.xlu0 %v4046, 16
        %v5105 = vpop.permute.xlu0 %5104
        %5106 = vrot.lane.b32.xlu0 %v4047, 16
        %v5107 = vpop.permute.xlu0 %5106
        %5108 = vrot.lane.b32.xlu0 %v4048, 16
        %v5109 = vpop.permute.xlu0 %5108
        %5110 = vrot.lane.b32.xlu0 %v4049, 16
        %v5111 = vpop.permute.xlu0 %5110
        %5112 = vrot.lane.b32.xlu0 %v4050, 16
        %v5113 = vpop.permute.xlu0 %5112
        %5114 = vrot.lane.b32.xlu0 %v4051, 16
        %v5115 = vpop.permute.xlu0 %5114
        %5116 = vrot.lane.b32.xlu0 %v4052, 16
        %v5117 = vpop.permute.xlu0 %5116
        %5118 = vrot.lane.b32.xlu0 %v4053, 16
        %v5119 = vpop.permute.xlu0 %5118
        %5120 = vrot.lane.b32.xlu0 %v4054, 16
        %v5121 = vpop.permute.xlu0 %5120
        %5122 = vrot.lane.b32.xlu0 %v4055, 16
        %v5123 = vpop.permute.xlu0 %5122
        %5124 = vrot.lane.b32.xlu0 %v4056, 16
        %v5125 = vpop.permute.xlu0 %5124
        %5126 = vrot.lane.b32.xlu0 %v4057, 16
        %v5127 = vpop.permute.xlu0 %5126
        %5128 = vrot.lane.b32.xlu0 %v4058, 16
        %v5129 = vpop.permute.xlu0 %5128
        %5130 = vrot.lane.b32.xlu0 %v4059, 16
        %v5131 = vpop.permute.xlu0 %5130
        %5132 = vrot.lane.b32.xlu0 %v4060, 16
        %v5133 = vpop.permute.xlu0 %5132
        %5134 = vrot.lane.b32.xlu0 %v4061, 16
        %v5135 = vpop.permute.xlu0 %5134
        %5136 = vrot.lane.b32.xlu0 %v4062, 16
        %v5137 = vpop.permute.xlu0 %5136
        %5138 = vrot.lane.b32.xlu0 %v4063, 16
        %v5139 = vpop.permute.xlu0 %5138
        %5140 = vrot.lane.b32.xlu0 %v4064, 16
        %v5141 = vpop.permute.xlu0 %5140
        %5142 = vrot.lane.b32.xlu0 %v4065, 16
        %v5143 = vpop.permute.xlu0 %5142
        %5144 = vrot.lane.b32.xlu0 %v4066, 16
        %v5145 = vpop.permute.xlu0 %5144
        %5146 = vrot.lane.b32.xlu0 %v4067, 16
        %v5147 = vpop.permute.xlu0 %5146
        %5148 = vrot.lane.b32.xlu0 %v4068, 16
        %v5149 = vpop.permute.xlu0 %5148
        %5150 = vrot.lane.b32.xlu0 %v4069, 16
        %v5151 = vpop.permute.xlu0 %5150
        %5152 = vrot.lane.b32.xlu0 %v4070, 16
        %v5153 = vpop.permute.xlu0 %5152
        %5154 = vrot.lane.b32.xlu0 %v4071, 16
        %v5155 = vpop.permute.xlu0 %5154
        %5220 = vrot.lane.b32.xlu0 %v4900, 24
        %v5221 = vpop.permute.xlu0 %5220
        %5222 = vrot.lane.b32.xlu0 %v4901, 24
        %v5223 = vpop.permute.xlu0 %5222
        %5224 = vrot.lane.b32.xlu0 %v4902, 24
        %v5225 = vpop.permute.xlu0 %5224
        %5226 = vrot.lane.b32.xlu0 %v4903, 24
        %v5227 = vpop.permute.xlu0 %5226
        %5228 = vrot.lane.b32.xlu0 %v4904, 24
        %v5229 = vpop.permute.xlu0 %5228
        %5230 = vrot.lane.b32.xlu0 %v4905, 24
        %v5231 = vpop.permute.xlu0 %5230
        %5232 = vrot.lane.b32.xlu0 %v4906, 24
        %v5233 = vpop.permute.xlu0 %5232
        %5234 = vrot.lane.b32.xlu0 %v4907, 24
        %v5235 = vpop.permute.xlu0 %5234
        %5236 = vrot.lane.b32.xlu0 %v4908, 24
        %v5237 = vpop.permute.xlu0 %5236
        %5238 = vrot.lane.b32.xlu0 %v4909, 24
        %v5239 = vpop.permute.xlu0 %5238
        %5240 = vrot.lane.b32.xlu0 %v4910, 24
        %v5241 = vpop.permute.xlu0 %5240
        %5242 = vrot.lane.b32.xlu0 %v4911, 24
        %v5243 = vpop.permute.xlu0 %5242
        %5244 = vrot.lane.b32.xlu0 %v4912, 24
        %v5245 = vpop.permute.xlu0 %5244
        %5246 = vrot.lane.b32.xlu0 %v4913, 24
        %v5247 = vpop.permute.xlu0 %5246
        %5248 = vrot.lane.b32.xlu0 %v4914, 24
        %v5249 = vpop.permute.xlu0 %5248
        %5250 = vrot.lane.b32.xlu0 %v4915, 24
        %v5251 = vpop.permute.xlu0 %5250
        %5252 = vrot.lane.b32.xlu0 %v4916, 24
        %v5253 = vpop.permute.xlu0 %5252
        %5254 = vrot.lane.b32.xlu0 %v4917, 24
        %v5255 = vpop.permute.xlu0 %5254
        %5256 = vrot.lane.b32.xlu0 %v4918, 24
        %v5257 = vpop.permute.xlu0 %5256
        %5258 = vrot.lane.b32.xlu0 %v4919, 24
        %v5259 = vpop.permute.xlu0 %5258
        %5260 = vrot.lane.b32.xlu0 %v4920, 24
        %v5261 = vpop.permute.xlu0 %5260
        %5262 = vrot.lane.b32.xlu0 %v4921, 24
        %v5263 = vpop.permute.xlu0 %5262
        %5264 = vrot.lane.b32.xlu0 %v4922, 24
        %v5265 = vpop.permute.xlu0 %5264
        %5266 = vrot.lane.b32.xlu0 %v4923, 24
        %v5267 = vpop.permute.xlu0 %5266
        %5268 = vrot.lane.b32.xlu0 %v4924, 24
        %v5269 = vpop.permute.xlu0 %5268
        %5270 = vrot.lane.b32.xlu0 %v4925, 24
        %v5271 = vpop.permute.xlu0 %5270
        %5272 = vrot.lane.b32.xlu0 %v4926, 24
        %v5273 = vpop.permute.xlu0 %5272
        %5274 = vrot.lane.b32.xlu0 %v4927, 24
        %v5275 = vpop.permute.xlu0 %5274
        %5276 = vrot.lane.b32.xlu0 %v4928, 24
        %v5277 = vpop.permute.xlu0 %5276
        %5278 = vrot.lane.b32.xlu0 %v4929, 24
        %v5279 = vpop.permute.xlu0 %5278
        %5280 = vrot.lane.b32.xlu0 %v4930, 24
        %v5281 = vpop.permute.xlu0 %5280
        %5282 = vrot.lane.b32.xlu0 %v4931, 24
        %v5283 = vpop.permute.xlu0 %5282
        %v5316 = vsel %vm1411, %v733, %v4965
        %v5317 = vsel %vm1411, %v734, %v4967
        %v5318 = vsel %vm1411, %v735, %v4969
        %v5319 = vsel %vm1411, %v736, %v4971
        %v5320 = vsel %vm1411, %v737, %v4973
        %v5321 = vsel %vm1411, %v738, %v4975
        %v5322 = vsel %vm1411, %v739, %v4977
        %v5323 = vsel %vm1411, %v740, %v4979
        %v5324 = vsel %vm1411, %v741, %v4981
        %v5325 = vsel %vm1411, %v742, %v4983
        %v5326 = vsel %vm1411, %v743, %v4985
        %v5327 = vsel %vm1411, %v744, %v4987
        %v5328 = vsel %vm1411, %v745, %v4989
        %v5329 = vsel %vm1411, %v746, %v4991
        %v5330 = vsel %vm1411, %v747, %v4993
        %v5331 = vsel %vm1411, %v748, %v4995
        %v5332 = vsel %vm1411, %v749, %v4997
        %v5333 = vsel %vm1411, %v750, %v4999
        %v5334 = vsel %vm1411, %v751, %v5001
        %v5335 = vsel %vm1411, %v752, %v5003
        %v5336 = vsel %vm1411, %v753, %v5005
        %v5337 = vsel %vm1411, %v754, %v5007
        %v5338 = vsel %vm1411, %v755, %v5009
        %v5339 = vsel %vm1411, %v756, %v5011
        %v5340 = vsel %vm1411, %v757, %v5013
        %v5341 = vsel %vm1411, %v758, %v5015
        %v5342 = vsel %vm1411, %v759, %v5017
        %v5343 = vsel %vm1411, %v760, %v5019
        %v5344 = vsel %vm1411, %v761, %v5021
        %v5345 = vsel %vm1411, %v762, %v5023
        %v5346 = vsel %vm1411, %v763, %v5025
        %v5347 = vsel %vm1411, %v764, %v5027
        %v5348 = vsel %vm2917, %v5316, %v5093
        %v5349 = vsel %vm2917, %v5317, %v5095
        %v5350 = vsel %vm2917, %v5318, %v5097
        %v5351 = vsel %vm2917, %v5319, %v5099
        %v5352 = vsel %vm2917, %v5320, %v5101
        %v5353 = vsel %vm2917, %v5321, %v5103
        %v5354 = vsel %vm2917, %v5322, %v5105
        %v5355 = vsel %vm2917, %v5323, %v5107
        %v5356 = vsel %vm2917, %v5324, %v5109
        %v5357 = vsel %vm2917, %v5325, %v5111
        %v5358 = vsel %vm2917, %v5326, %v5113
        %v5359 = vsel %vm2917, %v5327, %v5115
        %v5360 = vsel %vm2917, %v5328, %v5117
        %v5361 = vsel %vm2917, %v5329, %v5119
        %v5362 = vsel %vm2917, %v5330, %v5121
        %v5363 = vsel %vm2917, %v5331, %v5123
        %v5364 = vsel %vm2917, %v5332, %v5125
        %v5365 = vsel %vm2917, %v5333, %v5127
        %v5366 = vsel %vm2917, %v5334, %v5129
        %v5367 = vsel %vm2917, %v5335, %v5131
        %v5368 = vsel %vm2917, %v5336, %v5133
        %v5369 = vsel %vm2917, %v5337, %v5135
        %v5370 = vsel %vm2917, %v5338, %v5137
        %v5371 = vsel %vm2917, %v5339, %v5139
        %v5372 = vsel %vm2917, %v5340, %v5141
        %v5373 = vsel %vm2917, %v5341, %v5143
        %v5374 = vsel %vm2917, %v5342, %v5145
        %v5375 = vsel %vm2917, %v5343, %v5147
        %v5376 = vsel %vm2917, %v5344, %v5149
        %v5377 = vsel %vm2917, %v5345, %v5151
        %v5378 = vsel %vm2917, %v5346, %v5153
        %v5379 = vsel %vm2917, %v5347, %v5155
        %vm5380 = vcmask 195584
        %v5381 = vsel %vm5380, %v5348, %v5221
        %v5382 = vsel %vm5380, %v5349, %v5223
        %v5383 = vsel %vm5380, %v5350, %v5225
        %v5384 = vsel %vm5380, %v5351, %v5227
        %v5385 = vsel %vm5380, %v5352, %v5229
        %v5386 = vsel %vm5380, %v5353, %v5231
        %v5387 = vsel %vm5380, %v5354, %v5233
        %v5388 = vsel %vm5380, %v5355, %v5235
        %v5389 = vsel %vm5380, %v5356, %v5237
        %v5390 = vsel %vm5380, %v5357, %v5239
        %v5391 = vsel %vm5380, %v5358, %v5241
        %v5392 = vsel %vm5380, %v5359, %v5243
        %v5393 = vsel %vm5380, %v5360, %v5245
        %v5394 = vsel %vm5380, %v5361, %v5247
        %v5395 = vsel %vm5380, %v5362, %v5249
        %v5396 = vsel %vm5380, %v5363, %v5251
        %v5397 = vsel %vm5380, %v5364, %v5253
        %v5398 = vsel %vm5380, %v5365, %v5255
        %v5399 = vsel %vm5380, %v5366, %v5257
        %v5400 = vsel %vm5380, %v5367, %v5259
        %v5401 = vsel %vm5380, %v5368, %v5261
        %v5402 = vsel %vm5380, %v5369, %v5263
        %v5403 = vsel %vm5380, %v5370, %v5265
        %v5404 = vsel %vm5380, %v5371, %v5267
        %v5405 = vsel %vm5380, %v5372, %v5269
        %v5406 = vsel %vm5380, %v5373, %v5271
        %v5407 = vsel %vm5380, %v5374, %v5273
        %v5408 = vsel %vm5380, %v5375, %v5275
        %v5409 = vsel %vm5380, %v5376, %v5277
        %v5410 = vsel %vm5380, %v5377, %v5279
        %v5411 = vsel %vm5380, %v5378, %v5281
        %v5412 = vsel %vm5380, %v5379, %v5283
        %vm5413 = vcmask 261120
        %5414 = vst.msk [vmem:[%s325] sm:$0xff] %vm5413, %v5381
        %5415 = vst.msk [vmem:[%s325 + $0x8] sm:$0xff] %vm5413, %v5382
        %5416 = vst.msk [vmem:[%s325 + $0x10] sm:$0xff] %vm5413, %v5383
        %5417 = vst.msk [vmem:[%s325 + $0x18] sm:$0xff] %vm5413, %v5384
        %5418 = vst.msk [vmem:[%s325 + $0x20] sm:$0xff] %vm5413, %v5385
        %5419 = vst.msk [vmem:[%s325 + $0x28] sm:$0xff] %vm5413, %v5386
        %5420 = vst.msk [vmem:[%s325 + $0x30] sm:$0xff] %vm5413, %v5387
        %5421 = vst.msk [vmem:[%s325 + $0x38] sm:$0xff] %vm5413, %v5388
        %5422 = vst.msk [vmem:[%s325 + $0x40] sm:$0xff] %vm5413, %v5389
        %5423 = vst.msk [vmem:[%s325 + $0x48] sm:$0xff] %vm5413, %v5390
        %5424 = vst.msk [vmem:[%s325 + $0x50] sm:$0xff] %vm5413, %v5391
        %5425 = vst.msk [vmem:[%s325 + $0x58] sm:$0xff] %vm5413, %v5392
        %5426 = vst.msk [vmem:[%s325 + $0x60] sm:$0xff] %vm5413, %v5393
        %5427 = vst.msk [vmem:[%s325 + $0x68] sm:$0xff] %vm5413, %v5394
        %5428 = vst.msk [vmem:[%s325 + $0x70] sm:$0xff] %vm5413, %v5395
        %5429 = vst.msk [vmem:[%s325 + $0x78] sm:$0xff] %vm5413, %v5396
        %5430 = vst.msk [vmem:[%s325 + $0x80] sm:$0xff] %vm5413, %v5397
        %5431 = vst.msk [vmem:[%s325 + $0x88] sm:$0xff] %vm5413, %v5398
        %5432 = vst.msk [vmem:[%s325 + $0x90] sm:$0xff] %vm5413, %v5399
        %5433 = vst.msk [vmem:[%s325 + $0x98] sm:$0xff] %vm5413, %v5400
        %5434 = vst.msk [vmem:[%s325 + $0xa0] sm:$0xff] %vm5413, %v5401
        %5435 = vst.msk [vmem:[%s325 + $0xa8] sm:$0xff] %vm5413, %v5402
        %5436 = vst.msk [vmem:[%s325 + $0xb0] sm:$0xff] %vm5413, %v5403
        %5437 = vst.msk [vmem:[%s325 + $0xb8] sm:$0xff] %vm5413, %v5404
        %5438 = vst.msk [vmem:[%s325 + $0xc0] sm:$0xff] %vm5413, %v5405
        %5439 = vst.msk [vmem:[%s325 + $0xc8] sm:$0xff] %vm5413, %v5406
        %5440 = vst.msk [vmem:[%s325 + $0xd0] sm:$0xff] %vm5413, %v5407
        %5441 = vst.msk [vmem:[%s325 + $0xd8] sm:$0xff] %vm5413, %v5408
        %5442 = vst.msk [vmem:[%s325 + $0xe0] sm:$0xff] %vm5413, %v5409
        %5443 = vst.msk [vmem:[%s325 + $0xe8] sm:$0xff] %vm5413, %v5410
        %5444 = vst.msk [vmem:[%s325 + $0xf0] sm:$0xff] %vm5413, %v5411
        %5445 = vst.msk [vmem:[%s325 + $0xf8] sm:$0xff] %vm5413, %v5412
        %s5446 = sand.u32 %s225, 1
        %s5447 = scalar_lea.sflag [#allocation3], %s5446
        %s5448 = sand.u32 %s225, 1
        %s5449 = smul.addr %s5448, 256
        %s5450 = scalar_lea.vmem [#allocation2], %s5449
        // Predicated region
        $region57: #{inception_forward.1} parent=55 // pred_check
          %p5451 = pneg %p235
        $region58: #{inception_forward.1} parent=55 // pred_check_branch
          %5453 = sbr.rel (%p5451) target = $region60
        $region59: #{inception_forward.1} parent=55 // pred_region
          %s5455 = ssub.s32 4096, 4096
          %5456 = vsyncadd %s5447, %s5455
          %s5457 = smul.addr %s23, 32
          %s5458 = smul.addr %s5457, 128
          %s5459 = scalar_lea.hbm %s9, %s5458
          %s5460 = sshll.u32 %s5450, 4
          %s5461 = int_to_ptr.vmem [resolvable:$true] %s5460
          %5466 = dma.vmem_to_hbm [thread:$0]  %s5461, 4096, %s5459, %s5447, 128, 128, 8
        $region60: #{inception_forward.1} parent=55 // pred_fallthru
          _
      $region56: #{inception_forward.1} parent=5 // pred_fallthru
        _
      %p5467 = scmp.le.s32.totalorder 2, %s18
      // Predicated region
      $region61: #{inception_forward.1} parent=5 // pred_check
        %p5468 = pneg %p5467
      $region62: #{inception_forward.1} parent=5 // pred_check_branch
        %5470 = sbr.rel (%p5468) target = $region64
      $region63: #{inception_forward.1} parent=5 // pred_region
        %s5471 = ssub.s32 %s18, 2
        // Predicated region
        $region65: #{inception_forward.1} parent=63 // pred_check
          %p5472 = pneg %p241
        $region66: #{inception_forward.1} parent=63 // pred_check_branch
          %5474 = sbr.rel (%p5472) target = $region68
        $region67: #{inception_forward.1} parent=63 // pred_region
          %s5475 = sand.u32 %s226, 1
          %s5476 = scalar_lea.sflag [#allocation3], %s5475
          %s5477 = sand.u32 %s226, 1
          %s5478 = smul.addr %s5477, 256
          %s5479 = scalar_lea.vmem [#allocation2], %s5478
          %5480 = dma.done %s5476, 4096
        $region68: #{inception_forward.1} parent=63 // pred_fallthru
          _
      $region64: #{inception_forward.1} parent=5 // pred_fallthru
        _
    $region6: #{inception_forward.1} parent=1 // loop_footer
      %s22 = sadd.s32 1, %s18
    $region7: #{inception_forward.1} parent=1 // loop_footer_branch
      %17 = sbr.rel target = $region3
    $region8: #{inception_forward.1} parent=1 // loop_exit
      _
    %5481 = vsyncpa [#allocation3], 1
    %s5482 = scalar_lea.sflag [#allocation3], 1
    %5483 = vsyncpa %s5482, 1

</llo_original>
